<compile_context>
chip_gen: v6e
topology: v6e:2x2x1
jax: 0.10.0
libtpu: 0.0.40
codegen_flags: <defaults>
</compile_context>

<pallas_src>
import functools

import jax
import jax.numpy as jnp
from jax import lax
from jax.experimental import pallas as pl
from jax.experimental.pallas import tpu as pltpu


# --------------------------------------------------------------------------- #
# Fused forward kernel: input projections + encoder LSTM + decoder LSTM with   #
# input feeding + global dot attention + class_fc_1 (feed) + class_fc_2.       #
# --------------------------------------------------------------------------- #
def seq2seq_kernel(src_ref, tgt_ref,
                   w_ih_enc_ref, b_enc_ref, w_hh_enc_ref,
                   w_x_dec_ref, b_dec_ref, w_rec_dec_ref,
                   fc1_w_ref, fc1_b_ref, fc2_w_ref, fc2_b_ref,
                   out_ref,
                   xg_enc_s, xg_dec_s, enc_s, feed_s,
                   *, hidden, src_len, tgt_len, batch):
    H = hidden
    B = batch

    # ---- Hoisted non-recurrent input projections: one big MXU matmul each.
    xg_enc_s[...] = (
        jnp.dot(src_ref[...], w_ih_enc_ref[...],
                preferred_element_type=jnp.float32)
        + b_enc_ref[...])                                    # [S*B, 4H] f32
    xg_dec_s[...] = (
        jnp.dot(tgt_ref[...], w_x_dec_ref[...],
                preferred_element_type=jnp.float32)
        + b_dec_ref[...])                                    # [T*B, 4H] f32

    # ---- Encoder LSTM (serial recurrence, h/c resident in vregs).
    def enc_step(s, carry):
        h, c = carry
        row = pl.multiple_of(s * B, B)
        gates = xg_enc_s[pl.ds(row, B)] + jnp.dot(
            h.astype(jnp.bfloat16), w_hh_enc_ref[...],
            preferred_element_type=jnp.float32)              # [B, 4H]
        i = jax.nn.sigmoid(gates[:, 0 * H:1 * H])
        f = jax.nn.sigmoid(gates[:, 1 * H:2 * H])
        g = jnp.tanh(gates[:, 2 * H:3 * H])
        o = jax.nn.sigmoid(gates[:, 3 * H:4 * H])
        c_new = f * c + i * g
        h_new = o * jnp.tanh(c_new)
        enc_s[s] = h_new                                     # consumer layout
        return h_new, c_new

    zeros = jnp.zeros((B, H), jnp.float32)
    h_n, c_n = lax.fori_loop(0, src_len, enc_step, (zeros, zeros))

    # ---- Decoder: input-feeding LSTM + global 'dot' attention + class_fc_1.
    enc_all = enc_s[...]       # [S, B, H] f32 — hoisted out of the time loop

    def dec_step(t, carry):
        h, c, feed = carry
        row = pl.multiple_of(t * B, B)

        # Stacked K=2H recurrent matmul on the lane-concat [feed | h].
        fh = jnp.concatenate([feed, h], axis=-1).astype(jnp.bfloat16)  # [B,2H]
        gates = xg_dec_s[pl.ds(row, B)] + jnp.dot(
            fh, w_rec_dec_ref[...], preferred_element_type=jnp.float32)
        i = jax.nn.sigmoid(gates[:, 0 * H:1 * H])
        f = jax.nn.sigmoid(gates[:, 1 * H:2 * H])
        g = jnp.tanh(gates[:, 2 * H:3 * H])
        o = jax.nn.sigmoid(gates[:, 3 * H:4 * H])
        c_new = f * c + i * g
        h_new = o * jnp.tanh(c_new)

        # Luong 'dot' global attention — pure VPU/XLU, no MXU weight push:
        #   scores[s,b] = <h_new[b], enc[s,b]>; softmax over source positions;
        #   context[b]  = sum_s softmax(scores)[s,b] * enc[s,b].
        scores = jnp.sum(h_new[None, :, :] * enc_all, axis=-1,
                         keepdims=True)                      # [S, B, 1]
        m = jnp.max(scores, axis=0, keepdims=True)           # [1, B, 1]
        e = jnp.exp(scores - m)
        wgt = e * pl.reciprocal(jnp.sum(e, axis=0, keepdims=True),
                                approx=True)                 # [S, B, 1]
        context = jnp.sum(wgt * enc_all, axis=0)             # [B, H]

        # feed = tanh(class_fc_1([context, dec_hidden]))  — stacked K=2H.
        ch = jnp.concatenate([context, h_new], axis=-1).astype(jnp.bfloat16)
        feed_new = jnp.tanh(
            jnp.dot(ch, fc1_w_ref[...], preferred_element_type=jnp.float32)
            + fc1_b_ref[...])                                # [B, H]
        feed_s[pl.ds(row, B)] = feed_new
        return h_new, c_new, feed_new

    # dec_prev_hidden = enc_hidden ; initial feed vector = enc_hidden[0].
    lax.fori_loop(0, tgt_len, dec_step, (h_n, c_n, h_n))

    # ---- Final projection: logits = class_fc_2(feed) — one big MXU matmul.
    out_ref[...] = (
        jnp.dot(feed_s[...].astype(jnp.bfloat16), fc2_w_ref[...],
                preferred_element_type=jnp.float32)
        + fc2_b_ref[...])                                    # [T*B, V] f32


# --------------------------------------------------------------------------- #
# Parameters (matmul weights stored in bf16, biases in f32).                   #
# --------------------------------------------------------------------------- #
def init_params(key, src_vocab, tgt_vocab, emb, hidden):
    ks = jax.random.split(key, 12)
    s = 1.0 / (hidden ** 0.5)

    def u(k, shape, dtype=jnp.bfloat16):
        return jax.random.uniform(k, shape, jnp.float32, -s, s).astype(dtype)

    return dict(
        src_emb=jax.random.normal(ks[0], (src_vocab, emb), jnp.float32),
        tgt_emb=jax.random.normal(ks[1], (tgt_vocab, emb), jnp.float32),
        # encoder LSTM (weights transposed to [in, 4H]); bias = b_ih + b_hh
        w_ih_enc=u(ks[2], (emb, 4 * hidden)),
        w_hh_enc=u(ks[3], (hidden, 4 * hidden)),
        b_enc=u(ks[4], (1, 4 * hidden), jnp.float32),
        # decoder: W_ih embedding half (hoisted) ...
        w_x_dec=u(ks[5], (emb, 4 * hidden)),
        # ... and [W_feed ; W_hh] stacked along K (rows 0..H-1 act on the feed
        # vector, rows H..2H-1 on the previous hidden) — fills the 256-deep MXU.
        w_rec_dec=u(ks[6], (2 * hidden, 4 * hidden)),
        b_dec=u(ks[7], (1, 4 * hidden), jnp.float32),
        # class_fc_1 with [context ; dec_hidden] halves stacked along K
        fc1_w=u(ks[8], (2 * hidden, hidden)),
        fc1_b=u(ks[9], (1, hidden), jnp.float32),
        # class_fc_2
        fc2_w=u(ks[10], (hidden, tgt_vocab)),
        fc2_b=u(ks[11], (1, tgt_vocab), jnp.float32),
    )


# --------------------------------------------------------------------------- #
# Forward (train mode).  Returns logits [B, T, target_vocab].                  #
# --------------------------------------------------------------------------- #
def loung_nmt_forward(params, source_data, target_data, hidden):
    B, S = source_data.shape
    _, T = target_data.shape
    E = params["src_emb"].shape[1]
    V = params["fc2_w"].shape[1]

    # Embedding lookups emitted directly in time-major, kernel-flat layout
    # (gather with transposed index matrices — avoids a big activation
    # transpose in XLA).
    src_flat = params["src_emb"][source_data.T].reshape(S * B, E)
    tgt_flat = params["tgt_emb"][target_data.T].reshape(T * B, E)

    kernel = functools.partial(seq2seq_kernel, hidden=hidden,
                               src_len=S, tgt_len=T, batch=B)
    outs_flat = pl.pallas_call(
        kernel,
        out_shape=jax.ShapeDtypeStruct((T * B, V), jnp.float32),
        scratch_shapes=[
            pltpu.VMEM((S * B, 4 * hidden), jnp.float32),   # xg_enc
            pltpu.VMEM((T * B, 4 * hidden), jnp.float32),   # xg_dec
            pltpu.VMEM((S, B, hidden), jnp.float32),        # encoder outputs
            pltpu.VMEM((T * B, hidden), jnp.float32),       # feed vectors
        ],
        compiler_params=pltpu.CompilerParams(
            vmem_limit_bytes=32 * 1024 * 1024),
    )(src_flat.astype(jnp.bfloat16), tgt_flat.astype(jnp.bfloat16),
      params["w_ih_enc"], params["b_enc"], params["w_hh_enc"],
      params["w_x_dec"], params["b_dec"], params["w_rec_dec"],
      params["fc1_w"], params["fc1_b"], params["fc2_w"], params["fc2_b"])

    # outs = class_fc_2(tanh(class_fc_1(cat([atten, dec])))) == class_fc_2(feed)
    # [T*B, V] -> [T, B, V] -> [B, T, V]  (only XLA-side transpose remaining).
    return outs_flat.reshape(T, B, V).transpose(1, 0, 2)


# --------------------------------------------------------------------------- #
if __name__ == "__main__":
    B, S = 8, 16
    T = 100                       # the reference forward hard-codes 100 steps
    src_vocab, tgt_vocab = 64, 256
    emb, hidden = 128, 128        # lane-aligned (multiples of 128)

    key = jax.random.PRNGKey(0)
    k_src, k_tgt, k_par = jax.random.split(key, 3)
    source_data = jax.random.randint(k_src, (B, S), 0, src_vocab, dtype=jnp.int32)
    target_data = jax.random.randint(k_tgt, (B, T), 0, tgt_vocab, dtype=jnp.int32)
    params = init_params(k_par, src_vocab, tgt_vocab, emb, hidden)

    fwd = jax.jit(functools.partial(loung_nmt_forward, hidden=hidden))
    outs = jax.block_until_ready(fwd(params, source_data, target_data))

    assert outs.shape == (B, T, tgt_vocab), outs.shape
    assert bool(jnp.all(jnp.isfinite(outs)))
    print("KERNEL_OK")
</pallas_src>

<mosaic_0001>
module attributes {stable_mosaic.version = 11 : i64} {
  func.func @seq2seq_kernel(%arg0: memref<128x128xbf16, #tpu.memory_space<vmem>>, %arg1: memref<800x128xbf16, #tpu.memory_space<vmem>>, %arg2: memref<128x512xbf16, #tpu.memory_space<vmem>>, %arg3: memref<1x512xf32, #tpu.memory_space<vmem>>, %arg4: memref<128x512xbf16, #tpu.memory_space<vmem>>, %arg5: memref<128x512xbf16, #tpu.memory_space<vmem>>, %arg6: memref<1x512xf32, #tpu.memory_space<vmem>>, %arg7: memref<256x512xbf16, #tpu.memory_space<vmem>>, %arg8: memref<256x128xbf16, #tpu.memory_space<vmem>>, %arg9: memref<1x128xf32, #tpu.memory_space<vmem>>, %arg10: memref<128x256xbf16, #tpu.memory_space<vmem>>, %arg11: memref<1x256xf32, #tpu.memory_space<vmem>>, %arg12: memref<800x256xf32, #tpu.memory_space<vmem>>, %arg13: memref<128x512xf32, #tpu.memory_space<vmem>>, %arg14: memref<800x512xf32, #tpu.memory_space<vmem>>, %arg15: memref<16x8x128xf32, #tpu.memory_space<vmem>>, %arg16: memref<800x128xf32, #tpu.memory_space<vmem>>) attributes {dimension_semantics = [], scalar_prefetch = 0 : i64, scratch_operands = 4 : i64, tpu.core_type = #tpu.core_type<tc>} {
    %c0 = arith.constant 0 : index
    %c0_0 = arith.constant 0 : index
    %0 = vector.load %arg0[%c0, %c0_0] : memref<128x128xbf16, #tpu.memory_space<vmem>>, vector<128x128xbf16>
    %c0_1 = arith.constant 0 : index
    %c0_2 = arith.constant 0 : index
    %1 = vector.load %arg2[%c0_1, %c0_2] : memref<128x512xbf16, #tpu.memory_space<vmem>>, vector<128x512xbf16>
    %cst = arith.constant dense<0.000000e+00> : vector<128x512xf32>
    %2 = tpu.matmul %0, %1, %cst {dimension_numbers = #tpu.dot_dimension_numbers<[1], [0], [0], [1], [0, 0, 1, 1], [], []>} : vector<128x128xbf16>, vector<128x512xbf16>, vector<128x512xf32> -> vector<128x512xf32>
    %c0_3 = arith.constant 0 : index
    %c0_4 = arith.constant 0 : index
    %3 = vector.load %arg3[%c0_3, %c0_4] : memref<1x512xf32, #tpu.memory_space<vmem>>, vector<1x512xf32>
    %4 = vector.broadcast %3 : vector<1x512xf32> to vector<128x512xf32>
    %5 = arith.addf %2, %4 : vector<128x512xf32>
    %c0_5 = arith.constant 0 : index
    %c0_6 = arith.constant 0 : index
    %6 = vector.load %arg13[%c0_5, %c0_6] : memref<128x512xf32, #tpu.memory_space<vmem>>, vector<128x512xf32>
    tpu.vector_store %arg13[%c0_5, %c0_6], %5 {strides = array<i32>} : memref<128x512xf32, #tpu.memory_space<vmem>>, vector<128x512xf32>,
    %c0_7 = arith.constant 0 : index
    %c0_8 = arith.constant 0 : index
    %7 = vector.load %arg1[%c0_7, %c0_8] : memref<800x128xbf16, #tpu.memory_space<vmem>>, vector<800x128xbf16>
    %c0_9 = arith.constant 0 : index
    %c0_10 = arith.constant 0 : index
    %8 = vector.load %arg5[%c0_9, %c0_10] : memref<128x512xbf16, #tpu.memory_space<vmem>>, vector<128x512xbf16>
    %cst_11 = arith.constant dense<0.000000e+00> : vector<800x512xf32>
    %9 = tpu.matmul %7, %8, %cst_11 {dimension_numbers = #tpu.dot_dimension_numbers<[1], [0], [0], [1], [0, 0, 1, 1], [], []>} : vector<800x128xbf16>, vector<128x512xbf16>, vector<800x512xf32> -> vector<800x512xf32>
    %c0_12 = arith.constant 0 : index
    %c0_13 = arith.constant 0 : index
    %10 = vector.load %arg6[%c0_12, %c0_13] : memref<1x512xf32, #tpu.memory_space<vmem>>, vector<1x512xf32>
    %11 = vector.broadcast %10 : vector<1x512xf32> to vector<800x512xf32>
    %12 = arith.addf %9, %11 : vector<800x512xf32>
    %c0_14 = arith.constant 0 : index
    %c0_15 = arith.constant 0 : index
    %13 = vector.load %arg14[%c0_14, %c0_15] : memref<800x512xf32, #tpu.memory_space<vmem>>, vector<800x512xf32>
    tpu.vector_store %arg14[%c0_14, %c0_15], %12 {strides = array<i32>} : memref<800x512xf32, #tpu.memory_space<vmem>>, vector<800x512xf32>,
    %cst_16 = arith.constant 0.000000e+00 : f32
    %14 = vector.broadcast %cst_16 : f32 to vector<8x128xf32>
    %c0_i32 = arith.constant 0 : i32
    %c16_i32 = arith.constant 16 : i32
    %15 = arith.addi %c0_i32, %c16_i32 : i32
    %c1_i32 = arith.constant 1 : i32
    %16:2 = scf.for %arg17 = %c0_i32 to %15 step %c1_i32 iter_args(%arg18 = %14, %arg19 = %14) -> (vector<8x128xf32>, vector<8x128xf32>)  : i32 {
      %c8_i32 = arith.constant 8 : i32
      %28 = arith.muli %arg17, %c8_i32 : i32
      %29 = tpu.assume_multiple %28, 8 : i32
      %30 = arith.index_cast %29 : i32 to index
      %c0_33 = arith.constant 0 : index
      %31 = vector.load %arg13[%30, %c0_33] : memref<128x512xf32, #tpu.memory_space<vmem>>, vector<8x512xf32>
      %32 = arith.truncf %arg18 : vector<8x128xf32> to vector<8x128xbf16>
      %c0_34 = arith.constant 0 : index
      %c0_35 = arith.constant 0 : index
      %33 = vector.load %arg4[%c0_34, %c0_35] : memref<128x512xbf16, #tpu.memory_space<vmem>>, vector<128x512xbf16>
      %cst_36 = arith.constant dense<0.000000e+00> : vector<8x512xf32>
      %34 = tpu.matmul %32, %33, %cst_36 {dimension_numbers = #tpu.dot_dimension_numbers<[1], [0], [0], [1], [0, 0, 1, 1], [], []>} : vector<8x128xbf16>, vector<128x512xbf16>, vector<8x512xf32> -> vector<8x512xf32>
      %35 = arith.addf %31, %34 : vector<8x512xf32>
      %36 = vector.extract_strided_slice %35 {offsets = [0, 0], sizes = [8, 128], strides = [1, 1]} : vector<8x512xf32> to vector<8x128xf32>
      %37 = arith.negf %36 : vector<8x128xf32>
      %38 = math.exp %37 : vector<8x128xf32>
      %cst_37 = arith.constant 1.000000e+00 : f32
      %39 = vector.broadcast %cst_37 : f32 to vector<8x128xf32>
      %40 = arith.addf %39, %38 : vector<8x128xf32>
      %41 = arith.divf %39, %40 : vector<8x128xf32>
      %42 = vector.extract_strided_slice %35 {offsets = [0, 128], sizes = [8, 128], strides = [1, 1]} : vector<8x512xf32> to vector<8x128xf32>
      %43 = arith.negf %42 : vector<8x128xf32>
      %44 = math.exp %43 : vector<8x128xf32>
      %cst_38 = arith.constant 1.000000e+00 : f32
      %45 = vector.broadcast %cst_38 : f32 to vector<8x128xf32>
      %46 = arith.addf %45, %44 : vector<8x128xf32>
      %47 = arith.divf %45, %46 : vector<8x128xf32>
      %48 = vector.extract_strided_slice %35 {offsets = [0, 256], sizes = [8, 128], strides = [1, 1]} : vector<8x512xf32> to vector<8x128xf32>
      %49 = math.tanh %48 : vector<8x128xf32>
      %50 = vector.extract_strided_slice %35 {offsets = [0, 384], sizes = [8, 128], strides = [1, 1]} : vector<8x512xf32> to vector<8x128xf32>
      %51 = arith.negf %50 : vector<8x128xf32>
      %52 = math.exp %51 : vector<8x128xf32>
      %cst_39 = arith.constant 1.000000e+00 : f32
      %53 = vector.broadcast %cst_39 : f32 to vector<8x128xf32>
      %54 = arith.addf %53, %52 : vector<8x128xf32>
      %55 = arith.divf %53, %54 : vector<8x128xf32>
      %56 = arith.mulf %47, %arg19 : vector<8x128xf32>
      %57 = arith.mulf %41, %49 : vector<8x128xf32>
      %58 = arith.addf %56, %57 : vector<8x128xf32>
      %59 = math.tanh %58 : vector<8x128xf32>
      %60 = arith.mulf %55, %59 : vector<8x128xf32>
      %61 = arith.index_cast %arg17 : i32 to index
      %c0_40 = arith.constant 0 : index
      %c0_41 = arith.constant 0 : index
      %62 = vector.load %arg15[%61, %c0_40, %c0_41] : memref<16x8x128xf32, #tpu.memory_space<vmem>>, vector<1x8x128xf32>
      %63 = vector.shape_cast %62 : vector<1x8x128xf32> to vector<8x128xf32>
      %64 = vector.shape_cast %60 : vector<8x128xf32> to vector<1x8x128xf32>
      tpu.vector_store %arg15[%61, %c0_40, %c0_41], %64 {strides = array<i32>} : memref<16x8x128xf32, #tpu.memory_space<vmem>>, vector<1x8x128xf32>,
      scf.yield %60, %58 : vector<8x128xf32>, vector<8x128xf32>
    }
    %c16_i32_17 = arith.constant 16 : i32
    %c0_18 = arith.constant 0 : index
    %c0_19 = arith.constant 0 : index
    %c0_20 = arith.constant 0 : index
    %17 = vector.load %arg15[%c0_18, %c0_19, %c0_20] : memref<16x8x128xf32, #tpu.memory_space<vmem>>, vector<16x8x128xf32>
    %c0_i32_21 = arith.constant 0 : i32
    %c100_i32 = arith.constant 100 : i32
    %18 = arith.addi %c0_i32_21, %c100_i32 : i32
    %c1_i32_22 = arith.constant 1 : i32
    %19:3 = scf.for %arg17 = %c0_i32_21 to %18 step %c1_i32_22 iter_args(%arg18 = %16#0, %arg19 = %16#1, %arg20 = %16#0) -> (vector<8x128xf32>, vector<8x128xf32>, vector<8x128xf32>)  : i32 {
      %c8_i32 = arith.constant 8 : i32
      %28 = arith.muli %arg17, %c8_i32 : i32
      %29 = tpu.assume_multiple %28, 8 : i32
      %30 = tpu.concatenate %arg20, %arg18 in 1 : vector<8x128xf32>, vector<8x128xf32> -> vector<8x256xf32>
      %31 = arith.truncf %30 : vector<8x256xf32> to vector<8x256xbf16>
      %32 = arith.index_cast %29 : i32 to index
      %c0_33 = arith.constant 0 : index
      %33 = vector.load %arg14[%32, %c0_33] : memref<800x512xf32, #tpu.memory_space<vmem>>, vector<8x512xf32>
      %c0_34 = arith.constant 0 : index
      %c0_35 = arith.constant 0 : index
      %34 = vector.load %arg7[%c0_34, %c0_35] : memref<256x512xbf16, #tpu.memory_space<vmem>>, vector<256x512xbf16>
      %cst_36 = arith.constant dense<0.000000e+00> : vector<8x512xf32>
      %35 = tpu.matmul %31, %34, %cst_36 {dimension_numbers = #tpu.dot_dimension_numbers<[1], [0], [0], [1], [0, 0, 1, 1], [], []>} : vector<8x256xbf16>, vector<256x512xbf16>, vector<8x512xf32> -> vector<8x512xf32>
      %36 = arith.addf %33, %35 : vector<8x512xf32>
      %37 = vector.extract_strided_slice %36 {offsets = [0, 0], sizes = [8, 128], strides = [1, 1]} : vector<8x512xf32> to vector<8x128xf32>
      %38 = arith.negf %37 : vector<8x128xf32>
      %39 = math.exp %38 : vector<8x128xf32>
      %cst_37 = arith.constant 1.000000e+00 : f32
      %40 = vector.broadcast %cst_37 : f32 to vector<8x128xf32>
      %41 = arith.addf %40, %39 : vector<8x128xf32>
      %42 = arith.divf %40, %41 : vector<8x128xf32>
      %43 = vector.extract_strided_slice %36 {offsets = [0, 128], sizes = [8, 128], strides = [1, 1]} : vector<8x512xf32> to vector<8x128xf32>
      %44 = arith.negf %43 : vector<8x128xf32>
      %45 = math.exp %44 : vector<8x128xf32>
      %cst_38 = arith.constant 1.000000e+00 : f32
      %46 = vector.broadcast %cst_38 : f32 to vector<8x128xf32>
      %47 = arith.addf %46, %45 : vector<8x128xf32>
      %48 = arith.divf %46, %47 : vector<8x128xf32>
      %49 = vector.extract_strided_slice %36 {offsets = [0, 256], sizes = [8, 128], strides = [1, 1]} : vector<8x512xf32> to vector<8x128xf32>
      %50 = math.tanh %49 : vector<8x128xf32>
      %51 = vector.extract_strided_slice %36 {offsets = [0, 384], sizes = [8, 128], strides = [1, 1]} : vector<8x512xf32> to vector<8x128xf32>
      %52 = arith.negf %51 : vector<8x128xf32>
      %53 = math.exp %52 : vector<8x128xf32>
      %cst_39 = arith.constant 1.000000e+00 : f32
      %54 = vector.broadcast %cst_39 : f32 to vector<8x128xf32>
      %55 = arith.addf %54, %53 : vector<8x128xf32>
      %56 = arith.divf %54, %55 : vector<8x128xf32>
      %57 = arith.mulf %48, %arg19 : vector<8x128xf32>
      %58 = arith.mulf %42, %50 : vector<8x128xf32>
      %59 = arith.addf %57, %58 : vector<8x128xf32>
      %60 = math.tanh %59 : vector<8x128xf32>
      %61 = arith.mulf %56, %60 : vector<8x128xf32>
      %62 = vector.shape_cast %61 : vector<8x128xf32> to vector<1x8x128xf32>
      %63 = vector.broadcast %62 : vector<1x8x128xf32> to vector<16x8x128xf32>
      %64 = arith.mulf %63, %17 : vector<16x8x128xf32>
      %cst_40 = arith.constant dense<0.000000e+00> : vector<16x8xf32>
      %65 = vector.multi_reduction <add>, %64, %cst_40 [2] : vector<16x8x128xf32> to vector<16x8xf32>
      %66 = vector.shape_cast %65 : vector<16x8xf32> to vector<16x8x1xf32>
      %cst_41 = arith.constant dense<0xFF800000> : vector<8x1xf32>
      %67 = vector.multi_reduction <maximumf>, %66, %cst_41 [0] : vector<16x8x1xf32> to vector<8x1xf32>
      %68 = vector.shape_cast %67 : vector<8x1xf32> to vector<1x8x1xf32>
      %69 = vector.broadcast %68 : vector<1x8x1xf32> to vector<16x8x1xf32>
      %70 = arith.subf %66, %69 : vector<16x8x1xf32>
      %71 = math.exp %70 : vector<16x8x1xf32>
      %cst_42 = arith.constant dense<0.000000e+00> : vector<8x1xf32>
      %72 = vector.multi_reduction <add>, %71, %cst_42 [0] : vector<16x8x1xf32> to vector<8x1xf32>
      %73 = vector.shape_cast %72 : vector<8x1xf32> to vector<1x8x1xf32>
      %74 = tpu.reciprocal %73 {approx = true} : vector<1x8x1xf32> -> vector<1x8x1xf32>
      %75 = vector.broadcast %74 : vector<1x8x1xf32> to vector<16x8x1xf32>
      %76 = arith.mulf %71, %75 : vector<16x8x1xf32>
      %77 = vector.broadcast %76 : vector<16x8x1xf32> to vector<16x8x128xf32>
      %78 = arith.mulf %77, %17 : vector<16x8x128xf32>
      %cst_43 = arith.constant dense<0.000000e+00> : vector<8x128xf32>
      %79 = vector.multi_reduction <add>, %78, %cst_43 [0] : vector<16x8x128xf32> to vector<8x128xf32>
      %80 = tpu.concatenate %79, %61 in 1 : vector<8x128xf32>, vector<8x128xf32> -> vector<8x256xf32>
      %81 = arith.truncf %80 : vector<8x256xf32> to vector<8x256xbf16>
      %c0_44 = arith.constant 0 : index
      %c0_45 = arith.constant 0 : index
      %82 = vector.load %arg8[%c0_44, %c0_45] : memref<256x128xbf16, #tpu.memory_space<vmem>>, vector<256x128xbf16>
      %cst_46 = arith.constant dense<0.000000e+00> : vector<8x128xf32>
      %83 = tpu.matmul %81, %82, %cst_46 {dimension_numbers = #tpu.dot_dimension_numbers<[1], [0], [0], [1], [0, 0, 1, 1], [], []>} : vector<8x256xbf16>, vector<256x128xbf16>, vector<8x128xf32> -> vector<8x128xf32>
      %c0_47 = arith.constant 0 : index
      %c0_48 = arith.constant 0 : index
      %84 = vector.load %arg9[%c0_47, %c0_48] : memref<1x128xf32, #tpu.memory_space<vmem>>, vector<1x128xf32>
      %85 = vector.broadcast %84 : vector<1x128xf32> to vector<8x128xf32>
      %86 = arith.addf %83, %85 : vector<8x128xf32>
      %87 = math.tanh %86 : vector<8x128xf32>
      %88 = arith.index_cast %29 : i32 to index
      %c0_49 = arith.constant 0 : index
      %89 = vector.load %arg16[%88, %c0_49] : memref<800x128xf32, #tpu.memory_space<vmem>>, vector<8x128xf32>
      tpu.vector_store %arg16[%88, %c0_49], %87 {strides = array<i32>} : memref<800x128xf32, #tpu.memory_space<vmem>>, vector<8x128xf32>,
      scf.yield %61, %59, %87 : vector<8x128xf32>, vector<8x128xf32>, vector<8x128xf32>
    }
    %c100_i32_23 = arith.constant 100 : i32
    %c0_24 = arith.constant 0 : index
    %c0_25 = arith.constant 0 : index
    %20 = vector.load %arg16[%c0_24, %c0_25] : memref<800x128xf32, #tpu.memory_space<vmem>>, vector<800x128xf32>
    %21 = arith.truncf %20 : vector<800x128xf32> to vector<800x128xbf16>
    %c0_26 = arith.constant 0 : index
    %c0_27 = arith.constant 0 : index
    %22 = vector.load %arg10[%c0_26, %c0_27] : memref<128x256xbf16, #tpu.memory_space<vmem>>, vector<128x256xbf16>
    %cst_28 = arith.constant dense<0.000000e+00> : vector<800x256xf32>
    %23 = tpu.matmul %21, %22, %cst_28 {dimension_numbers = #tpu.dot_dimension_numbers<[1], [0], [0], [1], [0, 0, 1, 1], [], []>} : vector<800x128xbf16>, vector<128x256xbf16>, vector<800x256xf32> -> vector<800x256xf32>
    %c0_29 = arith.constant 0 : index
    %c0_30 = arith.constant 0 : index
    %24 = vector.load %arg11[%c0_29, %c0_30] : memref<1x256xf32, #tpu.memory_space<vmem>>, vector<1x256xf32>
    %25 = vector.broadcast %24 : vector<1x256xf32> to vector<800x256xf32>
    %26 = arith.addf %23, %25 : vector<800x256xf32>
    %c0_31 = arith.constant 0 : index
    %c0_32 = arith.constant 0 : index
    %27 = vector.load %arg12[%c0_31, %c0_32] : memref<800x256xf32, #tpu.memory_space<vmem>>, vector<800x256xf32>
    tpu.vector_store %arg12[%c0_31, %c0_32], %26 {strides = array<i32>} : memref<800x256xf32, #tpu.memory_space<vmem>>, vector<800x256xf32>,
    return
  }
}

</mosaic_0001>

<llo_original>
// kernel: loung_nmt_forward.1
$region0: #{loung_nmt_forward.1}
  #allocation0 [shape = 'u32[]', space=smem, size = 0x4, offset = 0x4, fixed_abs, tag = 'smem constant byte address 0x4 - core index']
  #allocation1 [shape = 'u32[144,128]{1,0:T(1,128)}', space=vmem, size = 0x12000, scoped, tag = 'internal scratch']
  #allocation2 [shape = 'f32[128,512]{1,0:T(8,128)}', space=vmem, size = 0x40000, scoped, tag = 'scratch operand']
  #allocation3 [shape = 'f32[800,512]{1,0:T(8,128)}', space=vmem, size = 0x190000, scoped, tag = 'scratch operand']
  #allocation4 [shape = 'f32[16,8,128]{2,1,0:T(8,128)}', space=vmem, size = 0x10000, scoped, tag = 'scratch operand']
  #allocation5 [shape = 'f32[800,128]{1,0:T(8,128)}', space=vmem, size = 0x64000, scoped, tag = 'scratch operand']
  %s0 = inlined_call_operand.vmem [shape: bf16[128,128], index: 0, kind: input, shape index: {}]
  %s1 = inlined_call_operand.vmem [shape: bf16[800,128], index: 1, kind: input, shape index: {}]
  %s2 = inlined_call_operand.vmem [shape: bf16[128,512], index: 2, kind: input, shape index: {}]
  %s3 = inlined_call_operand.vmem [shape: f32[1,512], index: 3, kind: input, shape index: {}]
  %s4 = inlined_call_operand.vmem [shape: bf16[128,512], index: 4, kind: input, shape index: {}]
  %s5 = inlined_call_operand.vmem [shape: bf16[128,512], index: 5, kind: input, shape index: {}]
  %s6 = inlined_call_operand.vmem [shape: f32[1,512], index: 6, kind: input, shape index: {}]
  %s7 = inlined_call_operand.vmem [shape: bf16[256,512], index: 7, kind: input, shape index: {}]
  %s8 = inlined_call_operand.vmem [shape: bf16[256,128], index: 8, kind: input, shape index: {}]
  %s9 = inlined_call_operand.vmem [shape: f32[1,128], index: 9, kind: input, shape index: {}]
  %s10 = inlined_call_operand.vmem [shape: bf16[128,256], index: 10, kind: input, shape index: {}]
  %s11 = inlined_call_operand.vmem [shape: f32[1,256], index: 11, kind: input, shape index: {}]
  %s12 = inlined_call_operand.hbm [shape: f32[800,256], index: 12, kind: output, shape index: {}]
  %s13 = sld [smem:[#allocation0]]
  $region72: #{loung_nmt_forward.1} parent=0
    _
  %s15 = ssub.s32 1, %s13
  %s16 = scalar_select 0, %s15, %s13
  $region1: #{loung_nmt_forward.1} parent=0
    #allocation6 [shape = 'u8[819200]{0}', space=vmem, size = 0xc8000, scoped, tag = 'output window, operand 0, single buffered']
    #allocation7 [shape = 's32[1]{0}', space=sflag, size = 0x4, scoped, tag = 'scoped memory for loung_nmt_forward.1']
    %17 = vsyncpa [#allocation7], 0
    // Predicated region
    $region2: #{loung_nmt_forward.1} parent=1 // pred_check
      _
    $region3: #{loung_nmt_forward.1} parent=1 // pred_check_branch
      %19 = sbr.rel (0) target = $region5
    $region4: #{loung_nmt_forward.1} parent=1 // pred_region
      _
    $region5: #{loung_nmt_forward.1} parent=1 // pred_fallthru
      _
    // Predicated region
    $region6: #{loung_nmt_forward.1} parent=1 // pred_check
      _
    $region7: #{loung_nmt_forward.1} parent=1 // pred_check_branch
      %21 = sbr.rel (0) target = $region9
    $region8: #{loung_nmt_forward.1} parent=1 // pred_region
      _
    $region9: #{loung_nmt_forward.1} parent=1 // pred_fallthru
      _
    // Predicated region
    $region10: #{loung_nmt_forward.1} parent=1 // pred_check
      _
    $region11: #{loung_nmt_forward.1} parent=1 // pred_check_branch
      %23 = sbr.rel (0) target = $region13
    $region12: #{loung_nmt_forward.1} parent=1 // pred_region
      _
    $region13: #{loung_nmt_forward.1} parent=1 // pred_fallthru
      _
    // Predicated region
    $region14: #{loung_nmt_forward.1} parent=1 // pred_check
      _
    $region15: #{loung_nmt_forward.1} parent=1 // pred_check_branch
      %25 = sbr.rel (0) target = $region17
    $region16: #{loung_nmt_forward.1} parent=1 // pred_region
      _
    $region17: #{loung_nmt_forward.1} parent=1 // pred_fallthru
      _
    // Predicated region
    $region18: #{loung_nmt_forward.1} parent=1 // pred_check
      _
    $region19: #{loung_nmt_forward.1} parent=1 // pred_check_branch
      %27 = sbr.rel (0) target = $region21
    $region20: #{loung_nmt_forward.1} parent=1 // pred_region
      _
    $region21: #{loung_nmt_forward.1} parent=1 // pred_fallthru
      _
    // Predicated region
    $region22: #{loung_nmt_forward.1} parent=1 // pred_check
      _
    $region23: #{loung_nmt_forward.1} parent=1 // pred_check_branch
      %29 = sbr.rel (0) target = $region25
    $region24: #{loung_nmt_forward.1} parent=1 // pred_region
      _
    $region25: #{loung_nmt_forward.1} parent=1 // pred_fallthru
      _
    // Predicated region
    $region26: #{loung_nmt_forward.1} parent=1 // pred_check
      _
    $region27: #{loung_nmt_forward.1} parent=1 // pred_check_branch
      %31 = sbr.rel (0) target = $region29
    $region28: #{loung_nmt_forward.1} parent=1 // pred_region
      _
    $region29: #{loung_nmt_forward.1} parent=1 // pred_fallthru
      _
    // Predicated region
    $region30: #{loung_nmt_forward.1} parent=1 // pred_check
      _
    $region31: #{loung_nmt_forward.1} parent=1 // pred_check_branch
      %33 = sbr.rel (0) target = $region33
    $region32: #{loung_nmt_forward.1} parent=1 // pred_region
      _
    $region33: #{loung_nmt_forward.1} parent=1 // pred_fallthru
      _
    // Predicated region
    $region34: #{loung_nmt_forward.1} parent=1 // pred_check
      _
    $region35: #{loung_nmt_forward.1} parent=1 // pred_check_branch
      %35 = sbr.rel (0) target = $region37
    $region36: #{loung_nmt_forward.1} parent=1 // pred_region
      _
    $region37: #{loung_nmt_forward.1} parent=1 // pred_fallthru
      _
    // Predicated region
    $region38: #{loung_nmt_forward.1} parent=1 // pred_check
      _
    $region39: #{loung_nmt_forward.1} parent=1 // pred_check_branch
      %37 = sbr.rel (0) target = $region41
    $region40: #{loung_nmt_forward.1} parent=1 // pred_region
      _
    $region41: #{loung_nmt_forward.1} parent=1 // pred_fallthru
      _
    // Predicated region
    $region42: #{loung_nmt_forward.1} parent=1 // pred_check
      _
    $region43: #{loung_nmt_forward.1} parent=1 // pred_check_branch
      %39 = sbr.rel (0) target = $region45
    $region44: #{loung_nmt_forward.1} parent=1 // pred_region
      _
    $region45: #{loung_nmt_forward.1} parent=1 // pred_fallthru
      _
    // Predicated region
    $region46: #{loung_nmt_forward.1} parent=1 // pred_check
      _
    $region47: #{loung_nmt_forward.1} parent=1 // pred_check_branch
      %41 = sbr.rel (0) target = $region49
    $region48: #{loung_nmt_forward.1} parent=1 // pred_region
      _
    $region49: #{loung_nmt_forward.1} parent=1 // pred_fallthru
      _
    %v43 = vld [vmem:[%s0] sm:$0xf]
    %v44 = vld [vmem:[%s0 + $0x4] sm:$0xf]
    %v45 = vld [vmem:[%s0 + $0x8] sm:$0xf]
    %v46 = vld [vmem:[%s0 + $0xc] sm:$0xf]
    %v47 = vld [vmem:[%s0 + $0x10] sm:$0xf]
    %v48 = vld [vmem:[%s0 + $0x14] sm:$0xf]
    %v49 = vld [vmem:[%s0 + $0x18] sm:$0xf]
    %v50 = vld [vmem:[%s0 + $0x1c] sm:$0xf]
    %v51 = vld [vmem:[%s0 + $0x20] sm:$0xf]
    %v52 = vld [vmem:[%s0 + $0x24] sm:$0xf]
    %v53 = vld [vmem:[%s0 + $0x28] sm:$0xf]
    %v54 = vld [vmem:[%s0 + $0x2c] sm:$0xf]
    %v55 = vld [vmem:[%s0 + $0x30] sm:$0xf]
    %v56 = vld [vmem:[%s0 + $0x34] sm:$0xf]
    %v57 = vld [vmem:[%s0 + $0x38] sm:$0xf]
    %v58 = vld [vmem:[%s0 + $0x3c] sm:$0xf]
    %v59 = vld [vmem:[%s2] sm:$0xff]
    %v60 = vld [vmem:[%s2 + $0x8] sm:$0xff]
    %v61 = vld [vmem:[%s2 + $0x10] sm:$0xff]
    %v62 = vld [vmem:[%s2 + $0x18] sm:$0xff]
    %v63 = vld [vmem:[%s2 + $0x20] sm:$0xff]
    %v64 = vld [vmem:[%s2 + $0x28] sm:$0xff]
    %v65 = vld [vmem:[%s2 + $0x30] sm:$0xff]
    %v66 = vld [vmem:[%s2 + $0x38] sm:$0xff]
    %v67 = vld [vmem:[%s2 + $0x40] sm:$0xff]
    %v68 = vld [vmem:[%s2 + $0x48] sm:$0xff]
    %v69 = vld [vmem:[%s2 + $0x50] sm:$0xff]
    %v70 = vld [vmem:[%s2 + $0x58] sm:$0xff]
    %v71 = vld [vmem:[%s2 + $0x60] sm:$0xff]
    %v72 = vld [vmem:[%s2 + $0x68] sm:$0xff]
    %v73 = vld [vmem:[%s2 + $0x70] sm:$0xff]
    %v74 = vld [vmem:[%s2 + $0x78] sm:$0xff]
    %v75 = vld [vmem:[%s2 + $0x80] sm:$0xff]
    %v76 = vld [vmem:[%s2 + $0x88] sm:$0xff]
    %v77 = vld [vmem:[%s2 + $0x90] sm:$0xff]
    %v78 = vld [vmem:[%s2 + $0x98] sm:$0xff]
    %v79 = vld [vmem:[%s2 + $0xa0] sm:$0xff]
    %v80 = vld [vmem:[%s2 + $0xa8] sm:$0xff]
    %v81 = vld [vmem:[%s2 + $0xb0] sm:$0xff]
    %v82 = vld [vmem:[%s2 + $0xb8] sm:$0xff]
    %v83 = vld [vmem:[%s2 + $0xc0] sm:$0xff]
    %v84 = vld [vmem:[%s2 + $0xc8] sm:$0xff]
    %v85 = vld [vmem:[%s2 + $0xd0] sm:$0xff]
    %v86 = vld [vmem:[%s2 + $0xd8] sm:$0xff]
    %v87 = vld [vmem:[%s2 + $0xe0] sm:$0xff]
    %v88 = vld [vmem:[%s2 + $0xe8] sm:$0xff]
    %v89 = vld [vmem:[%s2 + $0xf0] sm:$0xff]
    %v90 = vld [vmem:[%s2 + $0xf8] sm:$0xff]
    %v91 = vld [vmem:[%s3] sm:$0xf]
    %v93 = vlaneseq
    %v94 = vshrl.u32 %v93, 7
    %v95 = vsub.s32 0, %v94
    %v96 = vrot.slane %v91, %v95
    %v97 = vlaneseq
    %v98 = vshrl.u32 %v97, 7
    %v99 = vsub.s32 1, %v98
    %v100 = vrot.slane %v91, %v99
    %v101 = vlaneseq
    %v102 = vshrl.u32 %v101, 7
    %v103 = vsub.s32 2, %v102
    %v104 = vrot.slane %v91, %v103
    %v105 = vlaneseq
    %v106 = vshrl.u32 %v105, 7
    %v107 = vsub.s32 3, %v106
    %v108 = vrot.slane %v91, %v107
    %v129 = vunpack.c.l.b16 %v43
    %v130 = vunpack.c.l.b16 %v44
    %v131 = vunpack.c.l.b16 %v45
    %v132 = vunpack.c.l.b16 %v46
    %v133 = vunpack.c.l.b16 %v47
    %v134 = vunpack.c.l.b16 %v48
    %v135 = vunpack.c.l.b16 %v49
    %v136 = vunpack.c.l.b16 %v50
    %v137 = vunpack.c.l.b16 %v51
    %v138 = vunpack.c.l.b16 %v52
    %v139 = vunpack.c.l.b16 %v53
    %v140 = vunpack.c.l.b16 %v54
    %v141 = vunpack.c.l.b16 %v55
    %v142 = vunpack.c.l.b16 %v56
    %v143 = vunpack.c.l.b16 %v57
    %v144 = vunpack.c.l.b16 %v58
    %v145 = vpack.c.b16 %v130, %v129
    %v146 = vpack.c.b16 %v132, %v131
    %v147 = vpack.c.b16 %v134, %v133
    %v148 = vpack.c.b16 %v136, %v135
    %v149 = vpack.c.b16 %v138, %v137
    %v150 = vpack.c.b16 %v140, %v139
    %v151 = vpack.c.b16 %v142, %v141
    %v152 = vpack.c.b16 %v144, %v143
    %v193 = vunpack.c.l.b16 %v59
    %v194 = vunpack.c.h.b16 %v59
    %v195 = vunpack.c.l.b16 %v60
    %v196 = vunpack.c.h.b16 %v60
    %v197 = vunpack.c.l.b16 %v61
    %v198 = vunpack.c.h.b16 %v61
    %v199 = vunpack.c.l.b16 %v62
    %v200 = vunpack.c.h.b16 %v62
    %v201 = vunpack.c.l.b16 %v63
    %v202 = vunpack.c.h.b16 %v63
    %v203 = vunpack.c.l.b16 %v64
    %v204 = vunpack.c.h.b16 %v64
    %v205 = vunpack.c.l.b16 %v65
    %v206 = vunpack.c.h.b16 %v65
    %v207 = vunpack.c.l.b16 %v66
    %v208 = vunpack.c.h.b16 %v66
    %v209 = vunpack.c.l.b16 %v67
    %v210 = vunpack.c.h.b16 %v67
    %v211 = vunpack.c.l.b16 %v68
    %v212 = vunpack.c.h.b16 %v68
    %v213 = vunpack.c.l.b16 %v69
    %v214 = vunpack.c.h.b16 %v69
    %v215 = vunpack.c.l.b16 %v70
    %v216 = vunpack.c.h.b16 %v70
    %v217 = vunpack.c.l.b16 %v71
    %v218 = vunpack.c.h.b16 %v71
    %v219 = vunpack.c.l.b16 %v72
    %v220 = vunpack.c.h.b16 %v72
    %v221 = vunpack.c.l.b16 %v73
    %v222 = vunpack.c.h.b16 %v73
    %v223 = vunpack.c.l.b16 %v74
    %v224 = vunpack.c.h.b16 %v74
    %v225 = vunpack.c.l.b16 %v75
    %v226 = vunpack.c.h.b16 %v75
    %v227 = vunpack.c.l.b16 %v76
    %v228 = vunpack.c.h.b16 %v76
    %v229 = vunpack.c.l.b16 %v77
    %v230 = vunpack.c.h.b16 %v77
    %v231 = vunpack.c.l.b16 %v78
    %v232 = vunpack.c.h.b16 %v78
    %v233 = vunpack.c.l.b16 %v79
    %v234 = vunpack.c.h.b16 %v79
    %v235 = vunpack.c.l.b16 %v80
    %v236 = vunpack.c.h.b16 %v80
    %v237 = vunpack.c.l.b16 %v81
    %v238 = vunpack.c.h.b16 %v81
    %v239 = vunpack.c.l.b16 %v82
    %v240 = vunpack.c.h.b16 %v82
    %v241 = vunpack.c.l.b16 %v83
    %v242 = vunpack.c.h.b16 %v83
    %v243 = vunpack.c.l.b16 %v84
    %v244 = vunpack.c.h.b16 %v84
    %v245 = vunpack.c.l.b16 %v85
    %v246 = vunpack.c.h.b16 %v85
    %v247 = vunpack.c.l.b16 %v86
    %v248 = vunpack.c.h.b16 %v86
    %v249 = vunpack.c.l.b16 %v87
    %v250 = vunpack.c.h.b16 %v87
    %v251 = vunpack.c.l.b16 %v88
    %v252 = vunpack.c.h.b16 %v88
    %v253 = vunpack.c.l.b16 %v89
    %v254 = vunpack.c.h.b16 %v89
    %v255 = vunpack.c.l.b16 %v90
    %v256 = vunpack.c.h.b16 %v90
    %v257 = vpack.c.b16 %v197, %v193
    %v258 = vpack.c.b16 %v198, %v194
    %v259 = vpack.c.b16 %v199, %v195
    %v260 = vpack.c.b16 %v200, %v196
    %v261 = vpack.c.b16 %v205, %v201
    %v262 = vpack.c.b16 %v206, %v202
    %v263 = vpack.c.b16 %v207, %v203
    %v264 = vpack.c.b16 %v208, %v204
    %v265 = vpack.c.b16 %v213, %v209
    %v266 = vpack.c.b16 %v214, %v210
    %v267 = vpack.c.b16 %v215, %v211
    %v268 = vpack.c.b16 %v216, %v212
    %v269 = vpack.c.b16 %v221, %v217
    %v270 = vpack.c.b16 %v222, %v218
    %v271 = vpack.c.b16 %v223, %v219
    %v272 = vpack.c.b16 %v224, %v220
    %v273 = vpack.c.b16 %v229, %v225
    %v274 = vpack.c.b16 %v230, %v226
    %v275 = vpack.c.b16 %v231, %v227
    %v276 = vpack.c.b16 %v232, %v228
    %v277 = vpack.c.b16 %v237, %v233
    %v278 = vpack.c.b16 %v238, %v234
    %v279 = vpack.c.b16 %v239, %v235
    %v280 = vpack.c.b16 %v240, %v236
    %v281 = vpack.c.b16 %v245, %v241
    %v282 = vpack.c.b16 %v246, %v242
    %v283 = vpack.c.b16 %v247, %v243
    %v284 = vpack.c.b16 %v248, %v244
    %v285 = vpack.c.b16 %v253, %v249
    %v286 = vpack.c.b16 %v254, %v250
    %v287 = vpack.c.b16 %v255, %v251
    %v288 = vpack.c.b16 %v256, %v252
    %321 = vmatprep.subr.bf16.mxu0 %v286
    %322 = vmatpush1.bf16.msra.mxu0 %v285
    %323 = vmatprep.subr.bf16.mxu0 %v282
    %324 = vmatpush1.bf16.msra.mxu0 %v281
    %325 = vmatprep.subr.bf16.mxu0 %v278
    %326 = vmatpush1.bf16.msra.mxu0 %v277
    %327 = vmatprep.subr.bf16.mxu0 %v274
    %328 = vmatpush1.bf16.msra.mxu0 %v273
    %329 = vmatprep.subr.bf16.mxu0 %v270
    %330 = vmatpush1.bf16.msra.mxu0 %v269
    %331 = vmatprep.subr.bf16.mxu0 %v266
    %332 = vmatpush1.bf16.msra.mxu0 %v265
    %333 = vmatprep.subr.bf16.mxu0 %v262
    %334 = vmatpush1.bf16.msra.mxu0 %v261
    %335 = vmatprep.subr.bf16.mxu0 %v258
    %336 = vmatpush1.bf16.msra.mxu0 %v257
    %337 = vmatprep.subr.bf16.mxu0 0
    %338 = vmatpush2.bf16.msra.mxu0 0
    %339 = vmatprep.subr.bf16.mxu0 0
    %340 = vmatpush2.bf16.msra.mxu0 0
    %341 = vmatprep.subr.bf16.mxu0 0
    %342 = vmatpush2.bf16.msra.mxu0 0
    %343 = vmatprep.subr.bf16.mxu0 0
    %344 = vmatpush2.bf16.msra.mxu0 0
    %345 = vmatprep.subr.bf16.mxu0 0
    %346 = vmatpush2.bf16.msra.mxu0 0
    %347 = vmatprep.subr.bf16.mxu0 0
    %348 = vmatpush2.bf16.msra.mxu0 0
    %349 = vmatprep.subr.bf16.mxu0 0
    %350 = vmatpush2.bf16.msra.mxu0 0
    %351 = vmatprep.subr.bf16.mxu0 0
    %352 = vmatpush2.bf16.msra.mxu0 0
    %353 = vmatprep.mubr.bf16.mxu0 0
    %354 = vmatmul.mubr.bf16.gmra.mxu0 %v145
    %v355 = vpop.f32.mrf.mxu0
    %v356 = vadd.f32 %v96, %v355
    %v357 = vpop.f32.mrf.mxu0
    %v358 = vadd.f32 %v100, %v357
    %v359 = vpop.f32.mrf.mxu0
    %v360 = vadd.f32 %v96, %v359
    %v361 = vpop.f32.mrf.mxu0
    %v362 = vadd.f32 %v100, %v361
    %363 = vmatprep.mubr.bf16.mxu0 0
    %364 = vmatmul.mubr.bf16.gmra.mxu0 %v146
    %v365 = vpop.f32.mrf.mxu0
    %v366 = vadd.f32 %v96, %v365
    %v367 = vpop.f32.mrf.mxu0
    %v368 = vadd.f32 %v100, %v367
    %v369 = vpop.f32.mrf.mxu0
    %v370 = vadd.f32 %v96, %v369
    %v371 = vpop.f32.mrf.mxu0
    %v372 = vadd.f32 %v100, %v371
    %373 = vmatprep.mubr.bf16.mxu0 0
    %374 = vmatmul.mubr.bf16.gmra.mxu0 %v147
    %v375 = vpop.f32.mrf.mxu0
    %v376 = vadd.f32 %v96, %v375
    %v377 = vpop.f32.mrf.mxu0
    %v378 = vadd.f32 %v100, %v377
    %v379 = vpop.f32.mrf.mxu0
    %v380 = vadd.f32 %v96, %v379
    %v381 = vpop.f32.mrf.mxu0
    %v382 = vadd.f32 %v100, %v381
    %383 = vmatprep.mubr.bf16.mxu0 0
    %384 = vmatmul.mubr.bf16.gmra.mxu0 %v148
    %v385 = vpop.f32.mrf.mxu0
    %v386 = vadd.f32 %v96, %v385
    %v387 = vpop.f32.mrf.mxu0
    %v388 = vadd.f32 %v100, %v387
    %v389 = vpop.f32.mrf.mxu0
    %v390 = vadd.f32 %v96, %v389
    %v391 = vpop.f32.mrf.mxu0
    %v392 = vadd.f32 %v100, %v391
    %393 = vmatprep.mubr.bf16.mxu0 0
    %394 = vmatmul.mubr.bf16.gmra.mxu0 %v149
    %v395 = vpop.f32.mrf.mxu0
    %v396 = vadd.f32 %v96, %v395
    %v397 = vpop.f32.mrf.mxu0
    %v398 = vadd.f32 %v100, %v397
    %v399 = vpop.f32.mrf.mxu0
    %v400 = vadd.f32 %v96, %v399
    %v401 = vpop.f32.mrf.mxu0
    %v402 = vadd.f32 %v100, %v401
    %403 = vmatprep.mubr.bf16.mxu0 0
    %404 = vmatmul.mubr.bf16.gmra.mxu0 %v150
    %v405 = vpop.f32.mrf.mxu0
    %v406 = vadd.f32 %v96, %v405
    %v407 = vpop.f32.mrf.mxu0
    %v408 = vadd.f32 %v100, %v407
    %v409 = vpop.f32.mrf.mxu0
    %v410 = vadd.f32 %v96, %v409
    %v411 = vpop.f32.mrf.mxu0
    %v412 = vadd.f32 %v100, %v411
    %413 = vmatprep.mubr.bf16.mxu0 0
    %414 = vmatmul.mubr.bf16.gmra.mxu0 %v151
    %v415 = vpop.f32.mrf.mxu0
    %v416 = vadd.f32 %v96, %v415
    %v417 = vpop.f32.mrf.mxu0
    %v418 = vadd.f32 %v100, %v417
    %v419 = vpop.f32.mrf.mxu0
    %v420 = vadd.f32 %v96, %v419
    %v421 = vpop.f32.mrf.mxu0
    %v422 = vadd.f32 %v100, %v421
    %423 = vmatprep.mubr.bf16.mxu0 0
    %424 = vmatmul.mubr.bf16.gmra.mxu0 %v152
    %v425 = vpop.f32.mrf.mxu0
    %v426 = vadd.f32 %v96, %v425
    %v427 = vpop.f32.mrf.mxu0
    %v428 = vadd.f32 %v100, %v427
    %v429 = vpop.f32.mrf.mxu0
    %v430 = vadd.f32 %v96, %v429
    %v431 = vpop.f32.mrf.mxu0
    %v432 = vadd.f32 %v100, %v431
    %433 = vdwg.mxu0
    %434 = vmatprep.subr.bf16.mxu0 %v288
    %435 = vmatpush1.bf16.msra.mxu0 %v287
    %436 = vmatprep.subr.bf16.mxu0 %v284
    %437 = vmatpush1.bf16.msra.mxu0 %v283
    %438 = vmatprep.subr.bf16.mxu0 %v280
    %439 = vmatpush1.bf16.msra.mxu0 %v279
    %440 = vmatprep.subr.bf16.mxu0 %v276
    %441 = vmatpush1.bf16.msra.mxu0 %v275
    %442 = vmatprep.subr.bf16.mxu0 %v272
    %443 = vmatpush1.bf16.msra.mxu0 %v271
    %444 = vmatprep.subr.bf16.mxu0 %v268
    %445 = vmatpush1.bf16.msra.mxu0 %v267
    %446 = vmatprep.subr.bf16.mxu0 %v264
    %447 = vmatpush1.bf16.msra.mxu0 %v263
    %448 = vmatprep.subr.bf16.mxu0 %v260
    %449 = vmatpush1.bf16.msra.mxu0 %v259
    %450 = vmatprep.subr.bf16.mxu0 0
    %451 = vmatpush2.bf16.msra.mxu0 0
    %452 = vmatprep.subr.bf16.mxu0 0
    %453 = vmatpush2.bf16.msra.mxu0 0
    %454 = vmatprep.subr.bf16.mxu0 0
    %455 = vmatpush2.bf16.msra.mxu0 0
    %456 = vmatprep.subr.bf16.mxu0 0
    %457 = vmatpush2.bf16.msra.mxu0 0
    %458 = vmatprep.subr.bf16.mxu0 0
    %459 = vmatpush2.bf16.msra.mxu0 0
    %460 = vmatprep.subr.bf16.mxu0 0
    %461 = vmatpush2.bf16.msra.mxu0 0
    %462 = vmatprep.subr.bf16.mxu0 0
    %463 = vmatpush2.bf16.msra.mxu0 0
    %464 = vmatprep.subr.bf16.mxu0 0
    %465 = vmatpush2.bf16.msra.mxu0 0
    %466 = vmatprep.mubr.bf16.mxu0 0
    %467 = vmatmul.mubr.bf16.gmra.mxu0 %v145
    %v468 = vpop.f32.mrf.mxu0
    %v469 = vadd.f32 %v104, %v468
    %v470 = vpop.f32.mrf.mxu0
    %v471 = vadd.f32 %v108, %v470
    %v472 = vpop.f32.mrf.mxu0
    %v473 = vadd.f32 %v104, %v472
    %v474 = vpop.f32.mrf.mxu0
    %v475 = vadd.f32 %v108, %v474
    %476 = vmatprep.mubr.bf16.mxu0 0
    %477 = vmatmul.mubr.bf16.gmra.mxu0 %v146
    %v478 = vpop.f32.mrf.mxu0
    %v479 = vadd.f32 %v104, %v478
    %v480 = vpop.f32.mrf.mxu0
    %v481 = vadd.f32 %v108, %v480
    %v482 = vpop.f32.mrf.mxu0
    %v483 = vadd.f32 %v104, %v482
    %v484 = vpop.f32.mrf.mxu0
    %v485 = vadd.f32 %v108, %v484
    %486 = vmatprep.mubr.bf16.mxu0 0
    %487 = vmatmul.mubr.bf16.gmra.mxu0 %v147
    %v488 = vpop.f32.mrf.mxu0
    %v489 = vadd.f32 %v104, %v488
    %v490 = vpop.f32.mrf.mxu0
    %v491 = vadd.f32 %v108, %v490
    %v492 = vpop.f32.mrf.mxu0
    %v493 = vadd.f32 %v104, %v492
    %v494 = vpop.f32.mrf.mxu0
    %v495 = vadd.f32 %v108, %v494
    %496 = vmatprep.mubr.bf16.mxu0 0
    %497 = vmatmul.mubr.bf16.gmra.mxu0 %v148
    %v498 = vpop.f32.mrf.mxu0
    %v499 = vadd.f32 %v104, %v498
    %v500 = vpop.f32.mrf.mxu0
    %v501 = vadd.f32 %v108, %v500
    %v502 = vpop.f32.mrf.mxu0
    %v503 = vadd.f32 %v104, %v502
    %v504 = vpop.f32.mrf.mxu0
    %v505 = vadd.f32 %v108, %v504
    %506 = vmatprep.mubr.bf16.mxu0 0
    %507 = vmatmul.mubr.bf16.gmra.mxu0 %v149
    %v508 = vpop.f32.mrf.mxu0
    %v509 = vadd.f32 %v104, %v508
    %v510 = vpop.f32.mrf.mxu0
    %v511 = vadd.f32 %v108, %v510
    %v512 = vpop.f32.mrf.mxu0
    %v513 = vadd.f32 %v104, %v512
    %v514 = vpop.f32.mrf.mxu0
    %v515 = vadd.f32 %v108, %v514
    %516 = vmatprep.mubr.bf16.mxu0 0
    %517 = vmatmul.mubr.bf16.gmra.mxu0 %v150
    %v518 = vpop.f32.mrf.mxu0
    %v519 = vadd.f32 %v104, %v518
    %v520 = vpop.f32.mrf.mxu0
    %v521 = vadd.f32 %v108, %v520
    %v522 = vpop.f32.mrf.mxu0
    %v523 = vadd.f32 %v104, %v522
    %v524 = vpop.f32.mrf.mxu0
    %v525 = vadd.f32 %v108, %v524
    %526 = vmatprep.mubr.bf16.mxu0 0
    %527 = vmatmul.mubr.bf16.gmra.mxu0 %v151
    %v528 = vpop.f32.mrf.mxu0
    %v529 = vadd.f32 %v104, %v528
    %v530 = vpop.f32.mrf.mxu0
    %v531 = vadd.f32 %v108, %v530
    %v532 = vpop.f32.mrf.mxu0
    %v533 = vadd.f32 %v104, %v532
    %v534 = vpop.f32.mrf.mxu0
    %v535 = vadd.f32 %v108, %v534
    %536 = vmatprep.mubr.bf16.mxu0 0
    %537 = vmatmul.mubr.bf16.gmra.mxu0 %v152
    %v538 = vpop.f32.mrf.mxu0
    %v539 = vadd.f32 %v104, %v538
    %v540 = vpop.f32.mrf.mxu0
    %v541 = vadd.f32 %v108, %v540
    %v542 = vpop.f32.mrf.mxu0
    %v543 = vadd.f32 %v104, %v542
    %v544 = vpop.f32.mrf.mxu0
    %v545 = vadd.f32 %v108, %v544
    %546 = vdwg.mxu0
    %547 = vst [vmem:[#allocation2] sm:$0xff] %v356
    %548 = vst [vmem:[#allocation2 + $0x8] sm:$0xff] %v358
    %549 = vst [vmem:[#allocation2 + $0x10] sm:$0xff] %v469
    %550 = vst [vmem:[#allocation2 + $0x18] sm:$0xff] %v471
    %551 = vst [vmem:[#allocation2 + $0x20] sm:$0xff] %v360
    %552 = vst [vmem:[#allocation2 + $0x28] sm:$0xff] %v362
    %553 = vst [vmem:[#allocation2 + $0x30] sm:$0xff] %v473
    %554 = vst [vmem:[#allocation2 + $0x38] sm:$0xff] %v475
    %555 = vst [vmem:[#allocation2 + $0x40] sm:$0xff] %v366
    %556 = vst [vmem:[#allocation2 + $0x48] sm:$0xff] %v368
    %557 = vst [vmem:[#allocation2 + $0x50] sm:$0xff] %v479
    %558 = vst [vmem:[#allocation2 + $0x58] sm:$0xff] %v481
    %559 = vst [vmem:[#allocation2 + $0x60] sm:$0xff] %v370
    %560 = vst [vmem:[#allocation2 + $0x68] sm:$0xff] %v372
    %561 = vst [vmem:[#allocation2 + $0x70] sm:$0xff] %v483
    %562 = vst [vmem:[#allocation2 + $0x78] sm:$0xff] %v485
    %563 = vst [vmem:[#allocation2 + $0x80] sm:$0xff] %v376
    %564 = vst [vmem:[#allocation2 + $0x88] sm:$0xff] %v378
    %565 = vst [vmem:[#allocation2 + $0x90] sm:$0xff] %v489
    %566 = vst [vmem:[#allocation2 + $0x98] sm:$0xff] %v491
    %567 = vst [vmem:[#allocation2 + $0xa0] sm:$0xff] %v380
    %568 = vst [vmem:[#allocation2 + $0xa8] sm:$0xff] %v382
    %569 = vst [vmem:[#allocation2 + $0xb0] sm:$0xff] %v493
    %570 = vst [vmem:[#allocation2 + $0xb8] sm:$0xff] %v495
    %571 = vst [vmem:[#allocation2 + $0xc0] sm:$0xff] %v386
    %572 = vst [vmem:[#allocation2 + $0xc8] sm:$0xff] %v388
    %573 = vst [vmem:[#allocation2 + $0xd0] sm:$0xff] %v499
    %574 = vst [vmem:[#allocation2 + $0xd8] sm:$0xff] %v501
    %575 = vst [vmem:[#allocation2 + $0xe0] sm:$0xff] %v390
    %576 = vst [vmem:[#allocation2 + $0xe8] sm:$0xff] %v392
    %577 = vst [vmem:[#allocation2 + $0xf0] sm:$0xff] %v503
    %578 = vst [vmem:[#allocation2 + $0xf8] sm:$0xff] %v505
    %579 = vst [vmem:[#allocation2 + $0x100] sm:$0xff] %v396
    %580 = vst [vmem:[#allocation2 + $0x108] sm:$0xff] %v398
    %581 = vst [vmem:[#allocation2 + $0x110] sm:$0xff] %v509
    %582 = vst [vmem:[#allocation2 + $0x118] sm:$0xff] %v511
    %583 = vst [vmem:[#allocation2 + $0x120] sm:$0xff] %v400
    %584 = vst [vmem:[#allocation2 + $0x128] sm:$0xff] %v402
    %585 = vst [vmem:[#allocation2 + $0x130] sm:$0xff] %v513
    %586 = vst [vmem:[#allocation2 + $0x138] sm:$0xff] %v515
    %587 = vst [vmem:[#allocation2 + $0x140] sm:$0xff] %v406
    %588 = vst [vmem:[#allocation2 + $0x148] sm:$0xff] %v408
    %589 = vst [vmem:[#allocation2 + $0x150] sm:$0xff] %v519
    %590 = vst [vmem:[#allocation2 + $0x158] sm:$0xff] %v521
    %591 = vst [vmem:[#allocation2 + $0x160] sm:$0xff] %v410
    %592 = vst [vmem:[#allocation2 + $0x168] sm:$0xff] %v412
    %593 = vst [vmem:[#allocation2 + $0x170] sm:$0xff] %v523
    %594 = vst [vmem:[#allocation2 + $0x178] sm:$0xff] %v525
    %595 = vst [vmem:[#allocation2 + $0x180] sm:$0xff] %v416
    %596 = vst [vmem:[#allocation2 + $0x188] sm:$0xff] %v418
    %597 = vst [vmem:[#allocation2 + $0x190] sm:$0xff] %v529
    %598 = vst [vmem:[#allocation2 + $0x198] sm:$0xff] %v531
    %599 = vst [vmem:[#allocation2 + $0x1a0] sm:$0xff] %v420
    %600 = vst [vmem:[#allocation2 + $0x1a8] sm:$0xff] %v422
    %601 = vst [vmem:[#allocation2 + $0x1b0] sm:$0xff] %v533
    %602 = vst [vmem:[#allocation2 + $0x1b8] sm:$0xff] %v535
    %603 = vst [vmem:[#allocation2 + $0x1c0] sm:$0xff] %v426
    %604 = vst [vmem:[#allocation2 + $0x1c8] sm:$0xff] %v428
    %605 = vst [vmem:[#allocation2 + $0x1d0] sm:$0xff] %v539
    %606 = vst [vmem:[#allocation2 + $0x1d8] sm:$0xff] %v541
    %607 = vst [vmem:[#allocation2 + $0x1e0] sm:$0xff] %v430
    %608 = vst [vmem:[#allocation2 + $0x1e8] sm:$0xff] %v432
    %609 = vst [vmem:[#allocation2 + $0x1f0] sm:$0xff] %v543
    %610 = vst [vmem:[#allocation2 + $0x1f8] sm:$0xff] %v545
    %v611 = vld [vmem:[%s1] sm:$0xf]
    %v612 = vld [vmem:[%s1 + $0x4] sm:$0xf]
    %v613 = vld [vmem:[%s1 + $0x8] sm:$0xf]
    %v614 = vld [vmem:[%s1 + $0xc] sm:$0xf]
    %v615 = vld [vmem:[%s1 + $0x10] sm:$0xf]
    %v616 = vld [vmem:[%s1 + $0x14] sm:$0xf]
    %v617 = vld [vmem:[%s1 + $0x18] sm:$0xf]
    %v618 = vld [vmem:[%s1 + $0x1c] sm:$0xf]
    %v619 = vld [vmem:[%s1 + $0x20] sm:$0xf]
    %v620 = vld [vmem:[%s1 + $0x24] sm:$0xf]
    %v621 = vld [vmem:[%s1 + $0x28] sm:$0xf]
    %v622 = vld [vmem:[%s1 + $0x2c] sm:$0xf]
    %v623 = vld [vmem:[%s1 + $0x30] sm:$0xf]
    %v624 = vld [vmem:[%s1 + $0x34] sm:$0xf]
    %v625 = vld [vmem:[%s1 + $0x38] sm:$0xf]
    %v626 = vld [vmem:[%s1 + $0x3c] sm:$0xf]
    %v627 = vld [vmem:[%s1 + $0x40] sm:$0xf]
    %v628 = vld [vmem:[%s1 + $0x44] sm:$0xf]
    %v629 = vld [vmem:[%s1 + $0x48] sm:$0xf]
    %v630 = vld [vmem:[%s1 + $0x4c] sm:$0xf]
    %v631 = vld [vmem:[%s1 + $0x50] sm:$0xf]
    %v632 = vld [vmem:[%s1 + $0x54] sm:$0xf]
    %v633 = vld [vmem:[%s1 + $0x58] sm:$0xf]
    %v634 = vld [vmem:[%s1 + $0x5c] sm:$0xf]
    %v635 = vld [vmem:[%s1 + $0x60] sm:$0xf]
    %v636 = vld [vmem:[%s1 + $0x64] sm:$0xf]
    %v637 = vld [vmem:[%s1 + $0x68] sm:$0xf]
    %v638 = vld [vmem:[%s1 + $0x6c] sm:$0xf]
    %v639 = vld [vmem:[%s1 + $0x70] sm:$0xf]
    %v640 = vld [vmem:[%s1 + $0x74] sm:$0xf]
    %v641 = vld [vmem:[%s1 + $0x78] sm:$0xf]
    %v642 = vld [vmem:[%s1 + $0x7c] sm:$0xf]
    %v643 = vld [vmem:[%s1 + $0x80] sm:$0xf]
    %v644 = vld [vmem:[%s1 + $0x84] sm:$0xf]
    %v645 = vld [vmem:[%s1 + $0x88] sm:$0xf]
    %v646 = vld [vmem:[%s1 + $0x8c] sm:$0xf]
    %v647 = vld [vmem:[%s1 + $0x90] sm:$0xf]
    %v648 = vld [vmem:[%s1 + $0x94] sm:$0xf]
    %v649 = vld [vmem:[%s1 + $0x98] sm:$0xf]
    %v650 = vld [vmem:[%s1 + $0x9c] sm:$0xf]
    %v651 = vld [vmem:[%s1 + $0xa0] sm:$0xf]
    %v652 = vld [vmem:[%s1 + $0xa4] sm:$0xf]
    %v653 = vld [vmem:[%s1 + $0xa8] sm:$0xf]
    %v654 = vld [vmem:[%s1 + $0xac] sm:$0xf]
    %v655 = vld [vmem:[%s1 + $0xb0] sm:$0xf]
    %v656 = vld [vmem:[%s1 + $0xb4] sm:$0xf]
    %v657 = vld [vmem:[%s1 + $0xb8] sm:$0xf]
    %v658 = vld [vmem:[%s1 + $0xbc] sm:$0xf]
    %v659 = vld [vmem:[%s1 + $0xc0] sm:$0xf]
    %v660 = vld [vmem:[%s1 + $0xc4] sm:$0xf]
    %v661 = vld [vmem:[%s1 + $0xc8] sm:$0xf]
    %v662 = vld [vmem:[%s1 + $0xcc] sm:$0xf]
    %v663 = vld [vmem:[%s1 + $0xd0] sm:$0xf]
    %v664 = vld [vmem:[%s1 + $0xd4] sm:$0xf]
    %v665 = vld [vmem:[%s1 + $0xd8] sm:$0xf]
    %v666 = vld [vmem:[%s1 + $0xdc] sm:$0xf]
    %v667 = vld [vmem:[%s1 + $0xe0] sm:$0xf]
    %v668 = vld [vmem:[%s1 + $0xe4] sm:$0xf]
    %v669 = vld [vmem:[%s1 + $0xe8] sm:$0xf]
    %v670 = vld [vmem:[%s1 + $0xec] sm:$0xf]
    %v671 = vld [vmem:[%s1 + $0xf0] sm:$0xf]
    %v672 = vld [vmem:[%s1 + $0xf4] sm:$0xf]
    %v673 = vld [vmem:[%s1 + $0xf8] sm:$0xf]
    %v674 = vld [vmem:[%s1 + $0xfc] sm:$0xf]
    %v675 = vld [vmem:[%s1 + $0x100] sm:$0xf]
    %v676 = vld [vmem:[%s1 + $0x104] sm:$0xf]
    %v677 = vld [vmem:[%s1 + $0x108] sm:$0xf]
    %v678 = vld [vmem:[%s1 + $0x10c] sm:$0xf]
    %v679 = vld [vmem:[%s1 + $0x110] sm:$0xf]
    %v680 = vld [vmem:[%s1 + $0x114] sm:$0xf]
    %v681 = vld [vmem:[%s1 + $0x118] sm:$0xf]
    %v682 = vld [vmem:[%s1 + $0x11c] sm:$0xf]
    %v683 = vld [vmem:[%s1 + $0x120] sm:$0xf]
    %v684 = vld [vmem:[%s1 + $0x124] sm:$0xf]
    %v685 = vld [vmem:[%s1 + $0x128] sm:$0xf]
    %v686 = vld [vmem:[%s1 + $0x12c] sm:$0xf]
    %v687 = vld [vmem:[%s1 + $0x130] sm:$0xf]
    %v688 = vld [vmem:[%s1 + $0x134] sm:$0xf]
    %v689 = vld [vmem:[%s1 + $0x138] sm:$0xf]
    %v690 = vld [vmem:[%s1 + $0x13c] sm:$0xf]
    %v691 = vld [vmem:[%s1 + $0x140] sm:$0xf]
    %v692 = vld [vmem:[%s1 + $0x144] sm:$0xf]
    %v693 = vld [vmem:[%s1 + $0x148] sm:$0xf]
    %v694 = vld [vmem:[%s1 + $0x14c] sm:$0xf]
    %v695 = vld [vmem:[%s1 + $0x150] sm:$0xf]
    %v696 = vld [vmem:[%s1 + $0x154] sm:$0xf]
    %v697 = vld [vmem:[%s1 + $0x158] sm:$0xf]
    %v698 = vld [vmem:[%s1 + $0x15c] sm:$0xf]
    %v699 = vld [vmem:[%s1 + $0x160] sm:$0xf]
    %v700 = vld [vmem:[%s1 + $0x164] sm:$0xf]
    %v701 = vld [vmem:[%s1 + $0x168] sm:$0xf]
    %v702 = vld [vmem:[%s1 + $0x16c] sm:$0xf]
    %v703 = vld [vmem:[%s1 + $0x170] sm:$0xf]
    %v704 = vld [vmem:[%s1 + $0x174] sm:$0xf]
    %v705 = vld [vmem:[%s1 + $0x178] sm:$0xf]
    %v706 = vld [vmem:[%s1 + $0x17c] sm:$0xf]
    %v707 = vld [vmem:[%s1 + $0x180] sm:$0xf]
    %v708 = vld [vmem:[%s1 + $0x184] sm:$0xf]
    %v709 = vld [vmem:[%s1 + $0x188] sm:$0xf]
    %v710 = vld [vmem:[%s1 + $0x18c] sm:$0xf]
    %v711 = vld [vmem:[%s5] sm:$0xff]
    %v712 = vld [vmem:[%s5 + $0x8] sm:$0xff]
    %v713 = vld [vmem:[%s5 + $0x10] sm:$0xff]
    %v714 = vld [vmem:[%s5 + $0x18] sm:$0xff]
    %v715 = vld [vmem:[%s5 + $0x20] sm:$0xff]
    %v716 = vld [vmem:[%s5 + $0x28] sm:$0xff]
    %v717 = vld [vmem:[%s5 + $0x30] sm:$0xff]
    %v718 = vld [vmem:[%s5 + $0x38] sm:$0xff]
    %v719 = vld [vmem:[%s5 + $0x40] sm:$0xff]
    %v720 = vld [vmem:[%s5 + $0x48] sm:$0xff]
    %v721 = vld [vmem:[%s5 + $0x50] sm:$0xff]
    %v722 = vld [vmem:[%s5 + $0x58] sm:$0xff]
    %v723 = vld [vmem:[%s5 + $0x60] sm:$0xff]
    %v724 = vld [vmem:[%s5 + $0x68] sm:$0xff]
    %v725 = vld [vmem:[%s5 + $0x70] sm:$0xff]
    %v726 = vld [vmem:[%s5 + $0x78] sm:$0xff]
    %v727 = vld [vmem:[%s5 + $0x80] sm:$0xff]
    %v728 = vld [vmem:[%s5 + $0x88] sm:$0xff]
    %v729 = vld [vmem:[%s5 + $0x90] sm:$0xff]
    %v730 = vld [vmem:[%s5 + $0x98] sm:$0xff]
    %v731 = vld [vmem:[%s5 + $0xa0] sm:$0xff]
    %v732 = vld [vmem:[%s5 + $0xa8] sm:$0xff]
    %v733 = vld [vmem:[%s5 + $0xb0] sm:$0xff]
    %v734 = vld [vmem:[%s5 + $0xb8] sm:$0xff]
    %v735 = vld [vmem:[%s5 + $0xc0] sm:$0xff]
    %v736 = vld [vmem:[%s5 + $0xc8] sm:$0xff]
    %v737 = vld [vmem:[%s5 + $0xd0] sm:$0xff]
    %v738 = vld [vmem:[%s5 + $0xd8] sm:$0xff]
    %v739 = vld [vmem:[%s5 + $0xe0] sm:$0xff]
    %v740 = vld [vmem:[%s5 + $0xe8] sm:$0xff]
    %v741 = vld [vmem:[%s5 + $0xf0] sm:$0xff]
    %v742 = vld [vmem:[%s5 + $0xf8] sm:$0xff]
    %v743 = vld [vmem:[%s6] sm:$0xf]
    %v745 = vlaneseq
    %v746 = vshrl.u32 %v745, 7
    %v747 = vsub.s32 0, %v746
    %v748 = vrot.slane %v743, %v747
    %v749 = vlaneseq
    %v750 = vshrl.u32 %v749, 7
    %v751 = vsub.s32 1, %v750
    %v752 = vrot.slane %v743, %v751
    %v753 = vlaneseq
    %v754 = vshrl.u32 %v753, 7
    %v755 = vsub.s32 2, %v754
    %v756 = vrot.slane %v743, %v755
    %v757 = vlaneseq
    %v758 = vshrl.u32 %v757, 7
    %v759 = vsub.s32 3, %v758
    %v760 = vrot.slane %v743, %v759
    %v865 = vunpack.c.l.b16 %v611
    %v866 = vunpack.c.l.b16 %v612
    %v867 = vunpack.c.l.b16 %v613
    %v868 = vunpack.c.l.b16 %v614
    %v869 = vunpack.c.l.b16 %v615
    %v870 = vunpack.c.l.b16 %v616
    %v871 = vunpack.c.l.b16 %v617
    %v872 = vunpack.c.l.b16 %v618
    %v873 = vunpack.c.l.b16 %v619
    %v874 = vunpack.c.l.b16 %v620
    %v875 = vunpack.c.l.b16 %v621
    %v876 = vunpack.c.l.b16 %v622
    %v877 = vunpack.c.l.b16 %v623
    %v878 = vunpack.c.l.b16 %v624
    %v879 = vunpack.c.l.b16 %v625
    %v880 = vunpack.c.l.b16 %v626
    %v881 = vunpack.c.l.b16 %v627
    %v882 = vunpack.c.l.b16 %v628
    %v883 = vunpack.c.l.b16 %v629
    %v884 = vunpack.c.l.b16 %v630
    %v885 = vunpack.c.l.b16 %v631
    %v886 = vunpack.c.l.b16 %v632
    %v887 = vunpack.c.l.b16 %v633
    %v888 = vunpack.c.l.b16 %v634
    %v889 = vunpack.c.l.b16 %v635
    %v890 = vunpack.c.l.b16 %v636
    %v891 = vunpack.c.l.b16 %v637
    %v892 = vunpack.c.l.b16 %v638
    %v893 = vunpack.c.l.b16 %v639
    %v894 = vunpack.c.l.b16 %v640
    %v895 = vunpack.c.l.b16 %v641
    %v896 = vunpack.c.l.b16 %v642
    %v897 = vunpack.c.l.b16 %v643
    %v898 = vunpack.c.l.b16 %v644
    %v899 = vunpack.c.l.b16 %v645
    %v900 = vunpack.c.l.b16 %v646
    %v901 = vunpack.c.l.b16 %v647
    %v902 = vunpack.c.l.b16 %v648
    %v903 = vunpack.c.l.b16 %v649
    %v904 = vunpack.c.l.b16 %v650
    %v905 = vunpack.c.l.b16 %v651
    %v906 = vunpack.c.l.b16 %v652
    %v907 = vunpack.c.l.b16 %v653
    %v908 = vunpack.c.l.b16 %v654
    %v909 = vunpack.c.l.b16 %v655
    %v910 = vunpack.c.l.b16 %v656
    %v911 = vunpack.c.l.b16 %v657
    %v912 = vunpack.c.l.b16 %v658
    %v913 = vunpack.c.l.b16 %v659
    %v914 = vunpack.c.l.b16 %v660
    %v915 = vunpack.c.l.b16 %v661
    %v916 = vunpack.c.l.b16 %v662
    %v917 = vunpack.c.l.b16 %v663
    %v918 = vunpack.c.l.b16 %v664
    %v919 = vunpack.c.l.b16 %v665
    %v920 = vunpack.c.l.b16 %v666
    %v921 = vunpack.c.l.b16 %v667
    %v922 = vunpack.c.l.b16 %v668
    %v923 = vunpack.c.l.b16 %v669
    %v924 = vunpack.c.l.b16 %v670
    %v925 = vunpack.c.l.b16 %v671
    %v926 = vunpack.c.l.b16 %v672
    %v927 = vunpack.c.l.b16 %v673
    %v928 = vunpack.c.l.b16 %v674
    %v929 = vunpack.c.l.b16 %v675
    %v930 = vunpack.c.l.b16 %v676
    %v931 = vunpack.c.l.b16 %v677
    %v932 = vunpack.c.l.b16 %v678
    %v933 = vunpack.c.l.b16 %v679
    %v934 = vunpack.c.l.b16 %v680
    %v935 = vunpack.c.l.b16 %v681
    %v936 = vunpack.c.l.b16 %v682
    %v937 = vunpack.c.l.b16 %v683
    %v938 = vunpack.c.l.b16 %v684
    %v939 = vunpack.c.l.b16 %v685
    %v940 = vunpack.c.l.b16 %v686
    %v941 = vunpack.c.l.b16 %v687
    %v942 = vunpack.c.l.b16 %v688
    %v943 = vunpack.c.l.b16 %v689
    %v944 = vunpack.c.l.b16 %v690
    %v945 = vunpack.c.l.b16 %v691
    %v946 = vunpack.c.l.b16 %v692
    %v947 = vunpack.c.l.b16 %v693
    %v948 = vunpack.c.l.b16 %v694
    %v949 = vunpack.c.l.b16 %v695
    %v950 = vunpack.c.l.b16 %v696
    %v951 = vunpack.c.l.b16 %v697
    %v952 = vunpack.c.l.b16 %v698
    %v953 = vunpack.c.l.b16 %v699
    %v954 = vunpack.c.l.b16 %v700
    %v955 = vunpack.c.l.b16 %v701
    %v956 = vunpack.c.l.b16 %v702
    %v957 = vunpack.c.l.b16 %v703
    %v958 = vunpack.c.l.b16 %v704
    %v959 = vunpack.c.l.b16 %v705
    %v960 = vunpack.c.l.b16 %v706
    %v961 = vunpack.c.l.b16 %v707
    %v962 = vunpack.c.l.b16 %v708
    %v963 = vunpack.c.l.b16 %v709
    %v964 = vunpack.c.l.b16 %v710
    %v965 = vpack.c.b16 %v866, %v865
    %v966 = vpack.c.b16 %v868, %v867
    %v967 = vpack.c.b16 %v870, %v869
    %v968 = vpack.c.b16 %v872, %v871
    %v969 = vpack.c.b16 %v874, %v873
    %v970 = vpack.c.b16 %v876, %v875
    %v971 = vpack.c.b16 %v878, %v877
    %v972 = vpack.c.b16 %v880, %v879
    %v973 = vpack.c.b16 %v882, %v881
    %v974 = vpack.c.b16 %v884, %v883
    %v975 = vpack.c.b16 %v886, %v885
    %v976 = vpack.c.b16 %v888, %v887
    %v977 = vpack.c.b16 %v890, %v889
    %v978 = vpack.c.b16 %v892, %v891
    %v979 = vpack.c.b16 %v894, %v893
    %v980 = vpack.c.b16 %v896, %v895
    %v981 = vpack.c.b16 %v898, %v897
    %v982 = vpack.c.b16 %v900, %v899
    %v983 = vpack.c.b16 %v902, %v901
    %v984 = vpack.c.b16 %v904, %v903
    %v985 = vpack.c.b16 %v906, %v905
    %v986 = vpack.c.b16 %v908, %v907
    %v987 = vpack.c.b16 %v910, %v909
    %v988 = vpack.c.b16 %v912, %v911
    %v989 = vpack.c.b16 %v914, %v913
    %v990 = vpack.c.b16 %v916, %v915
    %v991 = vpack.c.b16 %v918, %v917
    %v992 = vpack.c.b16 %v920, %v919
    %v993 = vpack.c.b16 %v922, %v921
    %v994 = vpack.c.b16 %v924, %v923
    %v995 = vpack.c.b16 %v926, %v925
    %v996 = vpack.c.b16 %v928, %v927
    %v997 = vpack.c.b16 %v930, %v929
    %v998 = vpack.c.b16 %v932, %v931
    %v999 = vpack.c.b16 %v934, %v933
    %v1000 = vpack.c.b16 %v936, %v935
    %v1001 = vpack.c.b16 %v938, %v937
    %v1002 = vpack.c.b16 %v940, %v939
    %v1003 = vpack.c.b16 %v942, %v941
    %v1004 = vpack.c.b16 %v944, %v943
    %v1005 = vpack.c.b16 %v946, %v945
    %v1006 = vpack.c.b16 %v948, %v947
    %v1007 = vpack.c.b16 %v950, %v949
    %v1008 = vpack.c.b16 %v952, %v951
    %v1009 = vpack.c.b16 %v954, %v953
    %v1010 = vpack.c.b16 %v956, %v955
    %v1011 = vpack.c.b16 %v958, %v957
    %v1012 = vpack.c.b16 %v960, %v959
    %v1013 = vpack.c.b16 %v962, %v961
    %v1014 = vpack.c.b16 %v964, %v963
    %v1097 = vunpack.c.l.b16 %v711
    %v1098 = vunpack.c.h.b16 %v711
    %v1099 = vunpack.c.l.b16 %v712
    %v1100 = vunpack.c.h.b16 %v712
    %v1101 = vunpack.c.l.b16 %v713
    %v1102 = vunpack.c.h.b16 %v713
    %v1103 = vunpack.c.l.b16 %v714
    %v1104 = vunpack.c.h.b16 %v714
    %v1105 = vunpack.c.l.b16 %v715
    %v1106 = vunpack.c.h.b16 %v715
    %v1107 = vunpack.c.l.b16 %v716
    %v1108 = vunpack.c.h.b16 %v716
    %v1109 = vunpack.c.l.b16 %v717
    %v1110 = vunpack.c.h.b16 %v717
    %v1111 = vunpack.c.l.b16 %v718
    %v1112 = vunpack.c.h.b16 %v718
    %v1113 = vunpack.c.l.b16 %v719
    %v1114 = vunpack.c.h.b16 %v719
    %v1115 = vunpack.c.l.b16 %v720
    %v1116 = vunpack.c.h.b16 %v720
    %v1117 = vunpack.c.l.b16 %v721
    %v1118 = vunpack.c.h.b16 %v721
    %v1119 = vunpack.c.l.b16 %v722
    %v1120 = vunpack.c.h.b16 %v722
    %v1121 = vunpack.c.l.b16 %v723
    %v1122 = vunpack.c.h.b16 %v723
    %v1123 = vunpack.c.l.b16 %v724
    %v1124 = vunpack.c.h.b16 %v724
    %v1125 = vunpack.c.l.b16 %v725
    %v1126 = vunpack.c.h.b16 %v725
    %v1127 = vunpack.c.l.b16 %v726
    %v1128 = vunpack.c.h.b16 %v726
    %v1129 = vunpack.c.l.b16 %v727
    %v1130 = vunpack.c.h.b16 %v727
    %v1131 = vunpack.c.l.b16 %v728
    %v1132 = vunpack.c.h.b16 %v728
    %v1133 = vunpack.c.l.b16 %v729
    %v1134 = vunpack.c.h.b16 %v729
    %v1135 = vunpack.c.l.b16 %v730
    %v1136 = vunpack.c.h.b16 %v730
    %v1137 = vunpack.c.l.b16 %v731
    %v1138 = vunpack.c.h.b16 %v731
    %v1139 = vunpack.c.l.b16 %v732
    %v1140 = vunpack.c.h.b16 %v732
    %v1141 = vunpack.c.l.b16 %v733
    %v1142 = vunpack.c.h.b16 %v733
    %v1143 = vunpack.c.l.b16 %v734
    %v1144 = vunpack.c.h.b16 %v734
    %v1145 = vunpack.c.l.b16 %v735
    %v1146 = vunpack.c.h.b16 %v735
    %v1147 = vunpack.c.l.b16 %v736
    %v1148 = vunpack.c.h.b16 %v736
    %v1149 = vunpack.c.l.b16 %v737
    %v1150 = vunpack.c.h.b16 %v737
    %v1151 = vunpack.c.l.b16 %v738
    %v1152 = vunpack.c.h.b16 %v738
    %v1153 = vunpack.c.l.b16 %v739
    %v1154 = vunpack.c.h.b16 %v739
    %v1155 = vunpack.c.l.b16 %v740
    %v1156 = vunpack.c.h.b16 %v740
    %v1157 = vunpack.c.l.b16 %v741
    %v1158 = vunpack.c.h.b16 %v741
    %v1159 = vunpack.c.l.b16 %v742
    %v1160 = vunpack.c.h.b16 %v742
    %v1161 = vpack.c.b16 %v1101, %v1097
    %v1162 = vpack.c.b16 %v1102, %v1098
    %v1163 = vpack.c.b16 %v1103, %v1099
    %v1164 = vpack.c.b16 %v1104, %v1100
    %v1165 = vpack.c.b16 %v1109, %v1105
    %v1166 = vpack.c.b16 %v1110, %v1106
    %v1167 = vpack.c.b16 %v1111, %v1107
    %v1168 = vpack.c.b16 %v1112, %v1108
    %v1169 = vpack.c.b16 %v1117, %v1113
    %v1170 = vpack.c.b16 %v1118, %v1114
    %v1171 = vpack.c.b16 %v1119, %v1115
    %v1172 = vpack.c.b16 %v1120, %v1116
    %v1173 = vpack.c.b16 %v1125, %v1121
    %v1174 = vpack.c.b16 %v1126, %v1122
    %v1175 = vpack.c.b16 %v1127, %v1123
    %v1176 = vpack.c.b16 %v1128, %v1124
    %v1177 = vpack.c.b16 %v1133, %v1129
    %v1178 = vpack.c.b16 %v1134, %v1130
    %v1179 = vpack.c.b16 %v1135, %v1131
    %v1180 = vpack.c.b16 %v1136, %v1132
    %v1181 = vpack.c.b16 %v1141, %v1137
    %v1182 = vpack.c.b16 %v1142, %v1138
    %v1183 = vpack.c.b16 %v1143, %v1139
    %v1184 = vpack.c.b16 %v1144, %v1140
    %v1185 = vpack.c.b16 %v1149, %v1145
    %v1186 = vpack.c.b16 %v1150, %v1146
    %v1187 = vpack.c.b16 %v1151, %v1147
    %v1188 = vpack.c.b16 %v1152, %v1148
    %v1189 = vpack.c.b16 %v1157, %v1153
    %v1190 = vpack.c.b16 %v1158, %v1154
    %v1191 = vpack.c.b16 %v1159, %v1155
    %v1192 = vpack.c.b16 %v1160, %v1156
    %1225 = vmatprep.subr.bf16.mxu0 %v1190
    %1226 = vmatpush1.bf16.msra.mxu0 %v1189
    %1227 = vmatprep.subr.bf16.mxu0 %v1186
    %1228 = vmatpush1.bf16.msra.mxu0 %v1185
    %1229 = vmatprep.subr.bf16.mxu0 %v1182
    %1230 = vmatpush1.bf16.msra.mxu0 %v1181
    %1231 = vmatprep.subr.bf16.mxu0 %v1178
    %1232 = vmatpush1.bf16.msra.mxu0 %v1177
    %1233 = vmatprep.subr.bf16.mxu0 %v1174
    %1234 = vmatpush1.bf16.msra.mxu0 %v1173
    %1235 = vmatprep.subr.bf16.mxu0 %v1170
    %1236 = vmatpush1.bf16.msra.mxu0 %v1169
    %1237 = vmatprep.subr.bf16.mxu0 %v1166
    %1238 = vmatpush1.bf16.msra.mxu0 %v1165
    %1239 = vmatprep.subr.bf16.mxu0 %v1162
    %1240 = vmatpush1.bf16.msra.mxu0 %v1161
    %1241 = vmatprep.subr.bf16.mxu0 0
    %1242 = vmatpush2.bf16.msra.mxu0 0
    %1243 = vmatprep.subr.bf16.mxu0 0
    %1244 = vmatpush2.bf16.msra.mxu0 0
    %1245 = vmatprep.subr.bf16.mxu0 0
    %1246 = vmatpush2.bf16.msra.mxu0 0
    %1247 = vmatprep.subr.bf16.mxu0 0
    %1248 = vmatpush2.bf16.msra.mxu0 0
    %1249 = vmatprep.subr.bf16.mxu0 0
    %1250 = vmatpush2.bf16.msra.mxu0 0
    %1251 = vmatprep.subr.bf16.mxu0 0
    %1252 = vmatpush2.bf16.msra.mxu0 0
    %1253 = vmatprep.subr.bf16.mxu0 0
    %1254 = vmatpush2.bf16.msra.mxu0 0
    %1255 = vmatprep.subr.bf16.mxu0 0
    %1256 = vmatpush2.bf16.msra.mxu0 0
    %1257 = vmatprep.mubr.bf16.mxu0 0
    %1258 = vmatmul.mubr.bf16.gmra.mxu0 %v965
    %v1259 = vpop.f32.mrf.mxu0
    %v1260 = vadd.f32 %v748, %v1259
    %v1261 = vpop.f32.mrf.mxu0
    %v1262 = vadd.f32 %v752, %v1261
    %v1263 = vpop.f32.mrf.mxu0
    %v1264 = vadd.f32 %v748, %v1263
    %v1265 = vpop.f32.mrf.mxu0
    %v1266 = vadd.f32 %v752, %v1265
    %1267 = vmatprep.mubr.bf16.mxu0 0
    %1268 = vmatmul.mubr.bf16.gmra.mxu0 %v966
    %v1269 = vpop.f32.mrf.mxu0
    %v1270 = vadd.f32 %v748, %v1269
    %v1271 = vpop.f32.mrf.mxu0
    %v1272 = vadd.f32 %v752, %v1271
    %v1273 = vpop.f32.mrf.mxu0
    %v1274 = vadd.f32 %v748, %v1273
    %v1275 = vpop.f32.mrf.mxu0
    %v1276 = vadd.f32 %v752, %v1275
    %1277 = vmatprep.mubr.bf16.mxu0 0
    %1278 = vmatmul.mubr.bf16.gmra.mxu0 %v967
    %v1279 = vpop.f32.mrf.mxu0
    %v1280 = vadd.f32 %v748, %v1279
    %v1281 = vpop.f32.mrf.mxu0
    %v1282 = vadd.f32 %v752, %v1281
    %v1283 = vpop.f32.mrf.mxu0
    %v1284 = vadd.f32 %v748, %v1283
    %v1285 = vpop.f32.mrf.mxu0
    %v1286 = vadd.f32 %v752, %v1285
    %1287 = vmatprep.mubr.bf16.mxu0 0
    %1288 = vmatmul.mubr.bf16.gmra.mxu0 %v968
    %v1289 = vpop.f32.mrf.mxu0
    %v1290 = vadd.f32 %v748, %v1289
    %v1291 = vpop.f32.mrf.mxu0
    %v1292 = vadd.f32 %v752, %v1291
    %v1293 = vpop.f32.mrf.mxu0
    %v1294 = vadd.f32 %v748, %v1293
    %v1295 = vpop.f32.mrf.mxu0
    %v1296 = vadd.f32 %v752, %v1295
    %1297 = vmatprep.mubr.bf16.mxu0 0
    %1298 = vmatmul.mubr.bf16.gmra.mxu0 %v969
    %v1299 = vpop.f32.mrf.mxu0
    %v1300 = vadd.f32 %v748, %v1299
    %v1301 = vpop.f32.mrf.mxu0
    %v1302 = vadd.f32 %v752, %v1301
    %v1303 = vpop.f32.mrf.mxu0
    %v1304 = vadd.f32 %v748, %v1303
    %v1305 = vpop.f32.mrf.mxu0
    %v1306 = vadd.f32 %v752, %v1305
    %1307 = vmatprep.mubr.bf16.mxu0 0
    %1308 = vmatmul.mubr.bf16.gmra.mxu0 %v970
    %v1309 = vpop.f32.mrf.mxu0
    %v1310 = vadd.f32 %v748, %v1309
    %v1311 = vpop.f32.mrf.mxu0
    %v1312 = vadd.f32 %v752, %v1311
    %v1313 = vpop.f32.mrf.mxu0
    %v1314 = vadd.f32 %v748, %v1313
    %v1315 = vpop.f32.mrf.mxu0
    %v1316 = vadd.f32 %v752, %v1315
    %1317 = vmatprep.mubr.bf16.mxu0 0
    %1318 = vmatmul.mubr.bf16.gmra.mxu0 %v971
    %v1319 = vpop.f32.mrf.mxu0
    %v1320 = vadd.f32 %v748, %v1319
    %v1321 = vpop.f32.mrf.mxu0
    %v1322 = vadd.f32 %v752, %v1321
    %v1323 = vpop.f32.mrf.mxu0
    %v1324 = vadd.f32 %v748, %v1323
    %v1325 = vpop.f32.mrf.mxu0
    %v1326 = vadd.f32 %v752, %v1325
    %1327 = vmatprep.mubr.bf16.mxu0 0
    %1328 = vmatmul.mubr.bf16.gmra.mxu0 %v972
    %v1329 = vpop.f32.mrf.mxu0
    %v1330 = vadd.f32 %v748, %v1329
    %v1331 = vpop.f32.mrf.mxu0
    %v1332 = vadd.f32 %v752, %v1331
    %v1333 = vpop.f32.mrf.mxu0
    %v1334 = vadd.f32 %v748, %v1333
    %v1335 = vpop.f32.mrf.mxu0
    %v1336 = vadd.f32 %v752, %v1335
    %1337 = vmatprep.mubr.bf16.mxu0 0
    %1338 = vmatmul.mubr.bf16.gmra.mxu0 %v973
    %v1339 = vpop.f32.mrf.mxu0
    %v1340 = vadd.f32 %v748, %v1339
    %v1341 = vpop.f32.mrf.mxu0
    %v1342 = vadd.f32 %v752, %v1341
    %v1343 = vpop.f32.mrf.mxu0
    %v1344 = vadd.f32 %v748, %v1343
    %v1345 = vpop.f32.mrf.mxu0
    %v1346 = vadd.f32 %v752, %v1345
    %1347 = vmatprep.mubr.bf16.mxu0 0
    %1348 = vmatmul.mubr.bf16.gmra.mxu0 %v974
    %v1349 = vpop.f32.mrf.mxu0
    %v1350 = vadd.f32 %v748, %v1349
    %v1351 = vpop.f32.mrf.mxu0
    %v1352 = vadd.f32 %v752, %v1351
    %v1353 = vpop.f32.mrf.mxu0
    %v1354 = vadd.f32 %v748, %v1353
    %v1355 = vpop.f32.mrf.mxu0
    %v1356 = vadd.f32 %v752, %v1355
    %1357 = vmatprep.mubr.bf16.mxu0 0
    %1358 = vmatmul.mubr.bf16.gmra.mxu0 %v975
    %v1359 = vpop.f32.mrf.mxu0
    %v1360 = vadd.f32 %v748, %v1359
    %v1361 = vpop.f32.mrf.mxu0
    %v1362 = vadd.f32 %v752, %v1361
    %v1363 = vpop.f32.mrf.mxu0
    %v1364 = vadd.f32 %v748, %v1363
    %v1365 = vpop.f32.mrf.mxu0
    %v1366 = vadd.f32 %v752, %v1365
    %1367 = vmatprep.mubr.bf16.mxu0 0
    %1368 = vmatmul.mubr.bf16.gmra.mxu0 %v976
    %v1369 = vpop.f32.mrf.mxu0
    %v1370 = vadd.f32 %v748, %v1369
    %v1371 = vpop.f32.mrf.mxu0
    %v1372 = vadd.f32 %v752, %v1371
    %v1373 = vpop.f32.mrf.mxu0
    %v1374 = vadd.f32 %v748, %v1373
    %v1375 = vpop.f32.mrf.mxu0
    %v1376 = vadd.f32 %v752, %v1375
    %1377 = vmatprep.mubr.bf16.mxu0 0
    %1378 = vmatmul.mubr.bf16.gmra.mxu0 %v977
    %v1379 = vpop.f32.mrf.mxu0
    %v1380 = vadd.f32 %v748, %v1379
    %v1381 = vpop.f32.mrf.mxu0
    %v1382 = vadd.f32 %v752, %v1381
    %v1383 = vpop.f32.mrf.mxu0
    %v1384 = vadd.f32 %v748, %v1383
    %v1385 = vpop.f32.mrf.mxu0
    %v1386 = vadd.f32 %v752, %v1385
    %1387 = vmatprep.mubr.bf16.mxu0 0
    %1388 = vmatmul.mubr.bf16.gmra.mxu0 %v978
    %v1389 = vpop.f32.mrf.mxu0
    %v1390 = vadd.f32 %v748, %v1389
    %v1391 = vpop.f32.mrf.mxu0
    %v1392 = vadd.f32 %v752, %v1391
    %v1393 = vpop.f32.mrf.mxu0
    %v1394 = vadd.f32 %v748, %v1393
    %v1395 = vpop.f32.mrf.mxu0
    %v1396 = vadd.f32 %v752, %v1395
    %1397 = vmatprep.mubr.bf16.mxu0 0
    %1398 = vmatmul.mubr.bf16.gmra.mxu0 %v979
    %v1399 = vpop.f32.mrf.mxu0
    %v1400 = vadd.f32 %v748, %v1399
    %v1401 = vpop.f32.mrf.mxu0
    %v1402 = vadd.f32 %v752, %v1401
    %v1403 = vpop.f32.mrf.mxu0
    %v1404 = vadd.f32 %v748, %v1403
    %v1405 = vpop.f32.mrf.mxu0
    %v1406 = vadd.f32 %v752, %v1405
    %1407 = vmatprep.mubr.bf16.mxu0 0
    %1408 = vmatmul.mubr.bf16.gmra.mxu0 %v980
    %v1409 = vpop.f32.mrf.mxu0
    %v1410 = vadd.f32 %v748, %v1409
    %v1411 = vpop.f32.mrf.mxu0
    %v1412 = vadd.f32 %v752, %v1411
    %v1413 = vpop.f32.mrf.mxu0
    %v1414 = vadd.f32 %v748, %v1413
    %v1415 = vpop.f32.mrf.mxu0
    %v1416 = vadd.f32 %v752, %v1415
    %1417 = vmatprep.mubr.bf16.mxu0 0
    %1418 = vmatmul.mubr.bf16.gmra.mxu0 %v981
    %v1419 = vpop.f32.mrf.mxu0
    %v1420 = vadd.f32 %v748, %v1419
    %v1421 = vpop.f32.mrf.mxu0
    %v1422 = vadd.f32 %v752, %v1421
    %v1423 = vpop.f32.mrf.mxu0
    %v1424 = vadd.f32 %v748, %v1423
    %v1425 = vpop.f32.mrf.mxu0
    %v1426 = vadd.f32 %v752, %v1425
    %1427 = vmatprep.mubr.bf16.mxu0 0
    %1428 = vmatmul.mubr.bf16.gmra.mxu0 %v982
    %v1429 = vpop.f32.mrf.mxu0
    %v1430 = vadd.f32 %v748, %v1429
    %v1431 = vpop.f32.mrf.mxu0
    %v1432 = vadd.f32 %v752, %v1431
    %v1433 = vpop.f32.mrf.mxu0
    %v1434 = vadd.f32 %v748, %v1433
    %v1435 = vpop.f32.mrf.mxu0
    %v1436 = vadd.f32 %v752, %v1435
    %1437 = vmatprep.mubr.bf16.mxu0 0
    %1438 = vmatmul.mubr.bf16.gmra.mxu0 %v983
    %v1439 = vpop.f32.mrf.mxu0
    %v1440 = vadd.f32 %v748, %v1439
    %v1441 = vpop.f32.mrf.mxu0
    %v1442 = vadd.f32 %v752, %v1441
    %v1443 = vpop.f32.mrf.mxu0
    %v1444 = vadd.f32 %v748, %v1443
    %v1445 = vpop.f32.mrf.mxu0
    %v1446 = vadd.f32 %v752, %v1445
    %1447 = vmatprep.mubr.bf16.mxu0 0
    %1448 = vmatmul.mubr.bf16.gmra.mxu0 %v984
    %v1449 = vpop.f32.mrf.mxu0
    %v1450 = vadd.f32 %v748, %v1449
    %v1451 = vpop.f32.mrf.mxu0
    %v1452 = vadd.f32 %v752, %v1451
    %v1453 = vpop.f32.mrf.mxu0
    %v1454 = vadd.f32 %v748, %v1453
    %v1455 = vpop.f32.mrf.mxu0
    %v1456 = vadd.f32 %v752, %v1455
    %1457 = vmatprep.mubr.bf16.mxu0 0
    %1458 = vmatmul.mubr.bf16.gmra.mxu0 %v985
    %v1459 = vpop.f32.mrf.mxu0
    %v1460 = vadd.f32 %v748, %v1459
    %v1461 = vpop.f32.mrf.mxu0
    %v1462 = vadd.f32 %v752, %v1461
    %v1463 = vpop.f32.mrf.mxu0
    %v1464 = vadd.f32 %v748, %v1463
    %v1465 = vpop.f32.mrf.mxu0
    %v1466 = vadd.f32 %v752, %v1465
    %1467 = vmatprep.mubr.bf16.mxu0 0
    %1468 = vmatmul.mubr.bf16.gmra.mxu0 %v986
    %v1469 = vpop.f32.mrf.mxu0
    %v1470 = vadd.f32 %v748, %v1469
    %v1471 = vpop.f32.mrf.mxu0
    %v1472 = vadd.f32 %v752, %v1471
    %v1473 = vpop.f32.mrf.mxu0
    %v1474 = vadd.f32 %v748, %v1473
    %v1475 = vpop.f32.mrf.mxu0
    %v1476 = vadd.f32 %v752, %v1475
    %1477 = vmatprep.mubr.bf16.mxu0 0
    %1478 = vmatmul.mubr.bf16.gmra.mxu0 %v987
    %v1479 = vpop.f32.mrf.mxu0
    %v1480 = vadd.f32 %v748, %v1479
    %v1481 = vpop.f32.mrf.mxu0
    %v1482 = vadd.f32 %v752, %v1481
    %v1483 = vpop.f32.mrf.mxu0
    %v1484 = vadd.f32 %v748, %v1483
    %v1485 = vpop.f32.mrf.mxu0
    %v1486 = vadd.f32 %v752, %v1485
    %1487 = vmatprep.mubr.bf16.mxu0 0
    %1488 = vmatmul.mubr.bf16.gmra.mxu0 %v988
    %v1489 = vpop.f32.mrf.mxu0
    %v1490 = vadd.f32 %v748, %v1489
    %v1491 = vpop.f32.mrf.mxu0
    %v1492 = vadd.f32 %v752, %v1491
    %v1493 = vpop.f32.mrf.mxu0
    %v1494 = vadd.f32 %v748, %v1493
    %v1495 = vpop.f32.mrf.mxu0
    %v1496 = vadd.f32 %v752, %v1495
    %1497 = vmatprep.mubr.bf16.mxu0 0
    %1498 = vmatmul.mubr.bf16.gmra.mxu0 %v989
    %v1499 = vpop.f32.mrf.mxu0
    %v1500 = vadd.f32 %v748, %v1499
    %v1501 = vpop.f32.mrf.mxu0
    %v1502 = vadd.f32 %v752, %v1501
    %v1503 = vpop.f32.mrf.mxu0
    %v1504 = vadd.f32 %v748, %v1503
    %v1505 = vpop.f32.mrf.mxu0
    %v1506 = vadd.f32 %v752, %v1505
    %1507 = vmatprep.mubr.bf16.mxu0 0
    %1508 = vmatmul.mubr.bf16.gmra.mxu0 %v990
    %v1509 = vpop.f32.mrf.mxu0
    %v1510 = vadd.f32 %v748, %v1509
    %v1511 = vpop.f32.mrf.mxu0
    %v1512 = vadd.f32 %v752, %v1511
    %v1513 = vpop.f32.mrf.mxu0
    %v1514 = vadd.f32 %v748, %v1513
    %v1515 = vpop.f32.mrf.mxu0
    %v1516 = vadd.f32 %v752, %v1515
    %1517 = vmatprep.mubr.bf16.mxu0 0
    %1518 = vmatmul.mubr.bf16.gmra.mxu0 %v991
    %v1519 = vpop.f32.mrf.mxu0
    %v1520 = vadd.f32 %v748, %v1519
    %v1521 = vpop.f32.mrf.mxu0
    %v1522 = vadd.f32 %v752, %v1521
    %v1523 = vpop.f32.mrf.mxu0
    %v1524 = vadd.f32 %v748, %v1523
    %v1525 = vpop.f32.mrf.mxu0
    %v1526 = vadd.f32 %v752, %v1525
    %1527 = vmatprep.mubr.bf16.mxu0 0
    %1528 = vmatmul.mubr.bf16.gmra.mxu0 %v992
    %v1529 = vpop.f32.mrf.mxu0
    %v1530 = vadd.f32 %v748, %v1529
    %v1531 = vpop.f32.mrf.mxu0
    %v1532 = vadd.f32 %v752, %v1531
    %v1533 = vpop.f32.mrf.mxu0
    %v1534 = vadd.f32 %v748, %v1533
    %v1535 = vpop.f32.mrf.mxu0
    %v1536 = vadd.f32 %v752, %v1535
    %1537 = vmatprep.mubr.bf16.mxu0 0
    %1538 = vmatmul.mubr.bf16.gmra.mxu0 %v993
    %v1539 = vpop.f32.mrf.mxu0
    %v1540 = vadd.f32 %v748, %v1539
    %v1541 = vpop.f32.mrf.mxu0
    %v1542 = vadd.f32 %v752, %v1541
    %v1543 = vpop.f32.mrf.mxu0
    %v1544 = vadd.f32 %v748, %v1543
    %v1545 = vpop.f32.mrf.mxu0
    %v1546 = vadd.f32 %v752, %v1545
    %1547 = vmatprep.mubr.bf16.mxu0 0
    %1548 = vmatmul.mubr.bf16.gmra.mxu0 %v994
    %v1549 = vpop.f32.mrf.mxu0
    %v1550 = vadd.f32 %v748, %v1549
    %v1551 = vpop.f32.mrf.mxu0
    %v1552 = vadd.f32 %v752, %v1551
    %v1553 = vpop.f32.mrf.mxu0
    %v1554 = vadd.f32 %v748, %v1553
    %v1555 = vpop.f32.mrf.mxu0
    %v1556 = vadd.f32 %v752, %v1555
    %1557 = vmatprep.mubr.bf16.mxu0 0
    %1558 = vmatmul.mubr.bf16.gmra.mxu0 %v995
    %v1559 = vpop.f32.mrf.mxu0
    %v1560 = vadd.f32 %v748, %v1559
    %v1561 = vpop.f32.mrf.mxu0
    %v1562 = vadd.f32 %v752, %v1561
    %v1563 = vpop.f32.mrf.mxu0
    %v1564 = vadd.f32 %v748, %v1563
    %v1565 = vpop.f32.mrf.mxu0
    %v1566 = vadd.f32 %v752, %v1565
    %1567 = vmatprep.mubr.bf16.mxu0 0
    %1568 = vmatmul.mubr.bf16.gmra.mxu0 %v996
    %v1569 = vpop.f32.mrf.mxu0
    %v1570 = vadd.f32 %v748, %v1569
    %v1571 = vpop.f32.mrf.mxu0
    %v1572 = vadd.f32 %v752, %v1571
    %v1573 = vpop.f32.mrf.mxu0
    %v1574 = vadd.f32 %v748, %v1573
    %v1575 = vpop.f32.mrf.mxu0
    %v1576 = vadd.f32 %v752, %v1575
    %1577 = vmatprep.mubr.bf16.mxu0 0
    %1578 = vmatmul.mubr.bf16.gmra.mxu0 %v997
    %v1579 = vpop.f32.mrf.mxu0
    %v1580 = vadd.f32 %v748, %v1579
    %v1581 = vpop.f32.mrf.mxu0
    %v1582 = vadd.f32 %v752, %v1581
    %v1583 = vpop.f32.mrf.mxu0
    %v1584 = vadd.f32 %v748, %v1583
    %v1585 = vpop.f32.mrf.mxu0
    %v1586 = vadd.f32 %v752, %v1585
    %1587 = vmatprep.mubr.bf16.mxu0 0
    %1588 = vmatmul.mubr.bf16.gmra.mxu0 %v998
    %v1589 = vpop.f32.mrf.mxu0
    %v1590 = vadd.f32 %v748, %v1589
    %v1591 = vpop.f32.mrf.mxu0
    %v1592 = vadd.f32 %v752, %v1591
    %v1593 = vpop.f32.mrf.mxu0
    %v1594 = vadd.f32 %v748, %v1593
    %v1595 = vpop.f32.mrf.mxu0
    %v1596 = vadd.f32 %v752, %v1595
    %1597 = vmatprep.mubr.bf16.mxu0 0
    %1598 = vmatmul.mubr.bf16.gmra.mxu0 %v999
    %v1599 = vpop.f32.mrf.mxu0
    %v1600 = vadd.f32 %v748, %v1599
    %v1601 = vpop.f32.mrf.mxu0
    %v1602 = vadd.f32 %v752, %v1601
    %v1603 = vpop.f32.mrf.mxu0
    %v1604 = vadd.f32 %v748, %v1603
    %v1605 = vpop.f32.mrf.mxu0
    %v1606 = vadd.f32 %v752, %v1605
    %1607 = vmatprep.mubr.bf16.mxu0 0
    %1608 = vmatmul.mubr.bf16.gmra.mxu0 %v1000
    %v1609 = vpop.f32.mrf.mxu0
    %v1610 = vadd.f32 %v748, %v1609
    %v1611 = vpop.f32.mrf.mxu0
    %v1612 = vadd.f32 %v752, %v1611
    %v1613 = vpop.f32.mrf.mxu0
    %v1614 = vadd.f32 %v748, %v1613
    %v1615 = vpop.f32.mrf.mxu0
    %v1616 = vadd.f32 %v752, %v1615
    %1617 = vmatprep.mubr.bf16.mxu0 0
    %1618 = vmatmul.mubr.bf16.gmra.mxu0 %v1001
    %v1619 = vpop.f32.mrf.mxu0
    %v1620 = vadd.f32 %v748, %v1619
    %v1621 = vpop.f32.mrf.mxu0
    %v1622 = vadd.f32 %v752, %v1621
    %v1623 = vpop.f32.mrf.mxu0
    %v1624 = vadd.f32 %v748, %v1623
    %v1625 = vpop.f32.mrf.mxu0
    %v1626 = vadd.f32 %v752, %v1625
    %1627 = vmatprep.mubr.bf16.mxu0 0
    %1628 = vmatmul.mubr.bf16.gmra.mxu0 %v1002
    %v1629 = vpop.f32.mrf.mxu0
    %v1630 = vadd.f32 %v748, %v1629
    %v1631 = vpop.f32.mrf.mxu0
    %v1632 = vadd.f32 %v752, %v1631
    %v1633 = vpop.f32.mrf.mxu0
    %v1634 = vadd.f32 %v748, %v1633
    %v1635 = vpop.f32.mrf.mxu0
    %v1636 = vadd.f32 %v752, %v1635
    %1637 = vmatprep.mubr.bf16.mxu0 0
    %1638 = vmatmul.mubr.bf16.gmra.mxu0 %v1003
    %v1639 = vpop.f32.mrf.mxu0
    %v1640 = vadd.f32 %v748, %v1639
    %v1641 = vpop.f32.mrf.mxu0
    %v1642 = vadd.f32 %v752, %v1641
    %v1643 = vpop.f32.mrf.mxu0
    %v1644 = vadd.f32 %v748, %v1643
    %v1645 = vpop.f32.mrf.mxu0
    %v1646 = vadd.f32 %v752, %v1645
    %1647 = vmatprep.mubr.bf16.mxu0 0
    %1648 = vmatmul.mubr.bf16.gmra.mxu0 %v1004
    %v1649 = vpop.f32.mrf.mxu0
    %v1650 = vadd.f32 %v748, %v1649
    %v1651 = vpop.f32.mrf.mxu0
    %v1652 = vadd.f32 %v752, %v1651
    %v1653 = vpop.f32.mrf.mxu0
    %v1654 = vadd.f32 %v748, %v1653
    %v1655 = vpop.f32.mrf.mxu0
    %v1656 = vadd.f32 %v752, %v1655
    %1657 = vmatprep.mubr.bf16.mxu0 0
    %1658 = vmatmul.mubr.bf16.gmra.mxu0 %v1005
    %v1659 = vpop.f32.mrf.mxu0
    %v1660 = vadd.f32 %v748, %v1659
    %v1661 = vpop.f32.mrf.mxu0
    %v1662 = vadd.f32 %v752, %v1661
    %v1663 = vpop.f32.mrf.mxu0
    %v1664 = vadd.f32 %v748, %v1663
    %v1665 = vpop.f32.mrf.mxu0
    %v1666 = vadd.f32 %v752, %v1665
    %1667 = vmatprep.mubr.bf16.mxu0 0
    %1668 = vmatmul.mubr.bf16.gmra.mxu0 %v1006
    %v1669 = vpop.f32.mrf.mxu0
    %v1670 = vadd.f32 %v748, %v1669
    %v1671 = vpop.f32.mrf.mxu0
    %v1672 = vadd.f32 %v752, %v1671
    %v1673 = vpop.f32.mrf.mxu0
    %v1674 = vadd.f32 %v748, %v1673
    %v1675 = vpop.f32.mrf.mxu0
    %v1676 = vadd.f32 %v752, %v1675
    %1677 = vmatprep.mubr.bf16.mxu0 0
    %1678 = vmatmul.mubr.bf16.gmra.mxu0 %v1007
    %v1679 = vpop.f32.mrf.mxu0
    %v1680 = vadd.f32 %v748, %v1679
    %v1681 = vpop.f32.mrf.mxu0
    %v1682 = vadd.f32 %v752, %v1681
    %v1683 = vpop.f32.mrf.mxu0
    %v1684 = vadd.f32 %v748, %v1683
    %v1685 = vpop.f32.mrf.mxu0
    %v1686 = vadd.f32 %v752, %v1685
    %1687 = vmatprep.mubr.bf16.mxu0 0
    %1688 = vmatmul.mubr.bf16.gmra.mxu0 %v1008
    %v1689 = vpop.f32.mrf.mxu0
    %v1690 = vadd.f32 %v748, %v1689
    %v1691 = vpop.f32.mrf.mxu0
    %v1692 = vadd.f32 %v752, %v1691
    %v1693 = vpop.f32.mrf.mxu0
    %v1694 = vadd.f32 %v748, %v1693
    %v1695 = vpop.f32.mrf.mxu0
    %v1696 = vadd.f32 %v752, %v1695
    %1697 = vmatprep.mubr.bf16.mxu0 0
    %1698 = vmatmul.mubr.bf16.gmra.mxu0 %v1009
    %v1699 = vpop.f32.mrf.mxu0
    %v1700 = vadd.f32 %v748, %v1699
    %v1701 = vpop.f32.mrf.mxu0
    %v1702 = vadd.f32 %v752, %v1701
    %v1703 = vpop.f32.mrf.mxu0
    %v1704 = vadd.f32 %v748, %v1703
    %v1705 = vpop.f32.mrf.mxu0
    %v1706 = vadd.f32 %v752, %v1705
    %1707 = vmatprep.mubr.bf16.mxu0 0
    %1708 = vmatmul.mubr.bf16.gmra.mxu0 %v1010
    %v1709 = vpop.f32.mrf.mxu0
    %v1710 = vadd.f32 %v748, %v1709
    %v1711 = vpop.f32.mrf.mxu0
    %v1712 = vadd.f32 %v752, %v1711
    %v1713 = vpop.f32.mrf.mxu0
    %v1714 = vadd.f32 %v748, %v1713
    %v1715 = vpop.f32.mrf.mxu0
    %v1716 = vadd.f32 %v752, %v1715
    %1717 = vmatprep.mubr.bf16.mxu0 0
    %1718 = vmatmul.mubr.bf16.gmra.mxu0 %v1011
    %v1719 = vpop.f32.mrf.mxu0
    %v1720 = vadd.f32 %v748, %v1719
    %v1721 = vpop.f32.mrf.mxu0
    %v1722 = vadd.f32 %v752, %v1721
    %v1723 = vpop.f32.mrf.mxu0
    %v1724 = vadd.f32 %v748, %v1723
    %v1725 = vpop.f32.mrf.mxu0
    %v1726 = vadd.f32 %v752, %v1725
    %1727 = vmatprep.mubr.bf16.mxu0 0
    %1728 = vmatmul.mubr.bf16.gmra.mxu0 %v1012
    %v1729 = vpop.f32.mrf.mxu0
    %v1730 = vadd.f32 %v748, %v1729
    %v1731 = vpop.f32.mrf.mxu0
    %v1732 = vadd.f32 %v752, %v1731
    %v1733 = vpop.f32.mrf.mxu0
    %v1734 = vadd.f32 %v748, %v1733
    %v1735 = vpop.f32.mrf.mxu0
    %v1736 = vadd.f32 %v752, %v1735
    %1737 = vmatprep.mubr.bf16.mxu0 0
    %1738 = vmatmul.mubr.bf16.gmra.mxu0 %v1013
    %v1739 = vpop.f32.mrf.mxu0
    %v1740 = vadd.f32 %v748, %v1739
    %v1741 = vpop.f32.mrf.mxu0
    %v1742 = vadd.f32 %v752, %v1741
    %v1743 = vpop.f32.mrf.mxu0
    %v1744 = vadd.f32 %v748, %v1743
    %v1745 = vpop.f32.mrf.mxu0
    %v1746 = vadd.f32 %v752, %v1745
    %1747 = vmatprep.mubr.bf16.mxu0 0
    %1748 = vmatmul.mubr.bf16.gmra.mxu0 %v1014
    %v1749 = vpop.f32.mrf.mxu0
    %v1750 = vadd.f32 %v748, %v1749
    %v1751 = vpop.f32.mrf.mxu0
    %v1752 = vadd.f32 %v752, %v1751
    %v1753 = vpop.f32.mrf.mxu0
    %v1754 = vadd.f32 %v748, %v1753
    %v1755 = vpop.f32.mrf.mxu0
    %v1756 = vadd.f32 %v752, %v1755
    %1757 = vdwg.mxu0
    %1758 = vmatprep.subr.bf16.mxu0 %v1192
    %1759 = vmatpush1.bf16.msra.mxu0 %v1191
    %1760 = vmatprep.subr.bf16.mxu0 %v1188
    %1761 = vmatpush1.bf16.msra.mxu0 %v1187
    %1762 = vmatprep.subr.bf16.mxu0 %v1184
    %1763 = vmatpush1.bf16.msra.mxu0 %v1183
    %1764 = vmatprep.subr.bf16.mxu0 %v1180
    %1765 = vmatpush1.bf16.msra.mxu0 %v1179
    %1766 = vmatprep.subr.bf16.mxu0 %v1176
    %1767 = vmatpush1.bf16.msra.mxu0 %v1175
    %1768 = vmatprep.subr.bf16.mxu0 %v1172
    %1769 = vmatpush1.bf16.msra.mxu0 %v1171
    %1770 = vmatprep.subr.bf16.mxu0 %v1168
    %1771 = vmatpush1.bf16.msra.mxu0 %v1167
    %1772 = vmatprep.subr.bf16.mxu0 %v1164
    %1773 = vmatpush1.bf16.msra.mxu0 %v1163
    %1774 = vmatprep.subr.bf16.mxu0 0
    %1775 = vmatpush2.bf16.msra.mxu0 0
    %1776 = vmatprep.subr.bf16.mxu0 0
    %1777 = vmatpush2.bf16.msra.mxu0 0
    %1778 = vmatprep.subr.bf16.mxu0 0
    %1779 = vmatpush2.bf16.msra.mxu0 0
    %1780 = vmatprep.subr.bf16.mxu0 0
    %1781 = vmatpush2.bf16.msra.mxu0 0
    %1782 = vmatprep.subr.bf16.mxu0 0
    %1783 = vmatpush2.bf16.msra.mxu0 0
    %1784 = vmatprep.subr.bf16.mxu0 0
    %1785 = vmatpush2.bf16.msra.mxu0 0
    %1786 = vmatprep.subr.bf16.mxu0 0
    %1787 = vmatpush2.bf16.msra.mxu0 0
    %1788 = vmatprep.subr.bf16.mxu0 0
    %1789 = vmatpush2.bf16.msra.mxu0 0
    %1790 = vmatprep.mubr.bf16.mxu0 0
    %1791 = vmatmul.mubr.bf16.gmra.mxu0 %v965
    %v1792 = vpop.f32.mrf.mxu0
    %v1793 = vadd.f32 %v756, %v1792
    %v1794 = vpop.f32.mrf.mxu0
    %v1795 = vadd.f32 %v760, %v1794
    %v1796 = vpop.f32.mrf.mxu0
    %v1797 = vadd.f32 %v756, %v1796
    %v1798 = vpop.f32.mrf.mxu0
    %v1799 = vadd.f32 %v760, %v1798
    %1800 = vmatprep.mubr.bf16.mxu0 0
    %1801 = vmatmul.mubr.bf16.gmra.mxu0 %v966
    %v1802 = vpop.f32.mrf.mxu0
    %v1803 = vadd.f32 %v756, %v1802
    %v1804 = vpop.f32.mrf.mxu0
    %v1805 = vadd.f32 %v760, %v1804
    %v1806 = vpop.f32.mrf.mxu0
    %v1807 = vadd.f32 %v756, %v1806
    %v1808 = vpop.f32.mrf.mxu0
    %v1809 = vadd.f32 %v760, %v1808
    %1810 = vmatprep.mubr.bf16.mxu0 0
    %1811 = vmatmul.mubr.bf16.gmra.mxu0 %v967
    %v1812 = vpop.f32.mrf.mxu0
    %v1813 = vadd.f32 %v756, %v1812
    %v1814 = vpop.f32.mrf.mxu0
    %v1815 = vadd.f32 %v760, %v1814
    %v1816 = vpop.f32.mrf.mxu0
    %v1817 = vadd.f32 %v756, %v1816
    %v1818 = vpop.f32.mrf.mxu0
    %v1819 = vadd.f32 %v760, %v1818
    %1820 = vmatprep.mubr.bf16.mxu0 0
    %1821 = vmatmul.mubr.bf16.gmra.mxu0 %v968
    %v1822 = vpop.f32.mrf.mxu0
    %v1823 = vadd.f32 %v756, %v1822
    %v1824 = vpop.f32.mrf.mxu0
    %v1825 = vadd.f32 %v760, %v1824
    %v1826 = vpop.f32.mrf.mxu0
    %v1827 = vadd.f32 %v756, %v1826
    %v1828 = vpop.f32.mrf.mxu0
    %v1829 = vadd.f32 %v760, %v1828
    %1830 = vmatprep.mubr.bf16.mxu0 0
    %1831 = vmatmul.mubr.bf16.gmra.mxu0 %v969
    %v1832 = vpop.f32.mrf.mxu0
    %v1833 = vadd.f32 %v756, %v1832
    %v1834 = vpop.f32.mrf.mxu0
    %v1835 = vadd.f32 %v760, %v1834
    %v1836 = vpop.f32.mrf.mxu0
    %v1837 = vadd.f32 %v756, %v1836
    %v1838 = vpop.f32.mrf.mxu0
    %v1839 = vadd.f32 %v760, %v1838
    %1840 = vmatprep.mubr.bf16.mxu0 0
    %1841 = vmatmul.mubr.bf16.gmra.mxu0 %v970
    %v1842 = vpop.f32.mrf.mxu0
    %v1843 = vadd.f32 %v756, %v1842
    %v1844 = vpop.f32.mrf.mxu0
    %v1845 = vadd.f32 %v760, %v1844
    %v1846 = vpop.f32.mrf.mxu0
    %v1847 = vadd.f32 %v756, %v1846
    %v1848 = vpop.f32.mrf.mxu0
    %v1849 = vadd.f32 %v760, %v1848
    %1850 = vmatprep.mubr.bf16.mxu0 0
    %1851 = vmatmul.mubr.bf16.gmra.mxu0 %v971
    %v1852 = vpop.f32.mrf.mxu0
    %v1853 = vadd.f32 %v756, %v1852
    %v1854 = vpop.f32.mrf.mxu0
    %v1855 = vadd.f32 %v760, %v1854
    %v1856 = vpop.f32.mrf.mxu0
    %v1857 = vadd.f32 %v756, %v1856
    %v1858 = vpop.f32.mrf.mxu0
    %v1859 = vadd.f32 %v760, %v1858
    %1860 = vmatprep.mubr.bf16.mxu0 0
    %1861 = vmatmul.mubr.bf16.gmra.mxu0 %v972
    %v1862 = vpop.f32.mrf.mxu0
    %v1863 = vadd.f32 %v756, %v1862
    %v1864 = vpop.f32.mrf.mxu0
    %v1865 = vadd.f32 %v760, %v1864
    %v1866 = vpop.f32.mrf.mxu0
    %v1867 = vadd.f32 %v756, %v1866
    %v1868 = vpop.f32.mrf.mxu0
    %v1869 = vadd.f32 %v760, %v1868
    %1870 = vmatprep.mubr.bf16.mxu0 0
    %1871 = vmatmul.mubr.bf16.gmra.mxu0 %v973
    %v1872 = vpop.f32.mrf.mxu0
    %v1873 = vadd.f32 %v756, %v1872
    %v1874 = vpop.f32.mrf.mxu0
    %v1875 = vadd.f32 %v760, %v1874
    %v1876 = vpop.f32.mrf.mxu0
    %v1877 = vadd.f32 %v756, %v1876
    %v1878 = vpop.f32.mrf.mxu0
    %v1879 = vadd.f32 %v760, %v1878
    %1880 = vmatprep.mubr.bf16.mxu0 0
    %1881 = vmatmul.mubr.bf16.gmra.mxu0 %v974
    %v1882 = vpop.f32.mrf.mxu0
    %v1883 = vadd.f32 %v756, %v1882
    %v1884 = vpop.f32.mrf.mxu0
    %v1885 = vadd.f32 %v760, %v1884
    %v1886 = vpop.f32.mrf.mxu0
    %v1887 = vadd.f32 %v756, %v1886
    %v1888 = vpop.f32.mrf.mxu0
    %v1889 = vadd.f32 %v760, %v1888
    %1890 = vmatprep.mubr.bf16.mxu0 0
    %1891 = vmatmul.mubr.bf16.gmra.mxu0 %v975
    %v1892 = vpop.f32.mrf.mxu0
    %v1893 = vadd.f32 %v756, %v1892
    %v1894 = vpop.f32.mrf.mxu0
    %v1895 = vadd.f32 %v760, %v1894
    %v1896 = vpop.f32.mrf.mxu0
    %v1897 = vadd.f32 %v756, %v1896
    %v1898 = vpop.f32.mrf.mxu0
    %v1899 = vadd.f32 %v760, %v1898
    %1900 = vmatprep.mubr.bf16.mxu0 0
    %1901 = vmatmul.mubr.bf16.gmra.mxu0 %v976
    %v1902 = vpop.f32.mrf.mxu0
    %v1903 = vadd.f32 %v756, %v1902
    %v1904 = vpop.f32.mrf.mxu0
    %v1905 = vadd.f32 %v760, %v1904
    %v1906 = vpop.f32.mrf.mxu0
    %v1907 = vadd.f32 %v756, %v1906
    %v1908 = vpop.f32.mrf.mxu0
    %v1909 = vadd.f32 %v760, %v1908
    %1910 = vmatprep.mubr.bf16.mxu0 0
    %1911 = vmatmul.mubr.bf16.gmra.mxu0 %v977
    %v1912 = vpop.f32.mrf.mxu0
    %v1913 = vadd.f32 %v756, %v1912
    %v1914 = vpop.f32.mrf.mxu0
    %v1915 = vadd.f32 %v760, %v1914
    %v1916 = vpop.f32.mrf.mxu0
    %v1917 = vadd.f32 %v756, %v1916
    %v1918 = vpop.f32.mrf.mxu0
    %v1919 = vadd.f32 %v760, %v1918
    %1920 = vmatprep.mubr.bf16.mxu0 0
    %1921 = vmatmul.mubr.bf16.gmra.mxu0 %v978
    %v1922 = vpop.f32.mrf.mxu0
    %v1923 = vadd.f32 %v756, %v1922
    %v1924 = vpop.f32.mrf.mxu0
    %v1925 = vadd.f32 %v760, %v1924
    %v1926 = vpop.f32.mrf.mxu0
    %v1927 = vadd.f32 %v756, %v1926
    %v1928 = vpop.f32.mrf.mxu0
    %v1929 = vadd.f32 %v760, %v1928
    %1930 = vmatprep.mubr.bf16.mxu0 0
    %1931 = vmatmul.mubr.bf16.gmra.mxu0 %v979
    %v1932 = vpop.f32.mrf.mxu0
    %v1933 = vadd.f32 %v756, %v1932
    %v1934 = vpop.f32.mrf.mxu0
    %v1935 = vadd.f32 %v760, %v1934
    %v1936 = vpop.f32.mrf.mxu0
    %v1937 = vadd.f32 %v756, %v1936
    %v1938 = vpop.f32.mrf.mxu0
    %v1939 = vadd.f32 %v760, %v1938
    %1940 = vmatprep.mubr.bf16.mxu0 0
    %1941 = vmatmul.mubr.bf16.gmra.mxu0 %v980
    %v1942 = vpop.f32.mrf.mxu0
    %v1943 = vadd.f32 %v756, %v1942
    %v1944 = vpop.f32.mrf.mxu0
    %v1945 = vadd.f32 %v760, %v1944
    %v1946 = vpop.f32.mrf.mxu0
    %v1947 = vadd.f32 %v756, %v1946
    %v1948 = vpop.f32.mrf.mxu0
    %v1949 = vadd.f32 %v760, %v1948
    %1950 = vmatprep.mubr.bf16.mxu0 0
    %1951 = vmatmul.mubr.bf16.gmra.mxu0 %v981
    %v1952 = vpop.f32.mrf.mxu0
    %v1953 = vadd.f32 %v756, %v1952
    %v1954 = vpop.f32.mrf.mxu0
    %v1955 = vadd.f32 %v760, %v1954
    %v1956 = vpop.f32.mrf.mxu0
    %v1957 = vadd.f32 %v756, %v1956
    %v1958 = vpop.f32.mrf.mxu0
    %v1959 = vadd.f32 %v760, %v1958
    %1960 = vmatprep.mubr.bf16.mxu0 0
    %1961 = vmatmul.mubr.bf16.gmra.mxu0 %v982
    %v1962 = vpop.f32.mrf.mxu0
    %v1963 = vadd.f32 %v756, %v1962
    %v1964 = vpop.f32.mrf.mxu0
    %v1965 = vadd.f32 %v760, %v1964
    %v1966 = vpop.f32.mrf.mxu0
    %v1967 = vadd.f32 %v756, %v1966
    %v1968 = vpop.f32.mrf.mxu0
    %v1969 = vadd.f32 %v760, %v1968
    %1970 = vmatprep.mubr.bf16.mxu0 0
    %1971 = vmatmul.mubr.bf16.gmra.mxu0 %v983
    %v1972 = vpop.f32.mrf.mxu0
    %v1973 = vadd.f32 %v756, %v1972
    %v1974 = vpop.f32.mrf.mxu0
    %v1975 = vadd.f32 %v760, %v1974
    %v1976 = vpop.f32.mrf.mxu0
    %v1977 = vadd.f32 %v756, %v1976
    %v1978 = vpop.f32.mrf.mxu0
    %v1979 = vadd.f32 %v760, %v1978
    %1980 = vmatprep.mubr.bf16.mxu0 0
    %1981 = vmatmul.mubr.bf16.gmra.mxu0 %v984
    %v1982 = vpop.f32.mrf.mxu0
    %v1983 = vadd.f32 %v756, %v1982
    %v1984 = vpop.f32.mrf.mxu0
    %v1985 = vadd.f32 %v760, %v1984
    %v1986 = vpop.f32.mrf.mxu0
    %v1987 = vadd.f32 %v756, %v1986
    %v1988 = vpop.f32.mrf.mxu0
    %v1989 = vadd.f32 %v760, %v1988
    %1990 = vmatprep.mubr.bf16.mxu0 0
    %1991 = vmatmul.mubr.bf16.gmra.mxu0 %v985
    %v1992 = vpop.f32.mrf.mxu0
    %v1993 = vadd.f32 %v756, %v1992
    %v1994 = vpop.f32.mrf.mxu0
    %v1995 = vadd.f32 %v760, %v1994
    %v1996 = vpop.f32.mrf.mxu0
    %v1997 = vadd.f32 %v756, %v1996
    %v1998 = vpop.f32.mrf.mxu0
    %v1999 = vadd.f32 %v760, %v1998
    %2000 = vmatprep.mubr.bf16.mxu0 0
    %2001 = vmatmul.mubr.bf16.gmra.mxu0 %v986
    %v2002 = vpop.f32.mrf.mxu0
    %v2003 = vadd.f32 %v756, %v2002
    %v2004 = vpop.f32.mrf.mxu0
    %v2005 = vadd.f32 %v760, %v2004
    %v2006 = vpop.f32.mrf.mxu0
    %v2007 = vadd.f32 %v756, %v2006
    %v2008 = vpop.f32.mrf.mxu0
    %v2009 = vadd.f32 %v760, %v2008
    %2010 = vmatprep.mubr.bf16.mxu0 0
    %2011 = vmatmul.mubr.bf16.gmra.mxu0 %v987
    %v2012 = vpop.f32.mrf.mxu0
    %v2013 = vadd.f32 %v756, %v2012
    %v2014 = vpop.f32.mrf.mxu0
    %v2015 = vadd.f32 %v760, %v2014
    %v2016 = vpop.f32.mrf.mxu0
    %v2017 = vadd.f32 %v756, %v2016
    %v2018 = vpop.f32.mrf.mxu0
    %v2019 = vadd.f32 %v760, %v2018
    %2020 = vmatprep.mubr.bf16.mxu0 0
    %2021 = vmatmul.mubr.bf16.gmra.mxu0 %v988
    %v2022 = vpop.f32.mrf.mxu0
    %v2023 = vadd.f32 %v756, %v2022
    %v2024 = vpop.f32.mrf.mxu0
    %v2025 = vadd.f32 %v760, %v2024
    %v2026 = vpop.f32.mrf.mxu0
    %v2027 = vadd.f32 %v756, %v2026
    %v2028 = vpop.f32.mrf.mxu0
    %v2029 = vadd.f32 %v760, %v2028
    %2030 = vmatprep.mubr.bf16.mxu0 0
    %2031 = vmatmul.mubr.bf16.gmra.mxu0 %v989
    %v2032 = vpop.f32.mrf.mxu0
    %v2033 = vadd.f32 %v756, %v2032
    %v2034 = vpop.f32.mrf.mxu0
    %v2035 = vadd.f32 %v760, %v2034
    %v2036 = vpop.f32.mrf.mxu0
    %v2037 = vadd.f32 %v756, %v2036
    %v2038 = vpop.f32.mrf.mxu0
    %v2039 = vadd.f32 %v760, %v2038
    %2040 = vmatprep.mubr.bf16.mxu0 0
    %2041 = vmatmul.mubr.bf16.gmra.mxu0 %v990
    %v2042 = vpop.f32.mrf.mxu0
    %v2043 = vadd.f32 %v756, %v2042
    %v2044 = vpop.f32.mrf.mxu0
    %v2045 = vadd.f32 %v760, %v2044
    %v2046 = vpop.f32.mrf.mxu0
    %v2047 = vadd.f32 %v756, %v2046
    %v2048 = vpop.f32.mrf.mxu0
    %v2049 = vadd.f32 %v760, %v2048
    %2050 = vmatprep.mubr.bf16.mxu0 0
    %2051 = vmatmul.mubr.bf16.gmra.mxu0 %v991
    %v2052 = vpop.f32.mrf.mxu0
    %v2053 = vadd.f32 %v756, %v2052
    %v2054 = vpop.f32.mrf.mxu0
    %v2055 = vadd.f32 %v760, %v2054
    %v2056 = vpop.f32.mrf.mxu0
    %v2057 = vadd.f32 %v756, %v2056
    %v2058 = vpop.f32.mrf.mxu0
    %v2059 = vadd.f32 %v760, %v2058
    %2060 = vmatprep.mubr.bf16.mxu0 0
    %2061 = vmatmul.mubr.bf16.gmra.mxu0 %v992
    %v2062 = vpop.f32.mrf.mxu0
    %v2063 = vadd.f32 %v756, %v2062
    %v2064 = vpop.f32.mrf.mxu0
    %v2065 = vadd.f32 %v760, %v2064
    %v2066 = vpop.f32.mrf.mxu0
    %v2067 = vadd.f32 %v756, %v2066
    %v2068 = vpop.f32.mrf.mxu0
    %v2069 = vadd.f32 %v760, %v2068
    %2070 = vmatprep.mubr.bf16.mxu0 0
    %2071 = vmatmul.mubr.bf16.gmra.mxu0 %v993
    %v2072 = vpop.f32.mrf.mxu0
    %v2073 = vadd.f32 %v756, %v2072
    %v2074 = vpop.f32.mrf.mxu0
    %v2075 = vadd.f32 %v760, %v2074
    %v2076 = vpop.f32.mrf.mxu0
    %v2077 = vadd.f32 %v756, %v2076
    %v2078 = vpop.f32.mrf.mxu0
    %v2079 = vadd.f32 %v760, %v2078
    %2080 = vmatprep.mubr.bf16.mxu0 0
    %2081 = vmatmul.mubr.bf16.gmra.mxu0 %v994
    %v2082 = vpop.f32.mrf.mxu0
    %v2083 = vadd.f32 %v756, %v2082
    %v2084 = vpop.f32.mrf.mxu0
    %v2085 = vadd.f32 %v760, %v2084
    %v2086 = vpop.f32.mrf.mxu0
    %v2087 = vadd.f32 %v756, %v2086
    %v2088 = vpop.f32.mrf.mxu0
    %v2089 = vadd.f32 %v760, %v2088
    %2090 = vmatprep.mubr.bf16.mxu0 0
    %2091 = vmatmul.mubr.bf16.gmra.mxu0 %v995
    %v2092 = vpop.f32.mrf.mxu0
    %v2093 = vadd.f32 %v756, %v2092
    %v2094 = vpop.f32.mrf.mxu0
    %v2095 = vadd.f32 %v760, %v2094
    %v2096 = vpop.f32.mrf.mxu0
    %v2097 = vadd.f32 %v756, %v2096
    %v2098 = vpop.f32.mrf.mxu0
    %v2099 = vadd.f32 %v760, %v2098
    %2100 = vmatprep.mubr.bf16.mxu0 0
    %2101 = vmatmul.mubr.bf16.gmra.mxu0 %v996
    %v2102 = vpop.f32.mrf.mxu0
    %v2103 = vadd.f32 %v756, %v2102
    %v2104 = vpop.f32.mrf.mxu0
    %v2105 = vadd.f32 %v760, %v2104
    %v2106 = vpop.f32.mrf.mxu0
    %v2107 = vadd.f32 %v756, %v2106
    %v2108 = vpop.f32.mrf.mxu0
    %v2109 = vadd.f32 %v760, %v2108
    %2110 = vmatprep.mubr.bf16.mxu0 0
    %2111 = vmatmul.mubr.bf16.gmra.mxu0 %v997
    %v2112 = vpop.f32.mrf.mxu0
    %v2113 = vadd.f32 %v756, %v2112
    %v2114 = vpop.f32.mrf.mxu0
    %v2115 = vadd.f32 %v760, %v2114
    %v2116 = vpop.f32.mrf.mxu0
    %v2117 = vadd.f32 %v756, %v2116
    %v2118 = vpop.f32.mrf.mxu0
    %v2119 = vadd.f32 %v760, %v2118
    %2120 = vmatprep.mubr.bf16.mxu0 0
    %2121 = vmatmul.mubr.bf16.gmra.mxu0 %v998
    %v2122 = vpop.f32.mrf.mxu0
    %v2123 = vadd.f32 %v756, %v2122
    %v2124 = vpop.f32.mrf.mxu0
    %v2125 = vadd.f32 %v760, %v2124
    %v2126 = vpop.f32.mrf.mxu0
    %v2127 = vadd.f32 %v756, %v2126
    %v2128 = vpop.f32.mrf.mxu0
    %v2129 = vadd.f32 %v760, %v2128
    %2130 = vmatprep.mubr.bf16.mxu0 0
    %2131 = vmatmul.mubr.bf16.gmra.mxu0 %v999
    %v2132 = vpop.f32.mrf.mxu0
    %v2133 = vadd.f32 %v756, %v2132
    %v2134 = vpop.f32.mrf.mxu0
    %v2135 = vadd.f32 %v760, %v2134
    %v2136 = vpop.f32.mrf.mxu0
    %v2137 = vadd.f32 %v756, %v2136
    %v2138 = vpop.f32.mrf.mxu0
    %v2139 = vadd.f32 %v760, %v2138
    %2140 = vmatprep.mubr.bf16.mxu0 0
    %2141 = vmatmul.mubr.bf16.gmra.mxu0 %v1000
    %v2142 = vpop.f32.mrf.mxu0
    %v2143 = vadd.f32 %v756, %v2142
    %v2144 = vpop.f32.mrf.mxu0
    %v2145 = vadd.f32 %v760, %v2144
    %v2146 = vpop.f32.mrf.mxu0
    %v2147 = vadd.f32 %v756, %v2146
    %v2148 = vpop.f32.mrf.mxu0
    %v2149 = vadd.f32 %v760, %v2148
    %2150 = vmatprep.mubr.bf16.mxu0 0
    %2151 = vmatmul.mubr.bf16.gmra.mxu0 %v1001
    %v2152 = vpop.f32.mrf.mxu0
    %v2153 = vadd.f32 %v756, %v2152
    %v2154 = vpop.f32.mrf.mxu0
    %v2155 = vadd.f32 %v760, %v2154
    %v2156 = vpop.f32.mrf.mxu0
    %v2157 = vadd.f32 %v756, %v2156
    %v2158 = vpop.f32.mrf.mxu0
    %v2159 = vadd.f32 %v760, %v2158
    %2160 = vmatprep.mubr.bf16.mxu0 0
    %2161 = vmatmul.mubr.bf16.gmra.mxu0 %v1002
    %v2162 = vpop.f32.mrf.mxu0
    %v2163 = vadd.f32 %v756, %v2162
    %v2164 = vpop.f32.mrf.mxu0
    %v2165 = vadd.f32 %v760, %v2164
    %v2166 = vpop.f32.mrf.mxu0
    %v2167 = vadd.f32 %v756, %v2166
    %v2168 = vpop.f32.mrf.mxu0
    %v2169 = vadd.f32 %v760, %v2168
    %2170 = vmatprep.mubr.bf16.mxu0 0
    %2171 = vmatmul.mubr.bf16.gmra.mxu0 %v1003
    %v2172 = vpop.f32.mrf.mxu0
    %v2173 = vadd.f32 %v756, %v2172
    %v2174 = vpop.f32.mrf.mxu0
    %v2175 = vadd.f32 %v760, %v2174
    %v2176 = vpop.f32.mrf.mxu0
    %v2177 = vadd.f32 %v756, %v2176
    %v2178 = vpop.f32.mrf.mxu0
    %v2179 = vadd.f32 %v760, %v2178
    %2180 = vmatprep.mubr.bf16.mxu0 0
    %2181 = vmatmul.mubr.bf16.gmra.mxu0 %v1004
    %v2182 = vpop.f32.mrf.mxu0
    %v2183 = vadd.f32 %v756, %v2182
    %v2184 = vpop.f32.mrf.mxu0
    %v2185 = vadd.f32 %v760, %v2184
    %v2186 = vpop.f32.mrf.mxu0
    %v2187 = vadd.f32 %v756, %v2186
    %v2188 = vpop.f32.mrf.mxu0
    %v2189 = vadd.f32 %v760, %v2188
    %2190 = vmatprep.mubr.bf16.mxu0 0
    %2191 = vmatmul.mubr.bf16.gmra.mxu0 %v1005
    %v2192 = vpop.f32.mrf.mxu0
    %v2193 = vadd.f32 %v756, %v2192
    %v2194 = vpop.f32.mrf.mxu0
    %v2195 = vadd.f32 %v760, %v2194
    %v2196 = vpop.f32.mrf.mxu0
    %v2197 = vadd.f32 %v756, %v2196
    %v2198 = vpop.f32.mrf.mxu0
    %v2199 = vadd.f32 %v760, %v2198
    %2200 = vmatprep.mubr.bf16.mxu0 0
    %2201 = vmatmul.mubr.bf16.gmra.mxu0 %v1006
    %v2202 = vpop.f32.mrf.mxu0
    %v2203 = vadd.f32 %v756, %v2202
    %v2204 = vpop.f32.mrf.mxu0
    %v2205 = vadd.f32 %v760, %v2204
    %v2206 = vpop.f32.mrf.mxu0
    %v2207 = vadd.f32 %v756, %v2206
    %v2208 = vpop.f32.mrf.mxu0
    %v2209 = vadd.f32 %v760, %v2208
    %2210 = vmatprep.mubr.bf16.mxu0 0
    %2211 = vmatmul.mubr.bf16.gmra.mxu0 %v1007
    %v2212 = vpop.f32.mrf.mxu0
    %v2213 = vadd.f32 %v756, %v2212
    %v2214 = vpop.f32.mrf.mxu0
    %v2215 = vadd.f32 %v760, %v2214
    %v2216 = vpop.f32.mrf.mxu0
    %v2217 = vadd.f32 %v756, %v2216
    %v2218 = vpop.f32.mrf.mxu0
    %v2219 = vadd.f32 %v760, %v2218
    %2220 = vmatprep.mubr.bf16.mxu0 0
    %2221 = vmatmul.mubr.bf16.gmra.mxu0 %v1008
    %v2222 = vpop.f32.mrf.mxu0
    %v2223 = vadd.f32 %v756, %v2222
    %v2224 = vpop.f32.mrf.mxu0
    %v2225 = vadd.f32 %v760, %v2224
    %v2226 = vpop.f32.mrf.mxu0
    %v2227 = vadd.f32 %v756, %v2226
    %v2228 = vpop.f32.mrf.mxu0
    %v2229 = vadd.f32 %v760, %v2228
    %2230 = vmatprep.mubr.bf16.mxu0 0
    %2231 = vmatmul.mubr.bf16.gmra.mxu0 %v1009
    %v2232 = vpop.f32.mrf.mxu0
    %v2233 = vadd.f32 %v756, %v2232
    %v2234 = vpop.f32.mrf.mxu0
    %v2235 = vadd.f32 %v760, %v2234
    %v2236 = vpop.f32.mrf.mxu0
    %v2237 = vadd.f32 %v756, %v2236
    %v2238 = vpop.f32.mrf.mxu0
    %v2239 = vadd.f32 %v760, %v2238
    %2240 = vmatprep.mubr.bf16.mxu0 0
    %2241 = vmatmul.mubr.bf16.gmra.mxu0 %v1010
    %v2242 = vpop.f32.mrf.mxu0
    %v2243 = vadd.f32 %v756, %v2242
    %v2244 = vpop.f32.mrf.mxu0
    %v2245 = vadd.f32 %v760, %v2244
    %v2246 = vpop.f32.mrf.mxu0
    %v2247 = vadd.f32 %v756, %v2246
    %v2248 = vpop.f32.mrf.mxu0
    %v2249 = vadd.f32 %v760, %v2248
    %2250 = vmatprep.mubr.bf16.mxu0 0
    %2251 = vmatmul.mubr.bf16.gmra.mxu0 %v1011
    %v2252 = vpop.f32.mrf.mxu0
    %v2253 = vadd.f32 %v756, %v2252
    %v2254 = vpop.f32.mrf.mxu0
    %v2255 = vadd.f32 %v760, %v2254
    %v2256 = vpop.f32.mrf.mxu0
    %v2257 = vadd.f32 %v756, %v2256
    %v2258 = vpop.f32.mrf.mxu0
    %v2259 = vadd.f32 %v760, %v2258
    %2260 = vmatprep.mubr.bf16.mxu0 0
    %2261 = vmatmul.mubr.bf16.gmra.mxu0 %v1012
    %v2262 = vpop.f32.mrf.mxu0
    %v2263 = vadd.f32 %v756, %v2262
    %v2264 = vpop.f32.mrf.mxu0
    %v2265 = vadd.f32 %v760, %v2264
    %v2266 = vpop.f32.mrf.mxu0
    %v2267 = vadd.f32 %v756, %v2266
    %v2268 = vpop.f32.mrf.mxu0
    %v2269 = vadd.f32 %v760, %v2268
    %2270 = vmatprep.mubr.bf16.mxu0 0
    %2271 = vmatmul.mubr.bf16.gmra.mxu0 %v1013
    %v2272 = vpop.f32.mrf.mxu0
    %v2273 = vadd.f32 %v756, %v2272
    %v2274 = vpop.f32.mrf.mxu0
    %v2275 = vadd.f32 %v760, %v2274
    %v2276 = vpop.f32.mrf.mxu0
    %v2277 = vadd.f32 %v756, %v2276
    %v2278 = vpop.f32.mrf.mxu0
    %v2279 = vadd.f32 %v760, %v2278
    %2280 = vmatprep.mubr.bf16.mxu0 0
    %2281 = vmatmul.mubr.bf16.gmra.mxu0 %v1014
    %v2282 = vpop.f32.mrf.mxu0
    %v2283 = vadd.f32 %v756, %v2282
    %v2284 = vpop.f32.mrf.mxu0
    %v2285 = vadd.f32 %v760, %v2284
    %v2286 = vpop.f32.mrf.mxu0
    %v2287 = vadd.f32 %v756, %v2286
    %v2288 = vpop.f32.mrf.mxu0
    %v2289 = vadd.f32 %v760, %v2288
    %2290 = vdwg.mxu0
    %2291 = vst [vmem:[#allocation3] sm:$0xff] %v1260
    %2292 = vst [vmem:[#allocation3 + $0x8] sm:$0xff] %v1262
    %2293 = vst [vmem:[#allocation3 + $0x10] sm:$0xff] %v1793
    %2294 = vst [vmem:[#allocation3 + $0x18] sm:$0xff] %v1795
    %2295 = vst [vmem:[#allocation3 + $0x20] sm:$0xff] %v1264
    %2296 = vst [vmem:[#allocation3 + $0x28] sm:$0xff] %v1266
    %2297 = vst [vmem:[#allocation3 + $0x30] sm:$0xff] %v1797
    %2298 = vst [vmem:[#allocation3 + $0x38] sm:$0xff] %v1799
    %2299 = vst [vmem:[#allocation3 + $0x40] sm:$0xff] %v1270
    %2300 = vst [vmem:[#allocation3 + $0x48] sm:$0xff] %v1272
    %2301 = vst [vmem:[#allocation3 + $0x50] sm:$0xff] %v1803
    %2302 = vst [vmem:[#allocation3 + $0x58] sm:$0xff] %v1805
    %2303 = vst [vmem:[#allocation3 + $0x60] sm:$0xff] %v1274
    %2304 = vst [vmem:[#allocation3 + $0x68] sm:$0xff] %v1276
    %2305 = vst [vmem:[#allocation3 + $0x70] sm:$0xff] %v1807
    %2306 = vst [vmem:[#allocation3 + $0x78] sm:$0xff] %v1809
    %2307 = vst [vmem:[#allocation3 + $0x80] sm:$0xff] %v1280
    %2308 = vst [vmem:[#allocation3 + $0x88] sm:$0xff] %v1282
    %2309 = vst [vmem:[#allocation3 + $0x90] sm:$0xff] %v1813
    %2310 = vst [vmem:[#allocation3 + $0x98] sm:$0xff] %v1815
    %2311 = vst [vmem:[#allocation3 + $0xa0] sm:$0xff] %v1284
    %2312 = vst [vmem:[#allocation3 + $0xa8] sm:$0xff] %v1286
    %2313 = vst [vmem:[#allocation3 + $0xb0] sm:$0xff] %v1817
    %2314 = vst [vmem:[#allocation3 + $0xb8] sm:$0xff] %v1819
    %2315 = vst [vmem:[#allocation3 + $0xc0] sm:$0xff] %v1290
    %2316 = vst [vmem:[#allocation3 + $0xc8] sm:$0xff] %v1292
    %2317 = vst [vmem:[#allocation3 + $0xd0] sm:$0xff] %v1823
    %2318 = vst [vmem:[#allocation3 + $0xd8] sm:$0xff] %v1825
    %2319 = vst [vmem:[#allocation3 + $0xe0] sm:$0xff] %v1294
    %2320 = vst [vmem:[#allocation3 + $0xe8] sm:$0xff] %v1296
    %2321 = vst [vmem:[#allocation3 + $0xf0] sm:$0xff] %v1827
    %2322 = vst [vmem:[#allocation3 + $0xf8] sm:$0xff] %v1829
    %2323 = vst [vmem:[#allocation3 + $0x100] sm:$0xff] %v1300
    %2324 = vst [vmem:[#allocation3 + $0x108] sm:$0xff] %v1302
    %2325 = vst [vmem:[#allocation3 + $0x110] sm:$0xff] %v1833
    %2326 = vst [vmem:[#allocation3 + $0x118] sm:$0xff] %v1835
    %2327 = vst [vmem:[#allocation3 + $0x120] sm:$0xff] %v1304
    %2328 = vst [vmem:[#allocation3 + $0x128] sm:$0xff] %v1306
    %2329 = vst [vmem:[#allocation3 + $0x130] sm:$0xff] %v1837
    %2330 = vst [vmem:[#allocation3 + $0x138] sm:$0xff] %v1839
    %2331 = vst [vmem:[#allocation3 + $0x140] sm:$0xff] %v1310
    %2332 = vst [vmem:[#allocation3 + $0x148] sm:$0xff] %v1312
    %2333 = vst [vmem:[#allocation3 + $0x150] sm:$0xff] %v1843
    %2334 = vst [vmem:[#allocation3 + $0x158] sm:$0xff] %v1845
    %2335 = vst [vmem:[#allocation3 + $0x160] sm:$0xff] %v1314
    %2336 = vst [vmem:[#allocation3 + $0x168] sm:$0xff] %v1316
    %2337 = vst [vmem:[#allocation3 + $0x170] sm:$0xff] %v1847
    %2338 = vst [vmem:[#allocation3 + $0x178] sm:$0xff] %v1849
    %2339 = vst [vmem:[#allocation3 + $0x180] sm:$0xff] %v1320
    %2340 = vst [vmem:[#allocation3 + $0x188] sm:$0xff] %v1322
    %2341 = vst [vmem:[#allocation3 + $0x190] sm:$0xff] %v1853
    %2342 = vst [vmem:[#allocation3 + $0x198] sm:$0xff] %v1855
    %2343 = vst [vmem:[#allocation3 + $0x1a0] sm:$0xff] %v1324
    %2344 = vst [vmem:[#allocation3 + $0x1a8] sm:$0xff] %v1326
    %2345 = vst [vmem:[#allocation3 + $0x1b0] sm:$0xff] %v1857
    %2346 = vst [vmem:[#allocation3 + $0x1b8] sm:$0xff] %v1859
    %2347 = vst [vmem:[#allocation3 + $0x1c0] sm:$0xff] %v1330
    %2348 = vst [vmem:[#allocation3 + $0x1c8] sm:$0xff] %v1332
    %2349 = vst [vmem:[#allocation3 + $0x1d0] sm:$0xff] %v1863
    %2350 = vst [vmem:[#allocation3 + $0x1d8] sm:$0xff] %v1865
    %2351 = vst [vmem:[#allocation3 + $0x1e0] sm:$0xff] %v1334
    %2352 = vst [vmem:[#allocation3 + $0x1e8] sm:$0xff] %v1336
    %2353 = vst [vmem:[#allocation3 + $0x1f0] sm:$0xff] %v1867
    %2354 = vst [vmem:[#allocation3 + $0x1f8] sm:$0xff] %v1869
    %2355 = vst [vmem:[#allocation3 + $0x200] sm:$0xff] %v1340
    %2356 = vst [vmem:[#allocation3 + $0x208] sm:$0xff] %v1342
    %2357 = vst [vmem:[#allocation3 + $0x210] sm:$0xff] %v1873
    %2358 = vst [vmem:[#allocation3 + $0x218] sm:$0xff] %v1875
    %2359 = vst [vmem:[#allocation3 + $0x220] sm:$0xff] %v1344
    %2360 = vst [vmem:[#allocation3 + $0x228] sm:$0xff] %v1346
    %2361 = vst [vmem:[#allocation3 + $0x230] sm:$0xff] %v1877
    %2362 = vst [vmem:[#allocation3 + $0x238] sm:$0xff] %v1879
    %2363 = vst [vmem:[#allocation3 + $0x240] sm:$0xff] %v1350
    %2364 = vst [vmem:[#allocation3 + $0x248] sm:$0xff] %v1352
    %2365 = vst [vmem:[#allocation3 + $0x250] sm:$0xff] %v1883
    %2366 = vst [vmem:[#allocation3 + $0x258] sm:$0xff] %v1885
    %2367 = vst [vmem:[#allocation3 + $0x260] sm:$0xff] %v1354
    %2368 = vst [vmem:[#allocation3 + $0x268] sm:$0xff] %v1356
    %2369 = vst [vmem:[#allocation3 + $0x270] sm:$0xff] %v1887
    %2370 = vst [vmem:[#allocation3 + $0x278] sm:$0xff] %v1889
    %2371 = vst [vmem:[#allocation3 + $0x280] sm:$0xff] %v1360
    %2372 = vst [vmem:[#allocation3 + $0x288] sm:$0xff] %v1362
    %2373 = vst [vmem:[#allocation3 + $0x290] sm:$0xff] %v1893
    %2374 = vst [vmem:[#allocation3 + $0x298] sm:$0xff] %v1895
    %2375 = vst [vmem:[#allocation3 + $0x2a0] sm:$0xff] %v1364
    %2376 = vst [vmem:[#allocation3 + $0x2a8] sm:$0xff] %v1366
    %2377 = vst [vmem:[#allocation3 + $0x2b0] sm:$0xff] %v1897
    %2378 = vst [vmem:[#allocation3 + $0x2b8] sm:$0xff] %v1899
    %2379 = vst [vmem:[#allocation3 + $0x2c0] sm:$0xff] %v1370
    %2380 = vst [vmem:[#allocation3 + $0x2c8] sm:$0xff] %v1372
    %2381 = vst [vmem:[#allocation3 + $0x2d0] sm:$0xff] %v1903
    %2382 = vst [vmem:[#allocation3 + $0x2d8] sm:$0xff] %v1905
    %2383 = vst [vmem:[#allocation3 + $0x2e0] sm:$0xff] %v1374
    %2384 = vst [vmem:[#allocation3 + $0x2e8] sm:$0xff] %v1376
    %2385 = vst [vmem:[#allocation3 + $0x2f0] sm:$0xff] %v1907
    %2386 = vst [vmem:[#allocation3 + $0x2f8] sm:$0xff] %v1909
    %2387 = vst [vmem:[#allocation3 + $0x300] sm:$0xff] %v1380
    %2388 = vst [vmem:[#allocation3 + $0x308] sm:$0xff] %v1382
    %2389 = vst [vmem:[#allocation3 + $0x310] sm:$0xff] %v1913
    %2390 = vst [vmem:[#allocation3 + $0x318] sm:$0xff] %v1915
    %2391 = vst [vmem:[#allocation3 + $0x320] sm:$0xff] %v1384
    %2392 = vst [vmem:[#allocation3 + $0x328] sm:$0xff] %v1386
    %2393 = vst [vmem:[#allocation3 + $0x330] sm:$0xff] %v1917
    %2394 = vst [vmem:[#allocation3 + $0x338] sm:$0xff] %v1919
    %2395 = vst [vmem:[#allocation3 + $0x340] sm:$0xff] %v1390
    %2396 = vst [vmem:[#allocation3 + $0x348] sm:$0xff] %v1392
    %2397 = vst [vmem:[#allocation3 + $0x350] sm:$0xff] %v1923
    %2398 = vst [vmem:[#allocation3 + $0x358] sm:$0xff] %v1925
    %2399 = vst [vmem:[#allocation3 + $0x360] sm:$0xff] %v1394
    %2400 = vst [vmem:[#allocation3 + $0x368] sm:$0xff] %v1396
    %2401 = vst [vmem:[#allocation3 + $0x370] sm:$0xff] %v1927
    %2402 = vst [vmem:[#allocation3 + $0x378] sm:$0xff] %v1929
    %2403 = vst [vmem:[#allocation3 + $0x380] sm:$0xff] %v1400
    %2404 = vst [vmem:[#allocation3 + $0x388] sm:$0xff] %v1402
    %2405 = vst [vmem:[#allocation3 + $0x390] sm:$0xff] %v1933
    %2406 = vst [vmem:[#allocation3 + $0x398] sm:$0xff] %v1935
    %2407 = vst [vmem:[#allocation3 + $0x3a0] sm:$0xff] %v1404
    %2408 = vst [vmem:[#allocation3 + $0x3a8] sm:$0xff] %v1406
    %2409 = vst [vmem:[#allocation3 + $0x3b0] sm:$0xff] %v1937
    %2410 = vst [vmem:[#allocation3 + $0x3b8] sm:$0xff] %v1939
    %2411 = vst [vmem:[#allocation3 + $0x3c0] sm:$0xff] %v1410
    %2412 = vst [vmem:[#allocation3 + $0x3c8] sm:$0xff] %v1412
    %2413 = vst [vmem:[#allocation3 + $0x3d0] sm:$0xff] %v1943
    %2414 = vst [vmem:[#allocation3 + $0x3d8] sm:$0xff] %v1945
    %2415 = vst [vmem:[#allocation3 + $0x3e0] sm:$0xff] %v1414
    %2416 = vst [vmem:[#allocation3 + $0x3e8] sm:$0xff] %v1416
    %2417 = vst [vmem:[#allocation3 + $0x3f0] sm:$0xff] %v1947
    %2418 = vst [vmem:[#allocation3 + $0x3f8] sm:$0xff] %v1949
    %2419 = vst [vmem:[#allocation3 + $0x400] sm:$0xff] %v1420
    %2420 = vst [vmem:[#allocation3 + $0x408] sm:$0xff] %v1422
    %2421 = vst [vmem:[#allocation3 + $0x410] sm:$0xff] %v1953
    %2422 = vst [vmem:[#allocation3 + $0x418] sm:$0xff] %v1955
    %2423 = vst [vmem:[#allocation3 + $0x420] sm:$0xff] %v1424
    %2424 = vst [vmem:[#allocation3 + $0x428] sm:$0xff] %v1426
    %2425 = vst [vmem:[#allocation3 + $0x430] sm:$0xff] %v1957
    %2426 = vst [vmem:[#allocation3 + $0x438] sm:$0xff] %v1959
    %2427 = vst [vmem:[#allocation3 + $0x440] sm:$0xff] %v1430
    %2428 = vst [vmem:[#allocation3 + $0x448] sm:$0xff] %v1432
    %2429 = vst [vmem:[#allocation3 + $0x450] sm:$0xff] %v1963
    %2430 = vst [vmem:[#allocation3 + $0x458] sm:$0xff] %v1965
    %2431 = vst [vmem:[#allocation3 + $0x460] sm:$0xff] %v1434
    %2432 = vst [vmem:[#allocation3 + $0x468] sm:$0xff] %v1436
    %2433 = vst [vmem:[#allocation3 + $0x470] sm:$0xff] %v1967
    %2434 = vst [vmem:[#allocation3 + $0x478] sm:$0xff] %v1969
    %2435 = vst [vmem:[#allocation3 + $0x480] sm:$0xff] %v1440
    %2436 = vst [vmem:[#allocation3 + $0x488] sm:$0xff] %v1442
    %2437 = vst [vmem:[#allocation3 + $0x490] sm:$0xff] %v1973
    %2438 = vst [vmem:[#allocation3 + $0x498] sm:$0xff] %v1975
    %2439 = vst [vmem:[#allocation3 + $0x4a0] sm:$0xff] %v1444
    %2440 = vst [vmem:[#allocation3 + $0x4a8] sm:$0xff] %v1446
    %2441 = vst [vmem:[#allocation3 + $0x4b0] sm:$0xff] %v1977
    %2442 = vst [vmem:[#allocation3 + $0x4b8] sm:$0xff] %v1979
    %2443 = vst [vmem:[#allocation3 + $0x4c0] sm:$0xff] %v1450
    %2444 = vst [vmem:[#allocation3 + $0x4c8] sm:$0xff] %v1452
    %2445 = vst [vmem:[#allocation3 + $0x4d0] sm:$0xff] %v1983
    %2446 = vst [vmem:[#allocation3 + $0x4d8] sm:$0xff] %v1985
    %2447 = vst [vmem:[#allocation3 + $0x4e0] sm:$0xff] %v1454
    %2448 = vst [vmem:[#allocation3 + $0x4e8] sm:$0xff] %v1456
    %2449 = vst [vmem:[#allocation3 + $0x4f0] sm:$0xff] %v1987
    %2450 = vst [vmem:[#allocation3 + $0x4f8] sm:$0xff] %v1989
    %2451 = vst [vmem:[#allocation3 + $0x500] sm:$0xff] %v1460
    %2452 = vst [vmem:[#allocation3 + $0x508] sm:$0xff] %v1462
    %2453 = vst [vmem:[#allocation3 + $0x510] sm:$0xff] %v1993
    %2454 = vst [vmem:[#allocation3 + $0x518] sm:$0xff] %v1995
    %2455 = vst [vmem:[#allocation3 + $0x520] sm:$0xff] %v1464
    %2456 = vst [vmem:[#allocation3 + $0x528] sm:$0xff] %v1466
    %2457 = vst [vmem:[#allocation3 + $0x530] sm:$0xff] %v1997
    %2458 = vst [vmem:[#allocation3 + $0x538] sm:$0xff] %v1999
    %2459 = vst [vmem:[#allocation3 + $0x540] sm:$0xff] %v1470
    %2460 = vst [vmem:[#allocation3 + $0x548] sm:$0xff] %v1472
    %2461 = vst [vmem:[#allocation3 + $0x550] sm:$0xff] %v2003
    %2462 = vst [vmem:[#allocation3 + $0x558] sm:$0xff] %v2005
    %2463 = vst [vmem:[#allocation3 + $0x560] sm:$0xff] %v1474
    %2464 = vst [vmem:[#allocation3 + $0x568] sm:$0xff] %v1476
    %2465 = vst [vmem:[#allocation3 + $0x570] sm:$0xff] %v2007
    %2466 = vst [vmem:[#allocation3 + $0x578] sm:$0xff] %v2009
    %2467 = vst [vmem:[#allocation3 + $0x580] sm:$0xff] %v1480
    %2468 = vst [vmem:[#allocation3 + $0x588] sm:$0xff] %v1482
    %2469 = vst [vmem:[#allocation3 + $0x590] sm:$0xff] %v2013
    %2470 = vst [vmem:[#allocation3 + $0x598] sm:$0xff] %v2015
    %2471 = vst [vmem:[#allocation3 + $0x5a0] sm:$0xff] %v1484
    %2472 = vst [vmem:[#allocation3 + $0x5a8] sm:$0xff] %v1486
    %2473 = vst [vmem:[#allocation3 + $0x5b0] sm:$0xff] %v2017
    %2474 = vst [vmem:[#allocation3 + $0x5b8] sm:$0xff] %v2019
    %2475 = vst [vmem:[#allocation3 + $0x5c0] sm:$0xff] %v1490
    %2476 = vst [vmem:[#allocation3 + $0x5c8] sm:$0xff] %v1492
    %2477 = vst [vmem:[#allocation3 + $0x5d0] sm:$0xff] %v2023
    %2478 = vst [vmem:[#allocation3 + $0x5d8] sm:$0xff] %v2025
    %2479 = vst [vmem:[#allocation3 + $0x5e0] sm:$0xff] %v1494
    %2480 = vst [vmem:[#allocation3 + $0x5e8] sm:$0xff] %v1496
    %2481 = vst [vmem:[#allocation3 + $0x5f0] sm:$0xff] %v2027
    %2482 = vst [vmem:[#allocation3 + $0x5f8] sm:$0xff] %v2029
    %2483 = vst [vmem:[#allocation3 + $0x600] sm:$0xff] %v1500
    %2484 = vst [vmem:[#allocation3 + $0x608] sm:$0xff] %v1502
    %2485 = vst [vmem:[#allocation3 + $0x610] sm:$0xff] %v2033
    %2486 = vst [vmem:[#allocation3 + $0x618] sm:$0xff] %v2035
    %2487 = vst [vmem:[#allocation3 + $0x620] sm:$0xff] %v1504
    %2488 = vst [vmem:[#allocation3 + $0x628] sm:$0xff] %v1506
    %2489 = vst [vmem:[#allocation3 + $0x630] sm:$0xff] %v2037
    %2490 = vst [vmem:[#allocation3 + $0x638] sm:$0xff] %v2039
    %2491 = vst [vmem:[#allocation3 + $0x640] sm:$0xff] %v1510
    %2492 = vst [vmem:[#allocation3 + $0x648] sm:$0xff] %v1512
    %2493 = vst [vmem:[#allocation3 + $0x650] sm:$0xff] %v2043
    %2494 = vst [vmem:[#allocation3 + $0x658] sm:$0xff] %v2045
    %2495 = vst [vmem:[#allocation3 + $0x660] sm:$0xff] %v1514
    %2496 = vst [vmem:[#allocation3 + $0x668] sm:$0xff] %v1516
    %2497 = vst [vmem:[#allocation3 + $0x670] sm:$0xff] %v2047
    %2498 = vst [vmem:[#allocation3 + $0x678] sm:$0xff] %v2049
    %2499 = vst [vmem:[#allocation3 + $0x680] sm:$0xff] %v1520
    %2500 = vst [vmem:[#allocation3 + $0x688] sm:$0xff] %v1522
    %2501 = vst [vmem:[#allocation3 + $0x690] sm:$0xff] %v2053
    %2502 = vst [vmem:[#allocation3 + $0x698] sm:$0xff] %v2055
    %2503 = vst [vmem:[#allocation3 + $0x6a0] sm:$0xff] %v1524
    %2504 = vst [vmem:[#allocation3 + $0x6a8] sm:$0xff] %v1526
    %2505 = vst [vmem:[#allocation3 + $0x6b0] sm:$0xff] %v2057
    %2506 = vst [vmem:[#allocation3 + $0x6b8] sm:$0xff] %v2059
    %2507 = vst [vmem:[#allocation3 + $0x6c0] sm:$0xff] %v1530
    %2508 = vst [vmem:[#allocation3 + $0x6c8] sm:$0xff] %v1532
    %2509 = vst [vmem:[#allocation3 + $0x6d0] sm:$0xff] %v2063
    %2510 = vst [vmem:[#allocation3 + $0x6d8] sm:$0xff] %v2065
    %2511 = vst [vmem:[#allocation3 + $0x6e0] sm:$0xff] %v1534
    %2512 = vst [vmem:[#allocation3 + $0x6e8] sm:$0xff] %v1536
    %2513 = vst [vmem:[#allocation3 + $0x6f0] sm:$0xff] %v2067
    %2514 = vst [vmem:[#allocation3 + $0x6f8] sm:$0xff] %v2069
    %2515 = vst [vmem:[#allocation3 + $0x700] sm:$0xff] %v1540
    %2516 = vst [vmem:[#allocation3 + $0x708] sm:$0xff] %v1542
    %2517 = vst [vmem:[#allocation3 + $0x710] sm:$0xff] %v2073
    %2518 = vst [vmem:[#allocation3 + $0x718] sm:$0xff] %v2075
    %2519 = vst [vmem:[#allocation3 + $0x720] sm:$0xff] %v1544
    %2520 = vst [vmem:[#allocation3 + $0x728] sm:$0xff] %v1546
    %2521 = vst [vmem:[#allocation3 + $0x730] sm:$0xff] %v2077
    %2522 = vst [vmem:[#allocation3 + $0x738] sm:$0xff] %v2079
    %2523 = vst [vmem:[#allocation3 + $0x740] sm:$0xff] %v1550
    %2524 = vst [vmem:[#allocation3 + $0x748] sm:$0xff] %v1552
    %2525 = vst [vmem:[#allocation3 + $0x750] sm:$0xff] %v2083
    %2526 = vst [vmem:[#allocation3 + $0x758] sm:$0xff] %v2085
    %2527 = vst [vmem:[#allocation3 + $0x760] sm:$0xff] %v1554
    %2528 = vst [vmem:[#allocation3 + $0x768] sm:$0xff] %v1556
    %2529 = vst [vmem:[#allocation3 + $0x770] sm:$0xff] %v2087
    %2530 = vst [vmem:[#allocation3 + $0x778] sm:$0xff] %v2089
    %2531 = vst [vmem:[#allocation3 + $0x780] sm:$0xff] %v1560
    %2532 = vst [vmem:[#allocation3 + $0x788] sm:$0xff] %v1562
    %2533 = vst [vmem:[#allocation3 + $0x790] sm:$0xff] %v2093
    %2534 = vst [vmem:[#allocation3 + $0x798] sm:$0xff] %v2095
    %2535 = vst [vmem:[#allocation3 + $0x7a0] sm:$0xff] %v1564
    %2536 = vst [vmem:[#allocation3 + $0x7a8] sm:$0xff] %v1566
    %2537 = vst [vmem:[#allocation3 + $0x7b0] sm:$0xff] %v2097
    %2538 = vst [vmem:[#allocation3 + $0x7b8] sm:$0xff] %v2099
    %2539 = vst [vmem:[#allocation3 + $0x7c0] sm:$0xff] %v1570
    %2540 = vst [vmem:[#allocation3 + $0x7c8] sm:$0xff] %v1572
    %2541 = vst [vmem:[#allocation3 + $0x7d0] sm:$0xff] %v2103
    %2542 = vst [vmem:[#allocation3 + $0x7d8] sm:$0xff] %v2105
    %2543 = vst [vmem:[#allocation3 + $0x7e0] sm:$0xff] %v1574
    %2544 = vst [vmem:[#allocation3 + $0x7e8] sm:$0xff] %v1576
    %2545 = vst [vmem:[#allocation3 + $0x7f0] sm:$0xff] %v2107
    %2546 = vst [vmem:[#allocation3 + $0x7f8] sm:$0xff] %v2109
    %2547 = vst [vmem:[#allocation3 + $0x800] sm:$0xff] %v1580
    %2548 = vst [vmem:[#allocation3 + $0x808] sm:$0xff] %v1582
    %2549 = vst [vmem:[#allocation3 + $0x810] sm:$0xff] %v2113
    %2550 = vst [vmem:[#allocation3 + $0x818] sm:$0xff] %v2115
    %2551 = vst [vmem:[#allocation3 + $0x820] sm:$0xff] %v1584
    %2552 = vst [vmem:[#allocation3 + $0x828] sm:$0xff] %v1586
    %2553 = vst [vmem:[#allocation3 + $0x830] sm:$0xff] %v2117
    %2554 = vst [vmem:[#allocation3 + $0x838] sm:$0xff] %v2119
    %2555 = vst [vmem:[#allocation3 + $0x840] sm:$0xff] %v1590
    %2556 = vst [vmem:[#allocation3 + $0x848] sm:$0xff] %v1592
    %2557 = vst [vmem:[#allocation3 + $0x850] sm:$0xff] %v2123
    %2558 = vst [vmem:[#allocation3 + $0x858] sm:$0xff] %v2125
    %2559 = vst [vmem:[#allocation3 + $0x860] sm:$0xff] %v1594
    %2560 = vst [vmem:[#allocation3 + $0x868] sm:$0xff] %v1596
    %2561 = vst [vmem:[#allocation3 + $0x870] sm:$0xff] %v2127
    %2562 = vst [vmem:[#allocation3 + $0x878] sm:$0xff] %v2129
    %2563 = vst [vmem:[#allocation3 + $0x880] sm:$0xff] %v1600
    %2564 = vst [vmem:[#allocation3 + $0x888] sm:$0xff] %v1602
    %2565 = vst [vmem:[#allocation3 + $0x890] sm:$0xff] %v2133
    %2566 = vst [vmem:[#allocation3 + $0x898] sm:$0xff] %v2135
    %2567 = vst [vmem:[#allocation3 + $0x8a0] sm:$0xff] %v1604
    %2568 = vst [vmem:[#allocation3 + $0x8a8] sm:$0xff] %v1606
    %2569 = vst [vmem:[#allocation3 + $0x8b0] sm:$0xff] %v2137
    %2570 = vst [vmem:[#allocation3 + $0x8b8] sm:$0xff] %v2139
    %2571 = vst [vmem:[#allocation3 + $0x8c0] sm:$0xff] %v1610
    %2572 = vst [vmem:[#allocation3 + $0x8c8] sm:$0xff] %v1612
    %2573 = vst [vmem:[#allocation3 + $0x8d0] sm:$0xff] %v2143
    %2574 = vst [vmem:[#allocation3 + $0x8d8] sm:$0xff] %v2145
    %2575 = vst [vmem:[#allocation3 + $0x8e0] sm:$0xff] %v1614
    %2576 = vst [vmem:[#allocation3 + $0x8e8] sm:$0xff] %v1616
    %2577 = vst [vmem:[#allocation3 + $0x8f0] sm:$0xff] %v2147
    %2578 = vst [vmem:[#allocation3 + $0x8f8] sm:$0xff] %v2149
    %2579 = vst [vmem:[#allocation3 + $0x900] sm:$0xff] %v1620
    %2580 = vst [vmem:[#allocation3 + $0x908] sm:$0xff] %v1622
    %2581 = vst [vmem:[#allocation3 + $0x910] sm:$0xff] %v2153
    %2582 = vst [vmem:[#allocation3 + $0x918] sm:$0xff] %v2155
    %2583 = vst [vmem:[#allocation3 + $0x920] sm:$0xff] %v1624
    %2584 = vst [vmem:[#allocation3 + $0x928] sm:$0xff] %v1626
    %2585 = vst [vmem:[#allocation3 + $0x930] sm:$0xff] %v2157
    %2586 = vst [vmem:[#allocation3 + $0x938] sm:$0xff] %v2159
    %2587 = vst [vmem:[#allocation3 + $0x940] sm:$0xff] %v1630
    %2588 = vst [vmem:[#allocation3 + $0x948] sm:$0xff] %v1632
    %2589 = vst [vmem:[#allocation3 + $0x950] sm:$0xff] %v2163
    %2590 = vst [vmem:[#allocation3 + $0x958] sm:$0xff] %v2165
    %2591 = vst [vmem:[#allocation3 + $0x960] sm:$0xff] %v1634
    %2592 = vst [vmem:[#allocation3 + $0x968] sm:$0xff] %v1636
    %2593 = vst [vmem:[#allocation3 + $0x970] sm:$0xff] %v2167
    %2594 = vst [vmem:[#allocation3 + $0x978] sm:$0xff] %v2169
    %2595 = vst [vmem:[#allocation3 + $0x980] sm:$0xff] %v1640
    %2596 = vst [vmem:[#allocation3 + $0x988] sm:$0xff] %v1642
    %2597 = vst [vmem:[#allocation3 + $0x990] sm:$0xff] %v2173
    %2598 = vst [vmem:[#allocation3 + $0x998] sm:$0xff] %v2175
    %2599 = vst [vmem:[#allocation3 + $0x9a0] sm:$0xff] %v1644
    %2600 = vst [vmem:[#allocation3 + $0x9a8] sm:$0xff] %v1646
    %2601 = vst [vmem:[#allocation3 + $0x9b0] sm:$0xff] %v2177
    %2602 = vst [vmem:[#allocation3 + $0x9b8] sm:$0xff] %v2179
    %2603 = vst [vmem:[#allocation3 + $0x9c0] sm:$0xff] %v1650
    %2604 = vst [vmem:[#allocation3 + $0x9c8] sm:$0xff] %v1652
    %2605 = vst [vmem:[#allocation3 + $0x9d0] sm:$0xff] %v2183
    %2606 = vst [vmem:[#allocation3 + $0x9d8] sm:$0xff] %v2185
    %2607 = vst [vmem:[#allocation3 + $0x9e0] sm:$0xff] %v1654
    %2608 = vst [vmem:[#allocation3 + $0x9e8] sm:$0xff] %v1656
    %2609 = vst [vmem:[#allocation3 + $0x9f0] sm:$0xff] %v2187
    %2610 = vst [vmem:[#allocation3 + $0x9f8] sm:$0xff] %v2189
    %2611 = vst [vmem:[#allocation3 + $0xa00] sm:$0xff] %v1660
    %2612 = vst [vmem:[#allocation3 + $0xa08] sm:$0xff] %v1662
    %2613 = vst [vmem:[#allocation3 + $0xa10] sm:$0xff] %v2193
    %2614 = vst [vmem:[#allocation3 + $0xa18] sm:$0xff] %v2195
    %2615 = vst [vmem:[#allocation3 + $0xa20] sm:$0xff] %v1664
    %2616 = vst [vmem:[#allocation3 + $0xa28] sm:$0xff] %v1666
    %2617 = vst [vmem:[#allocation3 + $0xa30] sm:$0xff] %v2197
    %2618 = vst [vmem:[#allocation3 + $0xa38] sm:$0xff] %v2199
    %2619 = vst [vmem:[#allocation3 + $0xa40] sm:$0xff] %v1670
    %2620 = vst [vmem:[#allocation3 + $0xa48] sm:$0xff] %v1672
    %2621 = vst [vmem:[#allocation3 + $0xa50] sm:$0xff] %v2203
    %2622 = vst [vmem:[#allocation3 + $0xa58] sm:$0xff] %v2205
    %2623 = vst [vmem:[#allocation3 + $0xa60] sm:$0xff] %v1674
    %2624 = vst [vmem:[#allocation3 + $0xa68] sm:$0xff] %v1676
    %2625 = vst [vmem:[#allocation3 + $0xa70] sm:$0xff] %v2207
    %2626 = vst [vmem:[#allocation3 + $0xa78] sm:$0xff] %v2209
    %2627 = vst [vmem:[#allocation3 + $0xa80] sm:$0xff] %v1680
    %2628 = vst [vmem:[#allocation3 + $0xa88] sm:$0xff] %v1682
    %2629 = vst [vmem:[#allocation3 + $0xa90] sm:$0xff] %v2213
    %2630 = vst [vmem:[#allocation3 + $0xa98] sm:$0xff] %v2215
    %2631 = vst [vmem:[#allocation3 + $0xaa0] sm:$0xff] %v1684
    %2632 = vst [vmem:[#allocation3 + $0xaa8] sm:$0xff] %v1686
    %2633 = vst [vmem:[#allocation3 + $0xab0] sm:$0xff] %v2217
    %2634 = vst [vmem:[#allocation3 + $0xab8] sm:$0xff] %v2219
    %2635 = vst [vmem:[#allocation3 + $0xac0] sm:$0xff] %v1690
    %2636 = vst [vmem:[#allocation3 + $0xac8] sm:$0xff] %v1692
    %2637 = vst [vmem:[#allocation3 + $0xad0] sm:$0xff] %v2223
    %2638 = vst [vmem:[#allocation3 + $0xad8] sm:$0xff] %v2225
    %2639 = vst [vmem:[#allocation3 + $0xae0] sm:$0xff] %v1694
    %2640 = vst [vmem:[#allocation3 + $0xae8] sm:$0xff] %v1696
    %2641 = vst [vmem:[#allocation3 + $0xaf0] sm:$0xff] %v2227
    %2642 = vst [vmem:[#allocation3 + $0xaf8] sm:$0xff] %v2229
    %2643 = vst [vmem:[#allocation3 + $0xb00] sm:$0xff] %v1700
    %2644 = vst [vmem:[#allocation3 + $0xb08] sm:$0xff] %v1702
    %2645 = vst [vmem:[#allocation3 + $0xb10] sm:$0xff] %v2233
    %2646 = vst [vmem:[#allocation3 + $0xb18] sm:$0xff] %v2235
    %2647 = vst [vmem:[#allocation3 + $0xb20] sm:$0xff] %v1704
    %2648 = vst [vmem:[#allocation3 + $0xb28] sm:$0xff] %v1706
    %2649 = vst [vmem:[#allocation3 + $0xb30] sm:$0xff] %v2237
    %2650 = vst [vmem:[#allocation3 + $0xb38] sm:$0xff] %v2239
    %2651 = vst [vmem:[#allocation3 + $0xb40] sm:$0xff] %v1710
    %2652 = vst [vmem:[#allocation3 + $0xb48] sm:$0xff] %v1712
    %2653 = vst [vmem:[#allocation3 + $0xb50] sm:$0xff] %v2243
    %2654 = vst [vmem:[#allocation3 + $0xb58] sm:$0xff] %v2245
    %2655 = vst [vmem:[#allocation3 + $0xb60] sm:$0xff] %v1714
    %2656 = vst [vmem:[#allocation3 + $0xb68] sm:$0xff] %v1716
    %2657 = vst [vmem:[#allocation3 + $0xb70] sm:$0xff] %v2247
    %2658 = vst [vmem:[#allocation3 + $0xb78] sm:$0xff] %v2249
    %2659 = vst [vmem:[#allocation3 + $0xb80] sm:$0xff] %v1720
    %2660 = vst [vmem:[#allocation3 + $0xb88] sm:$0xff] %v1722
    %2661 = vst [vmem:[#allocation3 + $0xb90] sm:$0xff] %v2253
    %2662 = vst [vmem:[#allocation3 + $0xb98] sm:$0xff] %v2255
    %2663 = vst [vmem:[#allocation3 + $0xba0] sm:$0xff] %v1724
    %2664 = vst [vmem:[#allocation3 + $0xba8] sm:$0xff] %v1726
    %2665 = vst [vmem:[#allocation3 + $0xbb0] sm:$0xff] %v2257
    %2666 = vst [vmem:[#allocation3 + $0xbb8] sm:$0xff] %v2259
    %2667 = vst [vmem:[#allocation3 + $0xbc0] sm:$0xff] %v1730
    %2668 = vst [vmem:[#allocation3 + $0xbc8] sm:$0xff] %v1732
    %2669 = vst [vmem:[#allocation3 + $0xbd0] sm:$0xff] %v2263
    %2670 = vst [vmem:[#allocation3 + $0xbd8] sm:$0xff] %v2265
    %2671 = vst [vmem:[#allocation3 + $0xbe0] sm:$0xff] %v1734
    %2672 = vst [vmem:[#allocation3 + $0xbe8] sm:$0xff] %v1736
    %2673 = vst [vmem:[#allocation3 + $0xbf0] sm:$0xff] %v2267
    %2674 = vst [vmem:[#allocation3 + $0xbf8] sm:$0xff] %v2269
    %2675 = vst [vmem:[#allocation3 + $0xc00] sm:$0xff] %v1740
    %2676 = vst [vmem:[#allocation3 + $0xc08] sm:$0xff] %v1742
    %2677 = vst [vmem:[#allocation3 + $0xc10] sm:$0xff] %v2273
    %2678 = vst [vmem:[#allocation3 + $0xc18] sm:$0xff] %v2275
    %2679 = vst [vmem:[#allocation3 + $0xc20] sm:$0xff] %v1744
    %2680 = vst [vmem:[#allocation3 + $0xc28] sm:$0xff] %v1746
    %2681 = vst [vmem:[#allocation3 + $0xc30] sm:$0xff] %v2277
    %2682 = vst [vmem:[#allocation3 + $0xc38] sm:$0xff] %v2279
    %2683 = vst [vmem:[#allocation3 + $0xc40] sm:$0xff] %v1750
    %2684 = vst [vmem:[#allocation3 + $0xc48] sm:$0xff] %v1752
    %2685 = vst [vmem:[#allocation3 + $0xc50] sm:$0xff] %v2283
    %2686 = vst [vmem:[#allocation3 + $0xc58] sm:$0xff] %v2285
    %2687 = vst [vmem:[#allocation3 + $0xc60] sm:$0xff] %v1754
    %2688 = vst [vmem:[#allocation3 + $0xc68] sm:$0xff] %v1756
    %2689 = vst [vmem:[#allocation3 + $0xc70] sm:$0xff] %v2287
    %2690 = vst [vmem:[#allocation3 + $0xc78] sm:$0xff] %v2289
    loop: start=0, step=1, limit=16
    $region50: #{loung_nmt_forward.1} parent=1 // loop_pre_header
      _
    $region51: #{loung_nmt_forward.1} parent=1 // loop_header
      %s2692 = sphi 0, %s2696
      %p2693 = scmp.ge.s32.totalorder %s2692, 16
      %v2697 = vphi 0.0, %v3011
      %v2698 = vphi 0.0, %v3009
    $region52: #{loung_nmt_forward.1} parent=1 // loop_header_branch
      %2695 = sbr.rel (%p2693) target = $region56
    $region53: #{loung_nmt_forward.1} parent=1 // loop_body
      %s2699 = smul.u32 %s2692, 8
      %s2700 = sshra.s32 %s2699, 3
      %s2701 = sand.u32 %s2699, 7
      %s2702 = smul.u32 %s2700, 4
      %s2703 = smul.addr %s2702, 8
      %s2704 = scalar_lea.vmem [#allocation2], %s2703
      %v2705 = vld [vmem:[%s2704] sm:$0xff]
      %v2706 = vld [vmem:[%s2704 + $0x8] sm:$0xff]
      %v2707 = vld [vmem:[%s2704 + $0x10] sm:$0xff]
      %v2708 = vld [vmem:[%s2704 + $0x18] sm:$0xff]
      %v2709 = vpack.c.bf16 %v2697, %v2697
      %v2710 = vld [vmem:[%s4] sm:$0xff]
      %v2711 = vld [vmem:[%s4 + $0x8] sm:$0xff]
      %v2712 = vld [vmem:[%s4 + $0x10] sm:$0xff]
      %v2713 = vld [vmem:[%s4 + $0x18] sm:$0xff]
      %v2714 = vld [vmem:[%s4 + $0x20] sm:$0xff]
      %v2715 = vld [vmem:[%s4 + $0x28] sm:$0xff]
      %v2716 = vld [vmem:[%s4 + $0x30] sm:$0xff]
      %v2717 = vld [vmem:[%s4 + $0x38] sm:$0xff]
      %v2718 = vld [vmem:[%s4 + $0x40] sm:$0xff]
      %v2719 = vld [vmem:[%s4 + $0x48] sm:$0xff]
      %v2720 = vld [vmem:[%s4 + $0x50] sm:$0xff]
      %v2721 = vld [vmem:[%s4 + $0x58] sm:$0xff]
      %v2722 = vld [vmem:[%s4 + $0x60] sm:$0xff]
      %v2723 = vld [vmem:[%s4 + $0x68] sm:$0xff]
      %v2724 = vld [vmem:[%s4 + $0x70] sm:$0xff]
      %v2725 = vld [vmem:[%s4 + $0x78] sm:$0xff]
      %v2726 = vld [vmem:[%s4 + $0x80] sm:$0xff]
      %v2727 = vld [vmem:[%s4 + $0x88] sm:$0xff]
      %v2728 = vld [vmem:[%s4 + $0x90] sm:$0xff]
      %v2729 = vld [vmem:[%s4 + $0x98] sm:$0xff]
      %v2730 = vld [vmem:[%s4 + $0xa0] sm:$0xff]
      %v2731 = vld [vmem:[%s4 + $0xa8] sm:$0xff]
      %v2732 = vld [vmem:[%s4 + $0xb0] sm:$0xff]
      %v2733 = vld [vmem:[%s4 + $0xb8] sm:$0xff]
      %v2734 = vld [vmem:[%s4 + $0xc0] sm:$0xff]
      %v2735 = vld [vmem:[%s4 + $0xc8] sm:$0xff]
      %v2736 = vld [vmem:[%s4 + $0xd0] sm:$0xff]
      %v2737 = vld [vmem:[%s4 + $0xd8] sm:$0xff]
      %v2738 = vld [vmem:[%s4 + $0xe0] sm:$0xff]
      %v2739 = vld [vmem:[%s4 + $0xe8] sm:$0xff]
      %v2740 = vld [vmem:[%s4 + $0xf0] sm:$0xff]
      %v2741 = vld [vmem:[%s4 + $0xf8] sm:$0xff]
      %v2774 = vunpack.c.l.b16 %v2710
      %v2775 = vunpack.c.h.b16 %v2710
      %v2776 = vunpack.c.l.b16 %v2711
      %v2777 = vunpack.c.h.b16 %v2711
      %v2778 = vunpack.c.l.b16 %v2712
      %v2779 = vunpack.c.h.b16 %v2712
      %v2780 = vunpack.c.l.b16 %v2713
      %v2781 = vunpack.c.h.b16 %v2713
      %v2782 = vunpack.c.l.b16 %v2714
      %v2783 = vunpack.c.h.b16 %v2714
      %v2784 = vunpack.c.l.b16 %v2715
      %v2785 = vunpack.c.h.b16 %v2715
      %v2786 = vunpack.c.l.b16 %v2716
      %v2787 = vunpack.c.h.b16 %v2716
      %v2788 = vunpack.c.l.b16 %v2717
      %v2789 = vunpack.c.h.b16 %v2717
      %v2790 = vunpack.c.l.b16 %v2718
      %v2791 = vunpack.c.h.b16 %v2718
      %v2792 = vunpack.c.l.b16 %v2719
      %v2793 = vunpack.c.h.b16 %v2719
      %v2794 = vunpack.c.l.b16 %v2720
      %v2795 = vunpack.c.h.b16 %v2720
      %v2796 = vunpack.c.l.b16 %v2721
      %v2797 = vunpack.c.h.b16 %v2721
      %v2798 = vunpack.c.l.b16 %v2722
      %v2799 = vunpack.c.h.b16 %v2722
      %v2800 = vunpack.c.l.b16 %v2723
      %v2801 = vunpack.c.h.b16 %v2723
      %v2802 = vunpack.c.l.b16 %v2724
      %v2803 = vunpack.c.h.b16 %v2724
      %v2804 = vunpack.c.l.b16 %v2725
      %v2805 = vunpack.c.h.b16 %v2725
      %v2806 = vunpack.c.l.b16 %v2726
      %v2807 = vunpack.c.h.b16 %v2726
      %v2808 = vunpack.c.l.b16 %v2727
      %v2809 = vunpack.c.h.b16 %v2727
      %v2810 = vunpack.c.l.b16 %v2728
      %v2811 = vunpack.c.h.b16 %v2728
      %v2812 = vunpack.c.l.b16 %v2729
      %v2813 = vunpack.c.h.b16 %v2729
      %v2814 = vunpack.c.l.b16 %v2730
      %v2815 = vunpack.c.h.b16 %v2730
      %v2816 = vunpack.c.l.b16 %v2731
      %v2817 = vunpack.c.h.b16 %v2731
      %v2818 = vunpack.c.l.b16 %v2732
      %v2819 = vunpack.c.h.b16 %v2732
      %v2820 = vunpack.c.l.b16 %v2733
      %v2821 = vunpack.c.h.b16 %v2733
      %v2822 = vunpack.c.l.b16 %v2734
      %v2823 = vunpack.c.h.b16 %v2734
      %v2824 = vunpack.c.l.b16 %v2735
      %v2825 = vunpack.c.h.b16 %v2735
      %v2826 = vunpack.c.l.b16 %v2736
      %v2827 = vunpack.c.h.b16 %v2736
      %v2828 = vunpack.c.l.b16 %v2737
      %v2829 = vunpack.c.h.b16 %v2737
      %v2830 = vunpack.c.l.b16 %v2738
      %v2831 = vunpack.c.h.b16 %v2738
      %v2832 = vunpack.c.l.b16 %v2739
      %v2833 = vunpack.c.h.b16 %v2739
      %v2834 = vunpack.c.l.b16 %v2740
      %v2835 = vunpack.c.h.b16 %v2740
      %v2836 = vunpack.c.l.b16 %v2741
      %v2837 = vunpack.c.h.b16 %v2741
      %v2838 = vpack.c.b16 %v2778, %v2774
      %v2839 = vpack.c.b16 %v2779, %v2775
      %v2840 = vpack.c.b16 %v2780, %v2776
      %v2841 = vpack.c.b16 %v2781, %v2777
      %v2842 = vpack.c.b16 %v2786, %v2782
      %v2843 = vpack.c.b16 %v2787, %v2783
      %v2844 = vpack.c.b16 %v2788, %v2784
      %v2845 = vpack.c.b16 %v2789, %v2785
      %v2846 = vpack.c.b16 %v2794, %v2790
      %v2847 = vpack.c.b16 %v2795, %v2791
      %v2848 = vpack.c.b16 %v2796, %v2792
      %v2849 = vpack.c.b16 %v2797, %v2793
      %v2850 = vpack.c.b16 %v2802, %v2798
      %v2851 = vpack.c.b16 %v2803, %v2799
      %v2852 = vpack.c.b16 %v2804, %v2800
      %v2853 = vpack.c.b16 %v2805, %v2801
      %v2854 = vpack.c.b16 %v2810, %v2806
      %v2855 = vpack.c.b16 %v2811, %v2807
      %v2856 = vpack.c.b16 %v2812, %v2808
      %v2857 = vpack.c.b16 %v2813, %v2809
      %v2858 = vpack.c.b16 %v2818, %v2814
      %v2859 = vpack.c.b16 %v2819, %v2815
      %v2860 = vpack.c.b16 %v2820, %v2816
      %v2861 = vpack.c.b16 %v2821, %v2817
      %v2862 = vpack.c.b16 %v2826, %v2822
      %v2863 = vpack.c.b16 %v2827, %v2823
      %v2864 = vpack.c.b16 %v2828, %v2824
      %v2865 = vpack.c.b16 %v2829, %v2825
      %v2866 = vpack.c.b16 %v2834, %v2830
      %v2867 = vpack.c.b16 %v2835, %v2831
      %v2868 = vpack.c.b16 %v2836, %v2832
      %v2869 = vpack.c.b16 %v2837, %v2833
      %2902 = vmatprep.subr.bf16.mxu0 %v2867
      %2903 = vmatpush1.bf16.msra.mxu0 %v2866
      %2904 = vmatprep.subr.bf16.mxu0 %v2863
      %2905 = vmatpush1.bf16.msra.mxu0 %v2862
      %2906 = vmatprep.subr.bf16.mxu0 %v2859
      %2907 = vmatpush1.bf16.msra.mxu0 %v2858
      %2908 = vmatprep.subr.bf16.mxu0 %v2855
      %2909 = vmatpush1.bf16.msra.mxu0 %v2854
      %2910 = vmatprep.subr.bf16.mxu0 %v2851
      %2911 = vmatpush1.bf16.msra.mxu0 %v2850
      %2912 = vmatprep.subr.bf16.mxu0 %v2847
      %2913 = vmatpush1.bf16.msra.mxu0 %v2846
      %2914 = vmatprep.subr.bf16.mxu0 %v2843
      %2915 = vmatpush1.bf16.msra.mxu0 %v2842
      %2916 = vmatprep.subr.bf16.mxu0 %v2839
      %2917 = vmatpush1.bf16.msra.mxu0 %v2838
      %2918 = vmatprep.subr.bf16.mxu0 0
      %2919 = vmatpush2.bf16.msra.mxu0 0
      %2920 = vmatprep.subr.bf16.mxu0 0
      %2921 = vmatpush2.bf16.msra.mxu0 0
      %2922 = vmatprep.subr.bf16.mxu0 0
      %2923 = vmatpush2.bf16.msra.mxu0 0
      %2924 = vmatprep.subr.bf16.mxu0 0
      %2925 = vmatpush2.bf16.msra.mxu0 0
      %2926 = vmatprep.subr.bf16.mxu0 0
      %2927 = vmatpush2.bf16.msra.mxu0 0
      %2928 = vmatprep.subr.bf16.mxu0 0
      %2929 = vmatpush2.bf16.msra.mxu0 0
      %2930 = vmatprep.subr.bf16.mxu0 0
      %2931 = vmatpush2.bf16.msra.mxu0 0
      %2932 = vmatprep.subr.bf16.mxu0 0
      %2933 = vmatpush2.bf16.msra.mxu0 0
      %2934 = vmatprep.mubr.bf16.mxu0 0
      %2935 = vmatmul.mubr.bf16.gmra.mxu0 %v2709
      %v2936 = vpop.f32.mrf.mxu0
      %v2937 = vadd.f32 0.0, %v2936
      %v2938 = vpop.f32.mrf.mxu0
      %v2939 = vadd.f32 0.0, %v2938
      %v2940 = vpop.f32.mrf.mxu0
      %v2941 = vpop.f32.mrf.mxu0
      %2942 = vdwg.mxu0
      %2943 = vmatprep.subr.bf16.mxu0 %v2869
      %2944 = vmatpush1.bf16.msra.mxu0 %v2868
      %2945 = vmatprep.subr.bf16.mxu0 %v2865
      %2946 = vmatpush1.bf16.msra.mxu0 %v2864
      %2947 = vmatprep.subr.bf16.mxu0 %v2861
      %2948 = vmatpush1.bf16.msra.mxu0 %v2860
      %2949 = vmatprep.subr.bf16.mxu0 %v2857
      %2950 = vmatpush1.bf16.msra.mxu0 %v2856
      %2951 = vmatprep.subr.bf16.mxu0 %v2853
      %2952 = vmatpush1.bf16.msra.mxu0 %v2852
      %2953 = vmatprep.subr.bf16.mxu0 %v2849
      %2954 = vmatpush1.bf16.msra.mxu0 %v2848
      %2955 = vmatprep.subr.bf16.mxu0 %v2845
      %2956 = vmatpush1.bf16.msra.mxu0 %v2844
      %2957 = vmatprep.subr.bf16.mxu0 %v2841
      %2958 = vmatpush1.bf16.msra.mxu0 %v2840
      %2959 = vmatprep.subr.bf16.mxu0 0
      %2960 = vmatpush2.bf16.msra.mxu0 0
      %2961 = vmatprep.subr.bf16.mxu0 0
      %2962 = vmatpush2.bf16.msra.mxu0 0
      %2963 = vmatprep.subr.bf16.mxu0 0
      %2964 = vmatpush2.bf16.msra.mxu0 0
      %2965 = vmatprep.subr.bf16.mxu0 0
      %2966 = vmatpush2.bf16.msra.mxu0 0
      %2967 = vmatprep.subr.bf16.mxu0 0
      %2968 = vmatpush2.bf16.msra.mxu0 0
      %2969 = vmatprep.subr.bf16.mxu0 0
      %2970 = vmatpush2.bf16.msra.mxu0 0
      %2971 = vmatprep.subr.bf16.mxu0 0
      %2972 = vmatpush2.bf16.msra.mxu0 0
      %2973 = vmatprep.subr.bf16.mxu0 0
      %2974 = vmatpush2.bf16.msra.mxu0 0
      %2975 = vmatprep.mubr.bf16.mxu0 0
      %2976 = vmatmul.mubr.bf16.gmra.mxu0 %v2709
      %v2977 = vpop.f32.mrf.mxu0
      %v2978 = vadd.f32 0.0, %v2977
      %v2979 = vpop.f32.mrf.mxu0
      %v2980 = vadd.f32 0.0, %v2979
      %v2981 = vpop.f32.mrf.mxu0
      %v2982 = vpop.f32.mrf.mxu0
      %2983 = vdwg.mxu0
      %v2984 = vadd.f32 %v2705, %v2937
      %v2985 = vadd.f32 %v2706, %v2939
      %v2986 = vadd.f32 %v2707, %v2978
      %v2987 = vadd.f32 %v2708, %v2980
      %v2988 = vxor.u32 %v2984, 2147483648
      %v2989 = vmul.f32 %v2988, 1.442695
      %v2990 = vpow.pop %v2989
      %v2991 = vadd.f32 %v2990, 1.0
      %v2992 = vrcp.pop %v2991
      %v2993 = vmul.f32 1.0, %v2992
      %v2994 = vxor.u32 %v2985, 2147483648
      %v2995 = vmul.f32 %v2994, 1.442695
      %v2996 = vpow.pop %v2995
      %v2997 = vadd.f32 %v2996, 1.0
      %v2998 = vrcp.pop %v2997
      %v2999 = vmul.f32 1.0, %v2998
      %v3000 = vtanh.pop %v2986
      %v3001 = vxor.u32 %v2987, 2147483648
      %v3002 = vmul.f32 %v3001, 1.442695
      %v3003 = vpow.pop %v3002
      %v3004 = vadd.f32 %v3003, 1.0
      %v3005 = vrcp.pop %v3004
      %v3006 = vmul.f32 1.0, %v3005
      %v3007 = vmul.f32 %v2999, %v2698
      %v3008 = vmul.f32 %v2993, %v3000
      %v3009 = vadd.f32 %v3007, %v3008
      %v3010 = vtanh.pop %v3009
      %v3011 = vmul.f32 %v3006, %v3010
      %s3012 = scalar_lea.vmem [#allocation4], %s2699
      %3013 = vst [vmem:[%s3012] sm:$0xff] %v3011
    $region54: #{loung_nmt_forward.1} parent=1 // loop_footer
      %s2696 = sadd.s32 1, %s2692
    $region55: #{loung_nmt_forward.1} parent=1 // loop_footer_branch
      %2691 = sbr.rel target = $region51
    $region56: #{loung_nmt_forward.1} parent=1 // loop_exit
      _
    %v3014 = vld [vmem:[#allocation4] sm:$0xff]
    %v3015 = vld [vmem:[#allocation4 + $0x8] sm:$0xff]
    %v3016 = vld [vmem:[#allocation4 + $0x10] sm:$0xff]
    %v3017 = vld [vmem:[#allocation4 + $0x18] sm:$0xff]
    %v3018 = vld [vmem:[#allocation4 + $0x20] sm:$0xff]
    %v3019 = vld [vmem:[#allocation4 + $0x28] sm:$0xff]
    %v3020 = vld [vmem:[#allocation4 + $0x30] sm:$0xff]
    %v3021 = vld [vmem:[#allocation4 + $0x38] sm:$0xff]
    %v3022 = vld [vmem:[#allocation4 + $0x40] sm:$0xff]
    %v3023 = vld [vmem:[#allocation4 + $0x48] sm:$0xff]
    %v3024 = vld [vmem:[#allocation4 + $0x50] sm:$0xff]
    %v3025 = vld [vmem:[#allocation4 + $0x58] sm:$0xff]
    %v3026 = vld [vmem:[#allocation4 + $0x60] sm:$0xff]
    %v3027 = vld [vmem:[#allocation4 + $0x68] sm:$0xff]
    %v3028 = vld [vmem:[#allocation4 + $0x70] sm:$0xff]
    %v3029 = vld [vmem:[#allocation4 + $0x78] sm:$0xff]
    loop: start=0, step=1, limit=100
    $region57: #{loung_nmt_forward.1} parent=1 // loop_pre_header
      _
    $region58: #{loung_nmt_forward.1} parent=1 // loop_header
      %s3031 = sphi 0, %s3035
      %p3032 = scmp.ge.s32.totalorder %s3031, 100
      %v3036 = vphi %v2697, %v3544
      %v3037 = vphi %v2698, %v3542
      %v3038 = vphi %v2697, %v3896
    $region59: #{loung_nmt_forward.1} parent=1 // loop_header_branch
      %3034 = sbr.rel (%p3032) target = $region63
    $region60: #{loung_nmt_forward.1} parent=1 // loop_body
      %s3039 = smul.u32 %s3031, 8
      %v3040 = vpack.c.bf16 %v3038, %v3038
      %v3041 = vpack.c.bf16 %v3036, %v3036
      %s3042 = sshra.s32 %s3039, 3
      %s3043 = sand.u32 %s3039, 7
      %s3044 = smul.u32 %s3042, 4
      %s3045 = smul.addr %s3044, 8
      %s3046 = scalar_lea.vmem [#allocation3], %s3045
      %v3047 = vld [vmem:[%s3046] sm:$0xff]
      %v3048 = vld [vmem:[%s3046 + $0x8] sm:$0xff]
      %v3049 = vld [vmem:[%s3046 + $0x10] sm:$0xff]
      %v3050 = vld [vmem:[%s3046 + $0x18] sm:$0xff]
      %v3051 = vld [vmem:[%s7] sm:$0xff]
      %v3052 = vld [vmem:[%s7 + $0x8] sm:$0xff]
      %v3053 = vld [vmem:[%s7 + $0x10] sm:$0xff]
      %v3054 = vld [vmem:[%s7 + $0x18] sm:$0xff]
      %v3055 = vld [vmem:[%s7 + $0x20] sm:$0xff]
      %v3056 = vld [vmem:[%s7 + $0x28] sm:$0xff]
      %v3057 = vld [vmem:[%s7 + $0x30] sm:$0xff]
      %v3058 = vld [vmem:[%s7 + $0x38] sm:$0xff]
      %v3059 = vld [vmem:[%s7 + $0x40] sm:$0xff]
      %v3060 = vld [vmem:[%s7 + $0x48] sm:$0xff]
      %v3061 = vld [vmem:[%s7 + $0x50] sm:$0xff]
      %v3062 = vld [vmem:[%s7 + $0x58] sm:$0xff]
      %v3063 = vld [vmem:[%s7 + $0x60] sm:$0xff]
      %v3064 = vld [vmem:[%s7 + $0x68] sm:$0xff]
      %v3065 = vld [vmem:[%s7 + $0x70] sm:$0xff]
      %v3066 = vld [vmem:[%s7 + $0x78] sm:$0xff]
      %v3067 = vld [vmem:[%s7 + $0x80] sm:$0xff]
      %v3068 = vld [vmem:[%s7 + $0x88] sm:$0xff]
      %v3069 = vld [vmem:[%s7 + $0x90] sm:$0xff]
      %v3070 = vld [vmem:[%s7 + $0x98] sm:$0xff]
      %v3071 = vld [vmem:[%s7 + $0xa0] sm:$0xff]
      %v3072 = vld [vmem:[%s7 + $0xa8] sm:$0xff]
      %v3073 = vld [vmem:[%s7 + $0xb0] sm:$0xff]
      %v3074 = vld [vmem:[%s7 + $0xb8] sm:$0xff]
      %v3075 = vld [vmem:[%s7 + $0xc0] sm:$0xff]
      %v3076 = vld [vmem:[%s7 + $0xc8] sm:$0xff]
      %v3077 = vld [vmem:[%s7 + $0xd0] sm:$0xff]
      %v3078 = vld [vmem:[%s7 + $0xd8] sm:$0xff]
      %v3079 = vld [vmem:[%s7 + $0xe0] sm:$0xff]
      %v3080 = vld [vmem:[%s7 + $0xe8] sm:$0xff]
      %v3081 = vld [vmem:[%s7 + $0xf0] sm:$0xff]
      %v3082 = vld [vmem:[%s7 + $0xf8] sm:$0xff]
      %v3083 = vld [vmem:[%s7 + $0x100] sm:$0xff]
      %v3084 = vld [vmem:[%s7 + $0x108] sm:$0xff]
      %v3085 = vld [vmem:[%s7 + $0x110] sm:$0xff]
      %v3086 = vld [vmem:[%s7 + $0x118] sm:$0xff]
      %v3087 = vld [vmem:[%s7 + $0x120] sm:$0xff]
      %v3088 = vld [vmem:[%s7 + $0x128] sm:$0xff]
      %v3089 = vld [vmem:[%s7 + $0x130] sm:$0xff]
      %v3090 = vld [vmem:[%s7 + $0x138] sm:$0xff]
      %v3091 = vld [vmem:[%s7 + $0x140] sm:$0xff]
      %v3092 = vld [vmem:[%s7 + $0x148] sm:$0xff]
      %v3093 = vld [vmem:[%s7 + $0x150] sm:$0xff]
      %v3094 = vld [vmem:[%s7 + $0x158] sm:$0xff]
      %v3095 = vld [vmem:[%s7 + $0x160] sm:$0xff]
      %v3096 = vld [vmem:[%s7 + $0x168] sm:$0xff]
      %v3097 = vld [vmem:[%s7 + $0x170] sm:$0xff]
      %v3098 = vld [vmem:[%s7 + $0x178] sm:$0xff]
      %v3099 = vld [vmem:[%s7 + $0x180] sm:$0xff]
      %v3100 = vld [vmem:[%s7 + $0x188] sm:$0xff]
      %v3101 = vld [vmem:[%s7 + $0x190] sm:$0xff]
      %v3102 = vld [vmem:[%s7 + $0x198] sm:$0xff]
      %v3103 = vld [vmem:[%s7 + $0x1a0] sm:$0xff]
      %v3104 = vld [vmem:[%s7 + $0x1a8] sm:$0xff]
      %v3105 = vld [vmem:[%s7 + $0x1b0] sm:$0xff]
      %v3106 = vld [vmem:[%s7 + $0x1b8] sm:$0xff]
      %v3107 = vld [vmem:[%s7 + $0x1c0] sm:$0xff]
      %v3108 = vld [vmem:[%s7 + $0x1c8] sm:$0xff]
      %v3109 = vld [vmem:[%s7 + $0x1d0] sm:$0xff]
      %v3110 = vld [vmem:[%s7 + $0x1d8] sm:$0xff]
      %v3111 = vld [vmem:[%s7 + $0x1e0] sm:$0xff]
      %v3112 = vld [vmem:[%s7 + $0x1e8] sm:$0xff]
      %v3113 = vld [vmem:[%s7 + $0x1f0] sm:$0xff]
      %v3114 = vld [vmem:[%s7 + $0x1f8] sm:$0xff]
      %v3179 = vunpack.c.l.b16 %v3051
      %v3180 = vunpack.c.h.b16 %v3051
      %v3181 = vunpack.c.l.b16 %v3052
      %v3182 = vunpack.c.h.b16 %v3052
      %v3183 = vunpack.c.l.b16 %v3053
      %v3184 = vunpack.c.h.b16 %v3053
      %v3185 = vunpack.c.l.b16 %v3054
      %v3186 = vunpack.c.h.b16 %v3054
      %v3187 = vunpack.c.l.b16 %v3055
      %v3188 = vunpack.c.h.b16 %v3055
      %v3189 = vunpack.c.l.b16 %v3056
      %v3190 = vunpack.c.h.b16 %v3056
      %v3191 = vunpack.c.l.b16 %v3057
      %v3192 = vunpack.c.h.b16 %v3057
      %v3193 = vunpack.c.l.b16 %v3058
      %v3194 = vunpack.c.h.b16 %v3058
      %v3195 = vunpack.c.l.b16 %v3059
      %v3196 = vunpack.c.h.b16 %v3059
      %v3197 = vunpack.c.l.b16 %v3060
      %v3198 = vunpack.c.h.b16 %v3060
      %v3199 = vunpack.c.l.b16 %v3061
      %v3200 = vunpack.c.h.b16 %v3061
      %v3201 = vunpack.c.l.b16 %v3062
      %v3202 = vunpack.c.h.b16 %v3062
      %v3203 = vunpack.c.l.b16 %v3063
      %v3204 = vunpack.c.h.b16 %v3063
      %v3205 = vunpack.c.l.b16 %v3064
      %v3206 = vunpack.c.h.b16 %v3064
      %v3207 = vunpack.c.l.b16 %v3065
      %v3208 = vunpack.c.h.b16 %v3065
      %v3209 = vunpack.c.l.b16 %v3066
      %v3210 = vunpack.c.h.b16 %v3066
      %v3211 = vunpack.c.l.b16 %v3067
      %v3212 = vunpack.c.h.b16 %v3067
      %v3213 = vunpack.c.l.b16 %v3068
      %v3214 = vunpack.c.h.b16 %v3068
      %v3215 = vunpack.c.l.b16 %v3069
      %v3216 = vunpack.c.h.b16 %v3069
      %v3217 = vunpack.c.l.b16 %v3070
      %v3218 = vunpack.c.h.b16 %v3070
      %v3219 = vunpack.c.l.b16 %v3071
      %v3220 = vunpack.c.h.b16 %v3071
      %v3221 = vunpack.c.l.b16 %v3072
      %v3222 = vunpack.c.h.b16 %v3072
      %v3223 = vunpack.c.l.b16 %v3073
      %v3224 = vunpack.c.h.b16 %v3073
      %v3225 = vunpack.c.l.b16 %v3074
      %v3226 = vunpack.c.h.b16 %v3074
      %v3227 = vunpack.c.l.b16 %v3075
      %v3228 = vunpack.c.h.b16 %v3075
      %v3229 = vunpack.c.l.b16 %v3076
      %v3230 = vunpack.c.h.b16 %v3076
      %v3231 = vunpack.c.l.b16 %v3077
      %v3232 = vunpack.c.h.b16 %v3077
      %v3233 = vunpack.c.l.b16 %v3078
      %v3234 = vunpack.c.h.b16 %v3078
      %v3235 = vunpack.c.l.b16 %v3079
      %v3236 = vunpack.c.h.b16 %v3079
      %v3237 = vunpack.c.l.b16 %v3080
      %v3238 = vunpack.c.h.b16 %v3080
      %v3239 = vunpack.c.l.b16 %v3081
      %v3240 = vunpack.c.h.b16 %v3081
      %v3241 = vunpack.c.l.b16 %v3082
      %v3242 = vunpack.c.h.b16 %v3082
      %v3243 = vunpack.c.l.b16 %v3083
      %v3244 = vunpack.c.h.b16 %v3083
      %v3245 = vunpack.c.l.b16 %v3084
      %v3246 = vunpack.c.h.b16 %v3084
      %v3247 = vunpack.c.l.b16 %v3085
      %v3248 = vunpack.c.h.b16 %v3085
      %v3249 = vunpack.c.l.b16 %v3086
      %v3250 = vunpack.c.h.b16 %v3086
      %v3251 = vunpack.c.l.b16 %v3087
      %v3252 = vunpack.c.h.b16 %v3087
      %v3253 = vunpack.c.l.b16 %v3088
      %v3254 = vunpack.c.h.b16 %v3088
      %v3255 = vunpack.c.l.b16 %v3089
      %v3256 = vunpack.c.h.b16 %v3089
      %v3257 = vunpack.c.l.b16 %v3090
      %v3258 = vunpack.c.h.b16 %v3090
      %v3259 = vunpack.c.l.b16 %v3091
      %v3260 = vunpack.c.h.b16 %v3091
      %v3261 = vunpack.c.l.b16 %v3092
      %v3262 = vunpack.c.h.b16 %v3092
      %v3263 = vunpack.c.l.b16 %v3093
      %v3264 = vunpack.c.h.b16 %v3093
      %v3265 = vunpack.c.l.b16 %v3094
      %v3266 = vunpack.c.h.b16 %v3094
      %v3267 = vunpack.c.l.b16 %v3095
      %v3268 = vunpack.c.h.b16 %v3095
      %v3269 = vunpack.c.l.b16 %v3096
      %v3270 = vunpack.c.h.b16 %v3096
      %v3271 = vunpack.c.l.b16 %v3097
      %v3272 = vunpack.c.h.b16 %v3097
      %v3273 = vunpack.c.l.b16 %v3098
      %v3274 = vunpack.c.h.b16 %v3098
      %v3275 = vunpack.c.l.b16 %v3099
      %v3276 = vunpack.c.h.b16 %v3099
      %v3277 = vunpack.c.l.b16 %v3100
      %v3278 = vunpack.c.h.b16 %v3100
      %v3279 = vunpack.c.l.b16 %v3101
      %v3280 = vunpack.c.h.b16 %v3101
      %v3281 = vunpack.c.l.b16 %v3102
      %v3282 = vunpack.c.h.b16 %v3102
      %v3283 = vunpack.c.l.b16 %v3103
      %v3284 = vunpack.c.h.b16 %v3103
      %v3285 = vunpack.c.l.b16 %v3104
      %v3286 = vunpack.c.h.b16 %v3104
      %v3287 = vunpack.c.l.b16 %v3105
      %v3288 = vunpack.c.h.b16 %v3105
      %v3289 = vunpack.c.l.b16 %v3106
      %v3290 = vunpack.c.h.b16 %v3106
      %v3291 = vunpack.c.l.b16 %v3107
      %v3292 = vunpack.c.h.b16 %v3107
      %v3293 = vunpack.c.l.b16 %v3108
      %v3294 = vunpack.c.h.b16 %v3108
      %v3295 = vunpack.c.l.b16 %v3109
      %v3296 = vunpack.c.h.b16 %v3109
      %v3297 = vunpack.c.l.b16 %v3110
      %v3298 = vunpack.c.h.b16 %v3110
      %v3299 = vunpack.c.l.b16 %v3111
      %v3300 = vunpack.c.h.b16 %v3111
      %v3301 = vunpack.c.l.b16 %v3112
      %v3302 = vunpack.c.h.b16 %v3112
      %v3303 = vunpack.c.l.b16 %v3113
      %v3304 = vunpack.c.h.b16 %v3113
      %v3305 = vunpack.c.l.b16 %v3114
      %v3306 = vunpack.c.h.b16 %v3114
      %v3307 = vpack.c.b16 %v3183, %v3179
      %v3308 = vpack.c.b16 %v3184, %v3180
      %v3309 = vpack.c.b16 %v3185, %v3181
      %v3310 = vpack.c.b16 %v3186, %v3182
      %v3311 = vpack.c.b16 %v3191, %v3187
      %v3312 = vpack.c.b16 %v3192, %v3188
      %v3313 = vpack.c.b16 %v3193, %v3189
      %v3314 = vpack.c.b16 %v3194, %v3190
      %v3315 = vpack.c.b16 %v3199, %v3195
      %v3316 = vpack.c.b16 %v3200, %v3196
      %v3317 = vpack.c.b16 %v3201, %v3197
      %v3318 = vpack.c.b16 %v3202, %v3198
      %v3319 = vpack.c.b16 %v3207, %v3203
      %v3320 = vpack.c.b16 %v3208, %v3204
      %v3321 = vpack.c.b16 %v3209, %v3205
      %v3322 = vpack.c.b16 %v3210, %v3206
      %v3323 = vpack.c.b16 %v3215, %v3211
      %v3324 = vpack.c.b16 %v3216, %v3212
      %v3325 = vpack.c.b16 %v3217, %v3213
      %v3326 = vpack.c.b16 %v3218, %v3214
      %v3327 = vpack.c.b16 %v3223, %v3219
      %v3328 = vpack.c.b16 %v3224, %v3220
      %v3329 = vpack.c.b16 %v3225, %v3221
      %v3330 = vpack.c.b16 %v3226, %v3222
      %v3331 = vpack.c.b16 %v3231, %v3227
      %v3332 = vpack.c.b16 %v3232, %v3228
      %v3333 = vpack.c.b16 %v3233, %v3229
      %v3334 = vpack.c.b16 %v3234, %v3230
      %v3335 = vpack.c.b16 %v3239, %v3235
      %v3336 = vpack.c.b16 %v3240, %v3236
      %v3337 = vpack.c.b16 %v3241, %v3237
      %v3338 = vpack.c.b16 %v3242, %v3238
      %v3339 = vpack.c.b16 %v3247, %v3243
      %v3340 = vpack.c.b16 %v3248, %v3244
      %v3341 = vpack.c.b16 %v3249, %v3245
      %v3342 = vpack.c.b16 %v3250, %v3246
      %v3343 = vpack.c.b16 %v3255, %v3251
      %v3344 = vpack.c.b16 %v3256, %v3252
      %v3345 = vpack.c.b16 %v3257, %v3253
      %v3346 = vpack.c.b16 %v3258, %v3254
      %v3347 = vpack.c.b16 %v3263, %v3259
      %v3348 = vpack.c.b16 %v3264, %v3260
      %v3349 = vpack.c.b16 %v3265, %v3261
      %v3350 = vpack.c.b16 %v3266, %v3262
      %v3351 = vpack.c.b16 %v3271, %v3267
      %v3352 = vpack.c.b16 %v3272, %v3268
      %v3353 = vpack.c.b16 %v3273, %v3269
      %v3354 = vpack.c.b16 %v3274, %v3270
      %v3355 = vpack.c.b16 %v3279, %v3275
      %v3356 = vpack.c.b16 %v3280, %v3276
      %v3357 = vpack.c.b16 %v3281, %v3277
      %v3358 = vpack.c.b16 %v3282, %v3278
      %v3359 = vpack.c.b16 %v3287, %v3283
      %v3360 = vpack.c.b16 %v3288, %v3284
      %v3361 = vpack.c.b16 %v3289, %v3285
      %v3362 = vpack.c.b16 %v3290, %v3286
      %v3363 = vpack.c.b16 %v3295, %v3291
      %v3364 = vpack.c.b16 %v3296, %v3292
      %v3365 = vpack.c.b16 %v3297, %v3293
      %v3366 = vpack.c.b16 %v3298, %v3294
      %v3367 = vpack.c.b16 %v3303, %v3299
      %v3368 = vpack.c.b16 %v3304, %v3300
      %v3369 = vpack.c.b16 %v3305, %v3301
      %v3370 = vpack.c.b16 %v3306, %v3302
      %3435 = vmatprep.subr.bf16.mxu0 %v3336
      %3436 = vmatpush1.bf16.msra.mxu0 %v3335
      %3437 = vmatprep.subr.bf16.mxu0 %v3332
      %3438 = vmatpush1.bf16.msra.mxu0 %v3331
      %3439 = vmatprep.subr.bf16.mxu0 %v3328
      %3440 = vmatpush1.bf16.msra.mxu0 %v3327
      %3441 = vmatprep.subr.bf16.mxu0 %v3324
      %3442 = vmatpush1.bf16.msra.mxu0 %v3323
      %3443 = vmatprep.subr.bf16.mxu0 %v3320
      %3444 = vmatpush1.bf16.msra.mxu0 %v3319
      %3445 = vmatprep.subr.bf16.mxu0 %v3316
      %3446 = vmatpush1.bf16.msra.mxu0 %v3315
      %3447 = vmatprep.subr.bf16.mxu0 %v3312
      %3448 = vmatpush1.bf16.msra.mxu0 %v3311
      %3449 = vmatprep.subr.bf16.mxu0 %v3308
      %3450 = vmatpush1.bf16.msra.mxu0 %v3307
      %3451 = vmatprep.subr.bf16.mxu0 %v3368
      %3452 = vmatpush2.bf16.msra.mxu0 %v3367
      %3453 = vmatprep.subr.bf16.mxu0 %v3364
      %3454 = vmatpush2.bf16.msra.mxu0 %v3363
      %3455 = vmatprep.subr.bf16.mxu0 %v3360
      %3456 = vmatpush2.bf16.msra.mxu0 %v3359
      %3457 = vmatprep.subr.bf16.mxu0 %v3356
      %3458 = vmatpush2.bf16.msra.mxu0 %v3355
      %3459 = vmatprep.subr.bf16.mxu0 %v3352
      %3460 = vmatpush2.bf16.msra.mxu0 %v3351
      %3461 = vmatprep.subr.bf16.mxu0 %v3348
      %3462 = vmatpush2.bf16.msra.mxu0 %v3347
      %3463 = vmatprep.subr.bf16.mxu0 %v3344
      %3464 = vmatpush2.bf16.msra.mxu0 %v3343
      %3465 = vmatprep.subr.bf16.mxu0 %v3340
      %3466 = vmatpush2.bf16.msra.mxu0 %v3339
      %3467 = vmatprep.mubr.bf16.mxu0 %v3041
      %3468 = vmatmul.mubr.bf16.gmra.mxu0 %v3040
      %v3469 = vpop.f32.mrf.mxu0
      %v3470 = vadd.f32 0.0, %v3469
      %v3471 = vpop.f32.mrf.mxu0
      %v3472 = vadd.f32 0.0, %v3471
      %v3473 = vpop.f32.mrf.mxu0
      %v3474 = vpop.f32.mrf.mxu0
      %3475 = vdwg.mxu0
      %3476 = vmatprep.subr.bf16.mxu0 %v3338
      %3477 = vmatpush1.bf16.msra.mxu0 %v3337
      %3478 = vmatprep.subr.bf16.mxu0 %v3334
      %3479 = vmatpush1.bf16.msra.mxu0 %v3333
      %3480 = vmatprep.subr.bf16.mxu0 %v3330
      %3481 = vmatpush1.bf16.msra.mxu0 %v3329
      %3482 = vmatprep.subr.bf16.mxu0 %v3326
      %3483 = vmatpush1.bf16.msra.mxu0 %v3325
      %3484 = vmatprep.subr.bf16.mxu0 %v3322
      %3485 = vmatpush1.bf16.msra.mxu0 %v3321
      %3486 = vmatprep.subr.bf16.mxu0 %v3318
      %3487 = vmatpush1.bf16.msra.mxu0 %v3317
      %3488 = vmatprep.subr.bf16.mxu0 %v3314
      %3489 = vmatpush1.bf16.msra.mxu0 %v3313
      %3490 = vmatprep.subr.bf16.mxu0 %v3310
      %3491 = vmatpush1.bf16.msra.mxu0 %v3309
      %3492 = vmatprep.subr.bf16.mxu0 %v3370
      %3493 = vmatpush2.bf16.msra.mxu0 %v3369
      %3494 = vmatprep.subr.bf16.mxu0 %v3366
      %3495 = vmatpush2.bf16.msra.mxu0 %v3365
      %3496 = vmatprep.subr.bf16.mxu0 %v3362
      %3497 = vmatpush2.bf16.msra.mxu0 %v3361
      %3498 = vmatprep.subr.bf16.mxu0 %v3358
      %3499 = vmatpush2.bf16.msra.mxu0 %v3357
      %3500 = vmatprep.subr.bf16.mxu0 %v3354
      %3501 = vmatpush2.bf16.msra.mxu0 %v3353
      %3502 = vmatprep.subr.bf16.mxu0 %v3350
      %3503 = vmatpush2.bf16.msra.mxu0 %v3349
      %3504 = vmatprep.subr.bf16.mxu0 %v3346
      %3505 = vmatpush2.bf16.msra.mxu0 %v3345
      %3506 = vmatprep.subr.bf16.mxu0 %v3342
      %3507 = vmatpush2.bf16.msra.mxu0 %v3341
      %3508 = vmatprep.mubr.bf16.mxu0 %v3041
      %3509 = vmatmul.mubr.bf16.gmra.mxu0 %v3040
      %v3510 = vpop.f32.mrf.mxu0
      %v3511 = vadd.f32 0.0, %v3510
      %v3512 = vpop.f32.mrf.mxu0
      %v3513 = vadd.f32 0.0, %v3512
      %v3514 = vpop.f32.mrf.mxu0
      %v3515 = vpop.f32.mrf.mxu0
      %3516 = vdwg.mxu0
      %v3517 = vadd.f32 %v3047, %v3470
      %v3518 = vadd.f32 %v3048, %v3472
      %v3519 = vadd.f32 %v3049, %v3511
      %v3520 = vadd.f32 %v3050, %v3513
      %v3521 = vxor.u32 %v3517, 2147483648
      %v3522 = vmul.f32 %v3521, 1.442695
      %v3523 = vpow.pop %v3522
      %v3524 = vadd.f32 %v3523, 1.0
      %v3525 = vrcp.pop %v3524
      %v3526 = vmul.f32 1.0, %v3525
      %v3527 = vxor.u32 %v3518, 2147483648
      %v3528 = vmul.f32 %v3527, 1.442695
      %v3529 = vpow.pop %v3528
      %v3530 = vadd.f32 %v3529, 1.0
      %v3531 = vrcp.pop %v3530
      %v3532 = vmul.f32 1.0, %v3531
      %v3533 = vtanh.pop %v3519
      %v3534 = vxor.u32 %v3520, 2147483648
      %v3535 = vmul.f32 %v3534, 1.442695
      %v3536 = vpow.pop %v3535
      %v3537 = vadd.f32 %v3536, 1.0
      %v3538 = vrcp.pop %v3537
      %v3539 = vmul.f32 1.0, %v3538
      %v3540 = vmul.f32 %v3532, %v3037
      %v3541 = vmul.f32 %v3526, %v3533
      %v3542 = vadd.f32 %v3540, %v3541
      %v3543 = vtanh.pop %v3542
      %v3544 = vmul.f32 %v3539, %v3543
      %v3545 = vmul.f32 %v3544, %v3014
      %v3546 = vmul.f32 %v3544, %v3015
      %v3547 = vmul.f32 %v3544, %v3016
      %v3548 = vmul.f32 %v3544, %v3017
      %v3549 = vmul.f32 %v3544, %v3018
      %v3550 = vmul.f32 %v3544, %v3019
      %v3551 = vmul.f32 %v3544, %v3020
      %v3552 = vmul.f32 %v3544, %v3021
      %v3553 = vmul.f32 %v3544, %v3022
      %v3554 = vmul.f32 %v3544, %v3023
      %v3555 = vmul.f32 %v3544, %v3024
      %v3556 = vmul.f32 %v3544, %v3025
      %v3557 = vmul.f32 %v3544, %v3026
      %v3558 = vmul.f32 %v3544, %v3027
      %v3559 = vmul.f32 %v3544, %v3028
      %v3560 = vmul.f32 %v3544, %v3029
      %3561 = vadd.xlane.f32.xlu0 %v3545
      %v3562 = vpop.xlane.xlu0 %3561
      %3563 = vadd.xlane.f32.xlu0 %v3546
      %v3564 = vpop.xlane.xlu0 %3563
      %3565 = vadd.xlane.f32.xlu0 %v3547
      %v3566 = vpop.xlane.xlu0 %3565
      %3567 = vadd.xlane.f32.xlu0 %v3548
      %v3568 = vpop.xlane.xlu0 %3567
      %3569 = vadd.xlane.f32.xlu0 %v3549
      %v3570 = vpop.xlane.xlu0 %3569
      %3571 = vadd.xlane.f32.xlu0 %v3550
      %v3572 = vpop.xlane.xlu0 %3571
      %3573 = vadd.xlane.f32.xlu0 %v3551
      %v3574 = vpop.xlane.xlu0 %3573
      %3575 = vadd.xlane.f32.xlu0 %v3552
      %v3576 = vpop.xlane.xlu0 %3575
      %3577 = vadd.xlane.f32.xlu0 %v3553
      %v3578 = vpop.xlane.xlu0 %3577
      %3579 = vadd.xlane.f32.xlu0 %v3554
      %v3580 = vpop.xlane.xlu0 %3579
      %3581 = vadd.xlane.f32.xlu0 %v3555
      %v3582 = vpop.xlane.xlu0 %3581
      %3583 = vadd.xlane.f32.xlu0 %v3556
      %v3584 = vpop.xlane.xlu0 %3583
      %3585 = vadd.xlane.f32.xlu0 %v3557
      %v3586 = vpop.xlane.xlu0 %3585
      %3587 = vadd.xlane.f32.xlu0 %v3558
      %v3588 = vpop.xlane.xlu0 %3587
      %3589 = vadd.xlane.f32.xlu0 %v3559
      %v3590 = vpop.xlane.xlu0 %3589
      %3591 = vadd.xlane.f32.xlu0 %v3560
      %v3592 = vpop.xlane.xlu0 %3591
      %v3593 = vmax.f32 %v3562, %v3570
      %v3594 = vmax.f32 %v3564, %v3572
      %v3595 = vmax.f32 %v3566, %v3574
      %v3596 = vmax.f32 %v3568, %v3576
      %v3597 = vmax.f32 %v3593, %v3578
      %v3598 = vmax.f32 %v3594, %v3580
      %v3599 = vmax.f32 %v3595, %v3582
      %v3600 = vmax.f32 %v3596, %v3584
      %v3601 = vmax.f32 %v3597, %v3586
      %v3602 = vmax.f32 %v3598, %v3588
      %v3603 = vmax.f32 %v3599, %v3590
      %v3604 = vmax.f32 %v3600, %v3592
      %v3605 = vmax.f32 %v3601, %v3602
      %v3606 = vmax.f32 %v3603, %v3604
      %v3607 = vmax.f32 %v3605, %v3606
      %v3608 = vsub.f32 %v3562, %v3607
      %v3609 = vsub.f32 %v3564, %v3607
      %v3610 = vsub.f32 %v3566, %v3607
      %v3611 = vsub.f32 %v3568, %v3607
      %v3612 = vsub.f32 %v3570, %v3607
      %v3613 = vsub.f32 %v3572, %v3607
      %v3614 = vsub.f32 %v3574, %v3607
      %v3615 = vsub.f32 %v3576, %v3607
      %v3616 = vsub.f32 %v3578, %v3607
      %v3617 = vsub.f32 %v3580, %v3607
      %v3618 = vsub.f32 %v3582, %v3607
      %v3619 = vsub.f32 %v3584, %v3607
      %v3620 = vsub.f32 %v3586, %v3607
      %v3621 = vsub.f32 %v3588, %v3607
      %v3622 = vsub.f32 %v3590, %v3607
      %v3623 = vsub.f32 %v3592, %v3607
      %v3624 = vmul.f32 %v3608, 1.442695
      %v3625 = vpow.pop %v3624
      %v3626 = vmul.f32 %v3609, 1.442695
      %v3627 = vpow.pop %v3626
      %v3628 = vmul.f32 %v3610, 1.442695
      %v3629 = vpow.pop %v3628
      %v3630 = vmul.f32 %v3611, 1.442695
      %v3631 = vpow.pop %v3630
      %v3632 = vmul.f32 %v3612, 1.442695
      %v3633 = vpow.pop %v3632
      %v3634 = vmul.f32 %v3613, 1.442695
      %v3635 = vpow.pop %v3634
      %v3636 = vmul.f32 %v3614, 1.442695
      %v3637 = vpow.pop %v3636
      %v3638 = vmul.f32 %v3615, 1.442695
      %v3639 = vpow.pop %v3638
      %v3640 = vmul.f32 %v3616, 1.442695
      %v3641 = vpow.pop %v3640
      %v3642 = vmul.f32 %v3617, 1.442695
      %v3643 = vpow.pop %v3642
      %v3644 = vmul.f32 %v3618, 1.442695
      %v3645 = vpow.pop %v3644
      %v3646 = vmul.f32 %v3619, 1.442695
      %v3647 = vpow.pop %v3646
      %v3648 = vmul.f32 %v3620, 1.442695
      %v3649 = vpow.pop %v3648
      %v3650 = vmul.f32 %v3621, 1.442695
      %v3651 = vpow.pop %v3650
      %v3652 = vmul.f32 %v3622, 1.442695
      %v3653 = vpow.pop %v3652
      %v3654 = vmul.f32 %v3623, 1.442695
      %v3655 = vpow.pop %v3654
      %v3656 = vadd.f32 %v3625, %v3627
      %v3657 = vadd.f32 %v3656, %v3629
      %v3658 = vadd.f32 %v3657, %v3631
      %v3659 = vadd.f32 %v3658, %v3633
      %v3660 = vadd.f32 %v3659, %v3635
      %v3661 = vadd.f32 %v3660, %v3637
      %v3662 = vadd.f32 %v3661, %v3639
      %v3663 = vadd.f32 %v3662, %v3641
      %v3664 = vadd.f32 %v3663, %v3643
      %v3665 = vadd.f32 %v3664, %v3645
      %v3666 = vadd.f32 %v3665, %v3647
      %v3667 = vadd.f32 %v3666, %v3649
      %v3668 = vadd.f32 %v3667, %v3651
      %v3669 = vadd.f32 %v3668, %v3653
      %v3670 = vadd.f32 %v3669, %v3655
      %v3671 = vrcp.pop %v3670
      %v3672 = vmul.f32 %v3625, %v3671
      %v3673 = vmul.f32 %v3627, %v3671
      %v3674 = vmul.f32 %v3629, %v3671
      %v3675 = vmul.f32 %v3631, %v3671
      %v3676 = vmul.f32 %v3633, %v3671
      %v3677 = vmul.f32 %v3635, %v3671
      %v3678 = vmul.f32 %v3637, %v3671
      %v3679 = vmul.f32 %v3639, %v3671
      %v3680 = vmul.f32 %v3641, %v3671
      %v3681 = vmul.f32 %v3643, %v3671
      %v3682 = vmul.f32 %v3645, %v3671
      %v3683 = vmul.f32 %v3647, %v3671
      %v3684 = vmul.f32 %v3649, %v3671
      %v3685 = vmul.f32 %v3651, %v3671
      %v3686 = vmul.f32 %v3653, %v3671
      %v3687 = vmul.f32 %v3655, %v3671
      %v3688 = vmul.f32 %v3672, %v3014
      %v3689 = vmul.f32 %v3673, %v3015
      %v3690 = vmul.f32 %v3674, %v3016
      %v3691 = vmul.f32 %v3675, %v3017
      %v3692 = vmul.f32 %v3676, %v3018
      %v3693 = vmul.f32 %v3677, %v3019
      %v3694 = vmul.f32 %v3678, %v3020
      %v3695 = vmul.f32 %v3679, %v3021
      %v3696 = vmul.f32 %v3680, %v3022
      %v3697 = vmul.f32 %v3681, %v3023
      %v3698 = vmul.f32 %v3682, %v3024
      %v3699 = vmul.f32 %v3683, %v3025
      %v3700 = vmul.f32 %v3684, %v3026
      %v3701 = vmul.f32 %v3685, %v3027
      %v3702 = vmul.f32 %v3686, %v3028
      %v3703 = vmul.f32 %v3687, %v3029
      %v3704 = vadd.f32 %v3688, %v3689
      %v3705 = vadd.f32 %v3704, %v3690
      %v3706 = vadd.f32 %v3705, %v3691
      %v3707 = vadd.f32 %v3706, %v3692
      %v3708 = vadd.f32 %v3707, %v3693
      %v3709 = vadd.f32 %v3708, %v3694
      %v3710 = vadd.f32 %v3709, %v3695
      %v3711 = vadd.f32 %v3710, %v3696
      %v3712 = vadd.f32 %v3711, %v3697
      %v3713 = vadd.f32 %v3712, %v3698
      %v3714 = vadd.f32 %v3713, %v3699
      %v3715 = vadd.f32 %v3714, %v3700
      %v3716 = vadd.f32 %v3715, %v3701
      %v3717 = vadd.f32 %v3716, %v3702
      %v3718 = vadd.f32 %v3717, %v3703
      %v3719 = vpack.c.bf16 %v3718, %v3718
      %v3720 = vpack.c.bf16 %v3544, %v3544
      %v3721 = vld [vmem:[%s8] sm:$0xf]
      %v3722 = vld [vmem:[%s8 + $0x4] sm:$0xf]
      %v3723 = vld [vmem:[%s8 + $0x8] sm:$0xf]
      %v3724 = vld [vmem:[%s8 + $0xc] sm:$0xf]
      %v3725 = vld [vmem:[%s8 + $0x10] sm:$0xf]
      %v3726 = vld [vmem:[%s8 + $0x14] sm:$0xf]
      %v3727 = vld [vmem:[%s8 + $0x18] sm:$0xf]
      %v3728 = vld [vmem:[%s8 + $0x1c] sm:$0xf]
      %v3729 = vld [vmem:[%s8 + $0x20] sm:$0xf]
      %v3730 = vld [vmem:[%s8 + $0x24] sm:$0xf]
      %v3731 = vld [vmem:[%s8 + $0x28] sm:$0xf]
      %v3732 = vld [vmem:[%s8 + $0x2c] sm:$0xf]
      %v3733 = vld [vmem:[%s8 + $0x30] sm:$0xf]
      %v3734 = vld [vmem:[%s8 + $0x34] sm:$0xf]
      %v3735 = vld [vmem:[%s8 + $0x38] sm:$0xf]
      %v3736 = vld [vmem:[%s8 + $0x3c] sm:$0xf]
      %v3737 = vld [vmem:[%s8 + $0x40] sm:$0xf]
      %v3738 = vld [vmem:[%s8 + $0x44] sm:$0xf]
      %v3739 = vld [vmem:[%s8 + $0x48] sm:$0xf]
      %v3740 = vld [vmem:[%s8 + $0x4c] sm:$0xf]
      %v3741 = vld [vmem:[%s8 + $0x50] sm:$0xf]
      %v3742 = vld [vmem:[%s8 + $0x54] sm:$0xf]
      %v3743 = vld [vmem:[%s8 + $0x58] sm:$0xf]
      %v3744 = vld [vmem:[%s8 + $0x5c] sm:$0xf]
      %v3745 = vld [vmem:[%s8 + $0x60] sm:$0xf]
      %v3746 = vld [vmem:[%s8 + $0x64] sm:$0xf]
      %v3747 = vld [vmem:[%s8 + $0x68] sm:$0xf]
      %v3748 = vld [vmem:[%s8 + $0x6c] sm:$0xf]
      %v3749 = vld [vmem:[%s8 + $0x70] sm:$0xf]
      %v3750 = vld [vmem:[%s8 + $0x74] sm:$0xf]
      %v3751 = vld [vmem:[%s8 + $0x78] sm:$0xf]
      %v3752 = vld [vmem:[%s8 + $0x7c] sm:$0xf]
      %v3753 = vld [vmem:[%s9] sm:$0x1]
      %v3755 = vlaneseq
      %v3756 = vshrl.u32 %v3755, 7
      %v3757 = vsub.s32 0, %v3756
      %v3758 = vrot.slane %v3753, %v3757
      %v3792 = vunpack.c.l.b16 %v3721
      %v3793 = vunpack.c.l.b16 %v3722
      %v3794 = vunpack.c.l.b16 %v3723
      %v3795 = vunpack.c.l.b16 %v3724
      %v3796 = vunpack.c.l.b16 %v3725
      %v3797 = vunpack.c.l.b16 %v3726
      %v3798 = vunpack.c.l.b16 %v3727
      %v3799 = vunpack.c.l.b16 %v3728
      %v3800 = vunpack.c.l.b16 %v3729
      %v3801 = vunpack.c.l.b16 %v3730
      %v3802 = vunpack.c.l.b16 %v3731
      %v3803 = vunpack.c.l.b16 %v3732
      %v3804 = vunpack.c.l.b16 %v3733
      %v3805 = vunpack.c.l.b16 %v3734
      %v3806 = vunpack.c.l.b16 %v3735
      %v3807 = vunpack.c.l.b16 %v3736
      %v3808 = vunpack.c.l.b16 %v3737
      %v3809 = vunpack.c.l.b16 %v3738
      %v3810 = vunpack.c.l.b16 %v3739
      %v3811 = vunpack.c.l.b16 %v3740
      %v3812 = vunpack.c.l.b16 %v3741
      %v3813 = vunpack.c.l.b16 %v3742
      %v3814 = vunpack.c.l.b16 %v3743
      %v3815 = vunpack.c.l.b16 %v3744
      %v3816 = vunpack.c.l.b16 %v3745
      %v3817 = vunpack.c.l.b16 %v3746
      %v3818 = vunpack.c.l.b16 %v3747
      %v3819 = vunpack.c.l.b16 %v3748
      %v3820 = vunpack.c.l.b16 %v3749
      %v3821 = vunpack.c.l.b16 %v3750
      %v3822 = vunpack.c.l.b16 %v3751
      %v3823 = vunpack.c.l.b16 %v3752
      %v3824 = vpack.c.b16 %v3793, %v3792
      %v3825 = vpack.c.b16 %v3795, %v3794
      %v3826 = vpack.c.b16 %v3797, %v3796
      %v3827 = vpack.c.b16 %v3799, %v3798
      %v3828 = vpack.c.b16 %v3801, %v3800
      %v3829 = vpack.c.b16 %v3803, %v3802
      %v3830 = vpack.c.b16 %v3805, %v3804
      %v3831 = vpack.c.b16 %v3807, %v3806
      %v3832 = vpack.c.b16 %v3809, %v3808
      %v3833 = vpack.c.b16 %v3811, %v3810
      %v3834 = vpack.c.b16 %v3813, %v3812
      %v3835 = vpack.c.b16 %v3815, %v3814
      %v3836 = vpack.c.b16 %v3817, %v3816
      %v3837 = vpack.c.b16 %v3819, %v3818
      %v3838 = vpack.c.b16 %v3821, %v3820
      %v3839 = vpack.c.b16 %v3823, %v3822
      %3856 = vmatprep.subr.bf16.mxu0 0
      %3857 = vmatpush1.bf16.msra.mxu0 %v3831
      %3858 = vmatprep.subr.bf16.mxu0 0
      %3859 = vmatpush1.bf16.msra.mxu0 %v3830
      %3860 = vmatprep.subr.bf16.mxu0 0
      %3861 = vmatpush1.bf16.msra.mxu0 %v3829
      %3862 = vmatprep.subr.bf16.mxu0 0
      %3863 = vmatpush1.bf16.msra.mxu0 %v3828
      %3864 = vmatprep.subr.bf16.mxu0 0
      %3865 = vmatpush1.bf16.msra.mxu0 %v3827
      %3866 = vmatprep.subr.bf16.mxu0 0
      %3867 = vmatpush1.bf16.msra.mxu0 %v3826
      %3868 = vmatprep.subr.bf16.mxu0 0
      %3869 = vmatpush1.bf16.msra.mxu0 %v3825
      %3870 = vmatprep.subr.bf16.mxu0 0
      %3871 = vmatpush1.bf16.msra.mxu0 %v3824
      %3872 = vmatprep.subr.bf16.mxu0 0
      %3873 = vmatpush2.bf16.msra.mxu0 %v3839
      %3874 = vmatprep.subr.bf16.mxu0 0
      %3875 = vmatpush2.bf16.msra.mxu0 %v3838
      %3876 = vmatprep.subr.bf16.mxu0 0
      %3877 = vmatpush2.bf16.msra.mxu0 %v3837
      %3878 = vmatprep.subr.bf16.mxu0 0
      %3879 = vmatpush2.bf16.msra.mxu0 %v3836
      %3880 = vmatprep.subr.bf16.mxu0 0
      %3881 = vmatpush2.bf16.msra.mxu0 %v3835
      %3882 = vmatprep.subr.bf16.mxu0 0
      %3883 = vmatpush2.bf16.msra.mxu0 %v3834
      %3884 = vmatprep.subr.bf16.mxu0 0
      %3885 = vmatpush2.bf16.msra.mxu0 %v3833
      %3886 = vmatprep.subr.bf16.mxu0 0
      %3887 = vmatpush2.bf16.msra.mxu0 %v3832
      %3888 = vmatprep.mubr.bf16.mxu0 %v3720
      %3889 = vmatmul.mubr.bf16.gmra.mxu0 %v3719
      %v3890 = vpop.f32.mrf.mxu0
      %v3891 = vadd.f32 %v3758, %v3890
      %v3892 = vpop.f32.mrf.mxu0
      %v3893 = vpop.f32.mrf.mxu0
      %v3894 = vpop.f32.mrf.mxu0
      %3895 = vdwg.mxu0
      %v3896 = vtanh.pop %v3891
      %s3897 = scalar_lea.vmem [#allocation5], %s3039
      %3898 = vst [vmem:[%s3897] sm:$0xff] %v3896
    $region61: #{loung_nmt_forward.1} parent=1 // loop_footer
      %s3035 = sadd.s32 1, %s3031
    $region62: #{loung_nmt_forward.1} parent=1 // loop_footer_branch
      %3030 = sbr.rel target = $region58
    $region63: #{loung_nmt_forward.1} parent=1 // loop_exit
      _
    %v3899 = vld [vmem:[#allocation5] sm:$0xff]
    %v3900 = vld [vmem:[#allocation5 + $0x8] sm:$0xff]
    %v3901 = vld [vmem:[#allocation5 + $0x10] sm:$0xff]
    %v3902 = vld [vmem:[#allocation5 + $0x18] sm:$0xff]
    %v3903 = vld [vmem:[#allocation5 + $0x20] sm:$0xff]
    %v3904 = vld [vmem:[#allocation5 + $0x28] sm:$0xff]
    %v3905 = vld [vmem:[#allocation5 + $0x30] sm:$0xff]
    %v3906 = vld [vmem:[#allocation5 + $0x38] sm:$0xff]
    %v3907 = vld [vmem:[#allocation5 + $0x40] sm:$0xff]
    %v3908 = vld [vmem:[#allocation5 + $0x48] sm:$0xff]
    %v3909 = vld [vmem:[#allocation5 + $0x50] sm:$0xff]
    %v3910 = vld [vmem:[#allocation5 + $0x58] sm:$0xff]
    %v3911 = vld [vmem:[#allocation5 + $0x60] sm:$0xff]
    %v3912 = vld [vmem:[#allocation5 + $0x68] sm:$0xff]
    %v3913 = vld [vmem:[#allocation5 + $0x70] sm:$0xff]
    %v3914 = vld [vmem:[#allocation5 + $0x78] sm:$0xff]
    %v3915 = vld [vmem:[#allocation5 + $0x80] sm:$0xff]
    %v3916 = vld [vmem:[#allocation5 + $0x88] sm:$0xff]
    %v3917 = vld [vmem:[#allocation5 + $0x90] sm:$0xff]
    %v3918 = vld [vmem:[#allocation5 + $0x98] sm:$0xff]
    %v3919 = vld [vmem:[#allocation5 + $0xa0] sm:$0xff]
    %v3920 = vld [vmem:[#allocation5 + $0xa8] sm:$0xff]
    %v3921 = vld [vmem:[#allocation5 + $0xb0] sm:$0xff]
    %v3922 = vld [vmem:[#allocation5 + $0xb8] sm:$0xff]
    %v3923 = vld [vmem:[#allocation5 + $0xc0] sm:$0xff]
    %v3924 = vld [vmem:[#allocation5 + $0xc8] sm:$0xff]
    %v3925 = vld [vmem:[#allocation5 + $0xd0] sm:$0xff]
    %v3926 = vld [vmem:[#allocation5 + $0xd8] sm:$0xff]
    %v3927 = vld [vmem:[#allocation5 + $0xe0] sm:$0xff]
    %v3928 = vld [vmem:[#allocation5 + $0xe8] sm:$0xff]
    %v3929 = vld [vmem:[#allocation5 + $0xf0] sm:$0xff]
    %v3930 = vld [vmem:[#allocation5 + $0xf8] sm:$0xff]
    %v3931 = vld [vmem:[#allocation5 + $0x100] sm:$0xff]
    %v3932 = vld [vmem:[#allocation5 + $0x108] sm:$0xff]
    %v3933 = vld [vmem:[#allocation5 + $0x110] sm:$0xff]
    %v3934 = vld [vmem:[#allocation5 + $0x118] sm:$0xff]
    %v3935 = vld [vmem:[#allocation5 + $0x120] sm:$0xff]
    %v3936 = vld [vmem:[#allocation5 + $0x128] sm:$0xff]
    %v3937 = vld [vmem:[#allocation5 + $0x130] sm:$0xff]
    %v3938 = vld [vmem:[#allocation5 + $0x138] sm:$0xff]
    %v3939 = vld [vmem:[#allocation5 + $0x140] sm:$0xff]
    %v3940 = vld [vmem:[#allocation5 + $0x148] sm:$0xff]
    %v3941 = vld [vmem:[#allocation5 + $0x150] sm:$0xff]
    %v3942 = vld [vmem:[#allocation5 + $0x158] sm:$0xff]
    %v3943 = vld [vmem:[#allocation5 + $0x160] sm:$0xff]
    %v3944 = vld [vmem:[#allocation5 + $0x168] sm:$0xff]
    %v3945 = vld [vmem:[#allocation5 + $0x170] sm:$0xff]
    %v3946 = vld [vmem:[#allocation5 + $0x178] sm:$0xff]
    %v3947 = vld [vmem:[#allocation5 + $0x180] sm:$0xff]
    %v3948 = vld [vmem:[#allocation5 + $0x188] sm:$0xff]
    %v3949 = vld [vmem:[#allocation5 + $0x190] sm:$0xff]
    %v3950 = vld [vmem:[#allocation5 + $0x198] sm:$0xff]
    %v3951 = vld [vmem:[#allocation5 + $0x1a0] sm:$0xff]
    %v3952 = vld [vmem:[#allocation5 + $0x1a8] sm:$0xff]
    %v3953 = vld [vmem:[#allocation5 + $0x1b0] sm:$0xff]
    %v3954 = vld [vmem:[#allocation5 + $0x1b8] sm:$0xff]
    %v3955 = vld [vmem:[#allocation5 + $0x1c0] sm:$0xff]
    %v3956 = vld [vmem:[#allocation5 + $0x1c8] sm:$0xff]
    %v3957 = vld [vmem:[#allocation5 + $0x1d0] sm:$0xff]
    %v3958 = vld [vmem:[#allocation5 + $0x1d8] sm:$0xff]
    %v3959 = vld [vmem:[#allocation5 + $0x1e0] sm:$0xff]
    %v3960 = vld [vmem:[#allocation5 + $0x1e8] sm:$0xff]
    %v3961 = vld [vmem:[#allocation5 + $0x1f0] sm:$0xff]
    %v3962 = vld [vmem:[#allocation5 + $0x1f8] sm:$0xff]
    %v3963 = vld [vmem:[#allocation5 + $0x200] sm:$0xff]
    %v3964 = vld [vmem:[#allocation5 + $0x208] sm:$0xff]
    %v3965 = vld [vmem:[#allocation5 + $0x210] sm:$0xff]
    %v3966 = vld [vmem:[#allocation5 + $0x218] sm:$0xff]
    %v3967 = vld [vmem:[#allocation5 + $0x220] sm:$0xff]
    %v3968 = vld [vmem:[#allocation5 + $0x228] sm:$0xff]
    %v3969 = vld [vmem:[#allocation5 + $0x230] sm:$0xff]
    %v3970 = vld [vmem:[#allocation5 + $0x238] sm:$0xff]
    %v3971 = vld [vmem:[#allocation5 + $0x240] sm:$0xff]
    %v3972 = vld [vmem:[#allocation5 + $0x248] sm:$0xff]
    %v3973 = vld [vmem:[#allocation5 + $0x250] sm:$0xff]
    %v3974 = vld [vmem:[#allocation5 + $0x258] sm:$0xff]
    %v3975 = vld [vmem:[#allocation5 + $0x260] sm:$0xff]
    %v3976 = vld [vmem:[#allocation5 + $0x268] sm:$0xff]
    %v3977 = vld [vmem:[#allocation5 + $0x270] sm:$0xff]
    %v3978 = vld [vmem:[#allocation5 + $0x278] sm:$0xff]
    %v3979 = vld [vmem:[#allocation5 + $0x280] sm:$0xff]
    %v3980 = vld [vmem:[#allocation5 + $0x288] sm:$0xff]
    %v3981 = vld [vmem:[#allocation5 + $0x290] sm:$0xff]
    %v3982 = vld [vmem:[#allocation5 + $0x298] sm:$0xff]
    %v3983 = vld [vmem:[#allocation5 + $0x2a0] sm:$0xff]
    %v3984 = vld [vmem:[#allocation5 + $0x2a8] sm:$0xff]
    %v3985 = vld [vmem:[#allocation5 + $0x2b0] sm:$0xff]
    %v3986 = vld [vmem:[#allocation5 + $0x2b8] sm:$0xff]
    %v3987 = vld [vmem:[#allocation5 + $0x2c0] sm:$0xff]
    %v3988 = vld [vmem:[#allocation5 + $0x2c8] sm:$0xff]
    %v3989 = vld [vmem:[#allocation5 + $0x2d0] sm:$0xff]
    %v3990 = vld [vmem:[#allocation5 + $0x2d8] sm:$0xff]
    %v3991 = vld [vmem:[#allocation5 + $0x2e0] sm:$0xff]
    %v3992 = vld [vmem:[#allocation5 + $0x2e8] sm:$0xff]
    %v3993 = vld [vmem:[#allocation5 + $0x2f0] sm:$0xff]
    %v3994 = vld [vmem:[#allocation5 + $0x2f8] sm:$0xff]
    %v3995 = vld [vmem:[#allocation5 + $0x300] sm:$0xff]
    %v3996 = vld [vmem:[#allocation5 + $0x308] sm:$0xff]
    %v3997 = vld [vmem:[#allocation5 + $0x310] sm:$0xff]
    %v3998 = vld [vmem:[#allocation5 + $0x318] sm:$0xff]
    %v3999 = vpack.c.bf16 %v3900, %v3899
    %v4000 = vpack.c.bf16 %v3902, %v3901
    %v4001 = vpack.c.bf16 %v3904, %v3903
    %v4002 = vpack.c.bf16 %v3906, %v3905
    %v4003 = vpack.c.bf16 %v3908, %v3907
    %v4004 = vpack.c.bf16 %v3910, %v3909
    %v4005 = vpack.c.bf16 %v3912, %v3911
    %v4006 = vpack.c.bf16 %v3914, %v3913
    %v4007 = vpack.c.bf16 %v3916, %v3915
    %v4008 = vpack.c.bf16 %v3918, %v3917
    %v4009 = vpack.c.bf16 %v3920, %v3919
    %v4010 = vpack.c.bf16 %v3922, %v3921
    %v4011 = vpack.c.bf16 %v3924, %v3923
    %v4012 = vpack.c.bf16 %v3926, %v3925
    %v4013 = vpack.c.bf16 %v3928, %v3927
    %v4014 = vpack.c.bf16 %v3930, %v3929
    %v4015 = vpack.c.bf16 %v3932, %v3931
    %v4016 = vpack.c.bf16 %v3934, %v3933
    %v4017 = vpack.c.bf16 %v3936, %v3935
    %v4018 = vpack.c.bf16 %v3938, %v3937
    %v4019 = vpack.c.bf16 %v3940, %v3939
    %v4020 = vpack.c.bf16 %v3942, %v3941
    %v4021 = vpack.c.bf16 %v3944, %v3943
    %v4022 = vpack.c.bf16 %v3946, %v3945
    %v4023 = vpack.c.bf16 %v3948, %v3947
    %v4024 = vpack.c.bf16 %v3950, %v3949
    %v4025 = vpack.c.bf16 %v3952, %v3951
    %v4026 = vpack.c.bf16 %v3954, %v3953
    %v4027 = vpack.c.bf16 %v3956, %v3955
    %v4028 = vpack.c.bf16 %v3958, %v3957
    %v4029 = vpack.c.bf16 %v3960, %v3959
    %v4030 = vpack.c.bf16 %v3962, %v3961
    %v4031 = vpack.c.bf16 %v3964, %v3963
    %v4032 = vpack.c.bf16 %v3966, %v3965
    %v4033 = vpack.c.bf16 %v3968, %v3967
    %v4034 = vpack.c.bf16 %v3970, %v3969
    %v4035 = vpack.c.bf16 %v3972, %v3971
    %v4036 = vpack.c.bf16 %v3974, %v3973
    %v4037 = vpack.c.bf16 %v3976, %v3975
    %v4038 = vpack.c.bf16 %v3978, %v3977
    %v4039 = vpack.c.bf16 %v3980, %v3979
    %v4040 = vpack.c.bf16 %v3982, %v3981
    %v4041 = vpack.c.bf16 %v3984, %v3983
    %v4042 = vpack.c.bf16 %v3986, %v3985
    %v4043 = vpack.c.bf16 %v3988, %v3987
    %v4044 = vpack.c.bf16 %v3990, %v3989
    %v4045 = vpack.c.bf16 %v3992, %v3991
    %v4046 = vpack.c.bf16 %v3994, %v3993
    %v4047 = vpack.c.bf16 %v3996, %v3995
    %v4048 = vpack.c.bf16 %v3998, %v3997
    %v4049 = vld [vmem:[%s10] sm:$0xff]
    %v4050 = vld [vmem:[%s10 + $0x8] sm:$0xff]
    %v4051 = vld [vmem:[%s10 + $0x10] sm:$0xff]
    %v4052 = vld [vmem:[%s10 + $0x18] sm:$0xff]
    %v4053 = vld [vmem:[%s10 + $0x20] sm:$0xff]
    %v4054 = vld [vmem:[%s10 + $0x28] sm:$0xff]
    %v4055 = vld [vmem:[%s10 + $0x30] sm:$0xff]
    %v4056 = vld [vmem:[%s10 + $0x38] sm:$0xff]
    %v4057 = vld [vmem:[%s10 + $0x40] sm:$0xff]
    %v4058 = vld [vmem:[%s10 + $0x48] sm:$0xff]
    %v4059 = vld [vmem:[%s10 + $0x50] sm:$0xff]
    %v4060 = vld [vmem:[%s10 + $0x58] sm:$0xff]
    %v4061 = vld [vmem:[%s10 + $0x60] sm:$0xff]
    %v4062 = vld [vmem:[%s10 + $0x68] sm:$0xff]
    %v4063 = vld [vmem:[%s10 + $0x70] sm:$0xff]
    %v4064 = vld [vmem:[%s10 + $0x78] sm:$0xff]
    %v4065 = vld [vmem:[%s11] sm:$0x3]
    %v4067 = vlaneseq
    %v4068 = vshrl.u32 %v4067, 7
    %v4069 = vsub.s32 0, %v4068
    %v4070 = vrot.slane %v4065, %v4069
    %v4071 = vlaneseq
    %v4072 = vshrl.u32 %v4071, 7
    %v4073 = vsub.s32 1, %v4072
    %v4074 = vrot.slane %v4065, %v4073
    %v4093 = vunpack.c.l.b16 %v4049
    %v4094 = vunpack.c.h.b16 %v4049
    %v4095 = vunpack.c.l.b16 %v4050
    %v4096 = vunpack.c.h.b16 %v4050
    %v4097 = vunpack.c.l.b16 %v4051
    %v4098 = vunpack.c.h.b16 %v4051
    %v4099 = vunpack.c.l.b16 %v4052
    %v4100 = vunpack.c.h.b16 %v4052
    %v4101 = vunpack.c.l.b16 %v4053
    %v4102 = vunpack.c.h.b16 %v4053
    %v4103 = vunpack.c.l.b16 %v4054
    %v4104 = vunpack.c.h.b16 %v4054
    %v4105 = vunpack.c.l.b16 %v4055
    %v4106 = vunpack.c.h.b16 %v4055
    %v4107 = vunpack.c.l.b16 %v4056
    %v4108 = vunpack.c.h.b16 %v4056
    %v4109 = vunpack.c.l.b16 %v4057
    %v4110 = vunpack.c.h.b16 %v4057
    %v4111 = vunpack.c.l.b16 %v4058
    %v4112 = vunpack.c.h.b16 %v4058
    %v4113 = vunpack.c.l.b16 %v4059
    %v4114 = vunpack.c.h.b16 %v4059
    %v4115 = vunpack.c.l.b16 %v4060
    %v4116 = vunpack.c.h.b16 %v4060
    %v4117 = vunpack.c.l.b16 %v4061
    %v4118 = vunpack.c.h.b16 %v4061
    %v4119 = vunpack.c.l.b16 %v4062
    %v4120 = vunpack.c.h.b16 %v4062
    %v4121 = vunpack.c.l.b16 %v4063
    %v4122 = vunpack.c.h.b16 %v4063
    %v4123 = vunpack.c.l.b16 %v4064
    %v4124 = vunpack.c.h.b16 %v4064
    %v4125 = vpack.c.b16 %v4095, %v4093
    %v4126 = vpack.c.b16 %v4096, %v4094
    %v4127 = vpack.c.b16 %v4099, %v4097
    %v4128 = vpack.c.b16 %v4100, %v4098
    %v4129 = vpack.c.b16 %v4103, %v4101
    %v4130 = vpack.c.b16 %v4104, %v4102
    %v4131 = vpack.c.b16 %v4107, %v4105
    %v4132 = vpack.c.b16 %v4108, %v4106
    %v4133 = vpack.c.b16 %v4111, %v4109
    %v4134 = vpack.c.b16 %v4112, %v4110
    %v4135 = vpack.c.b16 %v4115, %v4113
    %v4136 = vpack.c.b16 %v4116, %v4114
    %v4137 = vpack.c.b16 %v4119, %v4117
    %v4138 = vpack.c.b16 %v4120, %v4118
    %v4139 = vpack.c.b16 %v4123, %v4121
    %v4140 = vpack.c.b16 %v4124, %v4122
    %4157 = vmatprep.subr.bf16.mxu0 %v4140
    %4158 = vmatpush1.bf16.msra.mxu0 %v4139
    %4159 = vmatprep.subr.bf16.mxu0 %v4138
    %4160 = vmatpush1.bf16.msra.mxu0 %v4137
    %4161 = vmatprep.subr.bf16.mxu0 %v4136
    %4162 = vmatpush1.bf16.msra.mxu0 %v4135
    %4163 = vmatprep.subr.bf16.mxu0 %v4134
    %4164 = vmatpush1.bf16.msra.mxu0 %v4133
    %4165 = vmatprep.subr.bf16.mxu0 %v4132
    %4166 = vmatpush1.bf16.msra.mxu0 %v4131
    %4167 = vmatprep.subr.bf16.mxu0 %v4130
    %4168 = vmatpush1.bf16.msra.mxu0 %v4129
    %4169 = vmatprep.subr.bf16.mxu0 %v4128
    %4170 = vmatpush1.bf16.msra.mxu0 %v4127
    %4171 = vmatprep.subr.bf16.mxu0 %v4126
    %4172 = vmatpush1.bf16.msra.mxu0 %v4125
    %4173 = vmatprep.subr.bf16.mxu0 0
    %4174 = vmatpush2.bf16.msra.mxu0 0
    %4175 = vmatprep.subr.bf16.mxu0 0
    %4176 = vmatpush2.bf16.msra.mxu0 0
    %4177 = vmatprep.subr.bf16.mxu0 0
    %4178 = vmatpush2.bf16.msra.mxu0 0
    %4179 = vmatprep.subr.bf16.mxu0 0
    %4180 = vmatpush2.bf16.msra.mxu0 0
    %4181 = vmatprep.subr.bf16.mxu0 0
    %4182 = vmatpush2.bf16.msra.mxu0 0
    %4183 = vmatprep.subr.bf16.mxu0 0
    %4184 = vmatpush2.bf16.msra.mxu0 0
    %4185 = vmatprep.subr.bf16.mxu0 0
    %4186 = vmatpush2.bf16.msra.mxu0 0
    %4187 = vmatprep.subr.bf16.mxu0 0
    %4188 = vmatpush2.bf16.msra.mxu0 0
    %4189 = vmatprep.mubr.bf16.mxu0 0
    %4190 = vmatmul.mubr.bf16.gmra.mxu0 %v3999
    %v4191 = vpop.f32.mrf.mxu0
    %v4192 = vadd.f32 %v4070, %v4191
    %v4193 = vpop.f32.mrf.mxu0
    %v4194 = vadd.f32 %v4074, %v4193
    %v4195 = vpop.f32.mrf.mxu0
    %v4196 = vadd.f32 %v4070, %v4195
    %v4197 = vpop.f32.mrf.mxu0
    %v4198 = vadd.f32 %v4074, %v4197
    %4199 = vmatprep.mubr.bf16.mxu0 0
    %4200 = vmatmul.mubr.bf16.gmra.mxu0 %v4000
    %v4201 = vpop.f32.mrf.mxu0
    %v4202 = vadd.f32 %v4070, %v4201
    %v4203 = vpop.f32.mrf.mxu0
    %v4204 = vadd.f32 %v4074, %v4203
    %v4205 = vpop.f32.mrf.mxu0
    %v4206 = vadd.f32 %v4070, %v4205
    %v4207 = vpop.f32.mrf.mxu0
    %v4208 = vadd.f32 %v4074, %v4207
    %4209 = vmatprep.mubr.bf16.mxu0 0
    %4210 = vmatmul.mubr.bf16.gmra.mxu0 %v4001
    %v4211 = vpop.f32.mrf.mxu0
    %v4212 = vadd.f32 %v4070, %v4211
    %v4213 = vpop.f32.mrf.mxu0
    %v4214 = vadd.f32 %v4074, %v4213
    %v4215 = vpop.f32.mrf.mxu0
    %v4216 = vadd.f32 %v4070, %v4215
    %v4217 = vpop.f32.mrf.mxu0
    %v4218 = vadd.f32 %v4074, %v4217
    %4219 = vmatprep.mubr.bf16.mxu0 0
    %4220 = vmatmul.mubr.bf16.gmra.mxu0 %v4002
    %v4221 = vpop.f32.mrf.mxu0
    %v4222 = vadd.f32 %v4070, %v4221
    %v4223 = vpop.f32.mrf.mxu0
    %v4224 = vadd.f32 %v4074, %v4223
    %v4225 = vpop.f32.mrf.mxu0
    %v4226 = vadd.f32 %v4070, %v4225
    %v4227 = vpop.f32.mrf.mxu0
    %v4228 = vadd.f32 %v4074, %v4227
    %4229 = vmatprep.mubr.bf16.mxu0 0
    %4230 = vmatmul.mubr.bf16.gmra.mxu0 %v4003
    %v4231 = vpop.f32.mrf.mxu0
    %v4232 = vadd.f32 %v4070, %v4231
    %v4233 = vpop.f32.mrf.mxu0
    %v4234 = vadd.f32 %v4074, %v4233
    %v4235 = vpop.f32.mrf.mxu0
    %v4236 = vadd.f32 %v4070, %v4235
    %v4237 = vpop.f32.mrf.mxu0
    %v4238 = vadd.f32 %v4074, %v4237
    %4239 = vmatprep.mubr.bf16.mxu0 0
    %4240 = vmatmul.mubr.bf16.gmra.mxu0 %v4004
    %v4241 = vpop.f32.mrf.mxu0
    %v4242 = vadd.f32 %v4070, %v4241
    %v4243 = vpop.f32.mrf.mxu0
    %v4244 = vadd.f32 %v4074, %v4243
    %v4245 = vpop.f32.mrf.mxu0
    %v4246 = vadd.f32 %v4070, %v4245
    %v4247 = vpop.f32.mrf.mxu0
    %v4248 = vadd.f32 %v4074, %v4247
    %4249 = vmatprep.mubr.bf16.mxu0 0
    %4250 = vmatmul.mubr.bf16.gmra.mxu0 %v4005
    %v4251 = vpop.f32.mrf.mxu0
    %v4252 = vadd.f32 %v4070, %v4251
    %v4253 = vpop.f32.mrf.mxu0
    %v4254 = vadd.f32 %v4074, %v4253
    %v4255 = vpop.f32.mrf.mxu0
    %v4256 = vadd.f32 %v4070, %v4255
    %v4257 = vpop.f32.mrf.mxu0
    %v4258 = vadd.f32 %v4074, %v4257
    %4259 = vmatprep.mubr.bf16.mxu0 0
    %4260 = vmatmul.mubr.bf16.gmra.mxu0 %v4006
    %v4261 = vpop.f32.mrf.mxu0
    %v4262 = vadd.f32 %v4070, %v4261
    %v4263 = vpop.f32.mrf.mxu0
    %v4264 = vadd.f32 %v4074, %v4263
    %v4265 = vpop.f32.mrf.mxu0
    %v4266 = vadd.f32 %v4070, %v4265
    %v4267 = vpop.f32.mrf.mxu0
    %v4268 = vadd.f32 %v4074, %v4267
    %4269 = vmatprep.mubr.bf16.mxu0 0
    %4270 = vmatmul.mubr.bf16.gmra.mxu0 %v4007
    %v4271 = vpop.f32.mrf.mxu0
    %v4272 = vadd.f32 %v4070, %v4271
    %v4273 = vpop.f32.mrf.mxu0
    %v4274 = vadd.f32 %v4074, %v4273
    %v4275 = vpop.f32.mrf.mxu0
    %v4276 = vadd.f32 %v4070, %v4275
    %v4277 = vpop.f32.mrf.mxu0
    %v4278 = vadd.f32 %v4074, %v4277
    %4279 = vmatprep.mubr.bf16.mxu0 0
    %4280 = vmatmul.mubr.bf16.gmra.mxu0 %v4008
    %v4281 = vpop.f32.mrf.mxu0
    %v4282 = vadd.f32 %v4070, %v4281
    %v4283 = vpop.f32.mrf.mxu0
    %v4284 = vadd.f32 %v4074, %v4283
    %v4285 = vpop.f32.mrf.mxu0
    %v4286 = vadd.f32 %v4070, %v4285
    %v4287 = vpop.f32.mrf.mxu0
    %v4288 = vadd.f32 %v4074, %v4287
    %4289 = vmatprep.mubr.bf16.mxu0 0
    %4290 = vmatmul.mubr.bf16.gmra.mxu0 %v4009
    %v4291 = vpop.f32.mrf.mxu0
    %v4292 = vadd.f32 %v4070, %v4291
    %v4293 = vpop.f32.mrf.mxu0
    %v4294 = vadd.f32 %v4074, %v4293
    %v4295 = vpop.f32.mrf.mxu0
    %v4296 = vadd.f32 %v4070, %v4295
    %v4297 = vpop.f32.mrf.mxu0
    %v4298 = vadd.f32 %v4074, %v4297
    %4299 = vmatprep.mubr.bf16.mxu0 0
    %4300 = vmatmul.mubr.bf16.gmra.mxu0 %v4010
    %v4301 = vpop.f32.mrf.mxu0
    %v4302 = vadd.f32 %v4070, %v4301
    %v4303 = vpop.f32.mrf.mxu0
    %v4304 = vadd.f32 %v4074, %v4303
    %v4305 = vpop.f32.mrf.mxu0
    %v4306 = vadd.f32 %v4070, %v4305
    %v4307 = vpop.f32.mrf.mxu0
    %v4308 = vadd.f32 %v4074, %v4307
    %4309 = vmatprep.mubr.bf16.mxu0 0
    %4310 = vmatmul.mubr.bf16.gmra.mxu0 %v4011
    %v4311 = vpop.f32.mrf.mxu0
    %v4312 = vadd.f32 %v4070, %v4311
    %v4313 = vpop.f32.mrf.mxu0
    %v4314 = vadd.f32 %v4074, %v4313
    %v4315 = vpop.f32.mrf.mxu0
    %v4316 = vadd.f32 %v4070, %v4315
    %v4317 = vpop.f32.mrf.mxu0
    %v4318 = vadd.f32 %v4074, %v4317
    %4319 = vmatprep.mubr.bf16.mxu0 0
    %4320 = vmatmul.mubr.bf16.gmra.mxu0 %v4012
    %v4321 = vpop.f32.mrf.mxu0
    %v4322 = vadd.f32 %v4070, %v4321
    %v4323 = vpop.f32.mrf.mxu0
    %v4324 = vadd.f32 %v4074, %v4323
    %v4325 = vpop.f32.mrf.mxu0
    %v4326 = vadd.f32 %v4070, %v4325
    %v4327 = vpop.f32.mrf.mxu0
    %v4328 = vadd.f32 %v4074, %v4327
    %4329 = vmatprep.mubr.bf16.mxu0 0
    %4330 = vmatmul.mubr.bf16.gmra.mxu0 %v4013
    %v4331 = vpop.f32.mrf.mxu0
    %v4332 = vadd.f32 %v4070, %v4331
    %v4333 = vpop.f32.mrf.mxu0
    %v4334 = vadd.f32 %v4074, %v4333
    %v4335 = vpop.f32.mrf.mxu0
    %v4336 = vadd.f32 %v4070, %v4335
    %v4337 = vpop.f32.mrf.mxu0
    %v4338 = vadd.f32 %v4074, %v4337
    %4339 = vmatprep.mubr.bf16.mxu0 0
    %4340 = vmatmul.mubr.bf16.gmra.mxu0 %v4014
    %v4341 = vpop.f32.mrf.mxu0
    %v4342 = vadd.f32 %v4070, %v4341
    %v4343 = vpop.f32.mrf.mxu0
    %v4344 = vadd.f32 %v4074, %v4343
    %v4345 = vpop.f32.mrf.mxu0
    %v4346 = vadd.f32 %v4070, %v4345
    %v4347 = vpop.f32.mrf.mxu0
    %v4348 = vadd.f32 %v4074, %v4347
    %4349 = vmatprep.mubr.bf16.mxu0 0
    %4350 = vmatmul.mubr.bf16.gmra.mxu0 %v4015
    %v4351 = vpop.f32.mrf.mxu0
    %v4352 = vadd.f32 %v4070, %v4351
    %v4353 = vpop.f32.mrf.mxu0
    %v4354 = vadd.f32 %v4074, %v4353
    %v4355 = vpop.f32.mrf.mxu0
    %v4356 = vadd.f32 %v4070, %v4355
    %v4357 = vpop.f32.mrf.mxu0
    %v4358 = vadd.f32 %v4074, %v4357
    %4359 = vmatprep.mubr.bf16.mxu0 0
    %4360 = vmatmul.mubr.bf16.gmra.mxu0 %v4016
    %v4361 = vpop.f32.mrf.mxu0
    %v4362 = vadd.f32 %v4070, %v4361
    %v4363 = vpop.f32.mrf.mxu0
    %v4364 = vadd.f32 %v4074, %v4363
    %v4365 = vpop.f32.mrf.mxu0
    %v4366 = vadd.f32 %v4070, %v4365
    %v4367 = vpop.f32.mrf.mxu0
    %v4368 = vadd.f32 %v4074, %v4367
    %4369 = vmatprep.mubr.bf16.mxu0 0
    %4370 = vmatmul.mubr.bf16.gmra.mxu0 %v4017
    %v4371 = vpop.f32.mrf.mxu0
    %v4372 = vadd.f32 %v4070, %v4371
    %v4373 = vpop.f32.mrf.mxu0
    %v4374 = vadd.f32 %v4074, %v4373
    %v4375 = vpop.f32.mrf.mxu0
    %v4376 = vadd.f32 %v4070, %v4375
    %v4377 = vpop.f32.mrf.mxu0
    %v4378 = vadd.f32 %v4074, %v4377
    %4379 = vmatprep.mubr.bf16.mxu0 0
    %4380 = vmatmul.mubr.bf16.gmra.mxu0 %v4018
    %v4381 = vpop.f32.mrf.mxu0
    %v4382 = vadd.f32 %v4070, %v4381
    %v4383 = vpop.f32.mrf.mxu0
    %v4384 = vadd.f32 %v4074, %v4383
    %v4385 = vpop.f32.mrf.mxu0
    %v4386 = vadd.f32 %v4070, %v4385
    %v4387 = vpop.f32.mrf.mxu0
    %v4388 = vadd.f32 %v4074, %v4387
    %4389 = vmatprep.mubr.bf16.mxu0 0
    %4390 = vmatmul.mubr.bf16.gmra.mxu0 %v4019
    %v4391 = vpop.f32.mrf.mxu0
    %v4392 = vadd.f32 %v4070, %v4391
    %v4393 = vpop.f32.mrf.mxu0
    %v4394 = vadd.f32 %v4074, %v4393
    %v4395 = vpop.f32.mrf.mxu0
    %v4396 = vadd.f32 %v4070, %v4395
    %v4397 = vpop.f32.mrf.mxu0
    %v4398 = vadd.f32 %v4074, %v4397
    %4399 = vmatprep.mubr.bf16.mxu0 0
    %4400 = vmatmul.mubr.bf16.gmra.mxu0 %v4020
    %v4401 = vpop.f32.mrf.mxu0
    %v4402 = vadd.f32 %v4070, %v4401
    %v4403 = vpop.f32.mrf.mxu0
    %v4404 = vadd.f32 %v4074, %v4403
    %v4405 = vpop.f32.mrf.mxu0
    %v4406 = vadd.f32 %v4070, %v4405
    %v4407 = vpop.f32.mrf.mxu0
    %v4408 = vadd.f32 %v4074, %v4407
    %4409 = vmatprep.mubr.bf16.mxu0 0
    %4410 = vmatmul.mubr.bf16.gmra.mxu0 %v4021
    %v4411 = vpop.f32.mrf.mxu0
    %v4412 = vadd.f32 %v4070, %v4411
    %v4413 = vpop.f32.mrf.mxu0
    %v4414 = vadd.f32 %v4074, %v4413
    %v4415 = vpop.f32.mrf.mxu0
    %v4416 = vadd.f32 %v4070, %v4415
    %v4417 = vpop.f32.mrf.mxu0
    %v4418 = vadd.f32 %v4074, %v4417
    %4419 = vmatprep.mubr.bf16.mxu0 0
    %4420 = vmatmul.mubr.bf16.gmra.mxu0 %v4022
    %v4421 = vpop.f32.mrf.mxu0
    %v4422 = vadd.f32 %v4070, %v4421
    %v4423 = vpop.f32.mrf.mxu0
    %v4424 = vadd.f32 %v4074, %v4423
    %v4425 = vpop.f32.mrf.mxu0
    %v4426 = vadd.f32 %v4070, %v4425
    %v4427 = vpop.f32.mrf.mxu0
    %v4428 = vadd.f32 %v4074, %v4427
    %4429 = vmatprep.mubr.bf16.mxu0 0
    %4430 = vmatmul.mubr.bf16.gmra.mxu0 %v4023
    %v4431 = vpop.f32.mrf.mxu0
    %v4432 = vadd.f32 %v4070, %v4431
    %v4433 = vpop.f32.mrf.mxu0
    %v4434 = vadd.f32 %v4074, %v4433
    %v4435 = vpop.f32.mrf.mxu0
    %v4436 = vadd.f32 %v4070, %v4435
    %v4437 = vpop.f32.mrf.mxu0
    %v4438 = vadd.f32 %v4074, %v4437
    %4439 = vmatprep.mubr.bf16.mxu0 0
    %4440 = vmatmul.mubr.bf16.gmra.mxu0 %v4024
    %v4441 = vpop.f32.mrf.mxu0
    %v4442 = vadd.f32 %v4070, %v4441
    %v4443 = vpop.f32.mrf.mxu0
    %v4444 = vadd.f32 %v4074, %v4443
    %v4445 = vpop.f32.mrf.mxu0
    %v4446 = vadd.f32 %v4070, %v4445
    %v4447 = vpop.f32.mrf.mxu0
    %v4448 = vadd.f32 %v4074, %v4447
    %4449 = vmatprep.mubr.bf16.mxu0 0
    %4450 = vmatmul.mubr.bf16.gmra.mxu0 %v4025
    %v4451 = vpop.f32.mrf.mxu0
    %v4452 = vadd.f32 %v4070, %v4451
    %v4453 = vpop.f32.mrf.mxu0
    %v4454 = vadd.f32 %v4074, %v4453
    %v4455 = vpop.f32.mrf.mxu0
    %v4456 = vadd.f32 %v4070, %v4455
    %v4457 = vpop.f32.mrf.mxu0
    %v4458 = vadd.f32 %v4074, %v4457
    %4459 = vmatprep.mubr.bf16.mxu0 0
    %4460 = vmatmul.mubr.bf16.gmra.mxu0 %v4026
    %v4461 = vpop.f32.mrf.mxu0
    %v4462 = vadd.f32 %v4070, %v4461
    %v4463 = vpop.f32.mrf.mxu0
    %v4464 = vadd.f32 %v4074, %v4463
    %v4465 = vpop.f32.mrf.mxu0
    %v4466 = vadd.f32 %v4070, %v4465
    %v4467 = vpop.f32.mrf.mxu0
    %v4468 = vadd.f32 %v4074, %v4467
    %4469 = vmatprep.mubr.bf16.mxu0 0
    %4470 = vmatmul.mubr.bf16.gmra.mxu0 %v4027
    %v4471 = vpop.f32.mrf.mxu0
    %v4472 = vadd.f32 %v4070, %v4471
    %v4473 = vpop.f32.mrf.mxu0
    %v4474 = vadd.f32 %v4074, %v4473
    %v4475 = vpop.f32.mrf.mxu0
    %v4476 = vadd.f32 %v4070, %v4475
    %v4477 = vpop.f32.mrf.mxu0
    %v4478 = vadd.f32 %v4074, %v4477
    %4479 = vmatprep.mubr.bf16.mxu0 0
    %4480 = vmatmul.mubr.bf16.gmra.mxu0 %v4028
    %v4481 = vpop.f32.mrf.mxu0
    %v4482 = vadd.f32 %v4070, %v4481
    %v4483 = vpop.f32.mrf.mxu0
    %v4484 = vadd.f32 %v4074, %v4483
    %v4485 = vpop.f32.mrf.mxu0
    %v4486 = vadd.f32 %v4070, %v4485
    %v4487 = vpop.f32.mrf.mxu0
    %v4488 = vadd.f32 %v4074, %v4487
    %4489 = vmatprep.mubr.bf16.mxu0 0
    %4490 = vmatmul.mubr.bf16.gmra.mxu0 %v4029
    %v4491 = vpop.f32.mrf.mxu0
    %v4492 = vadd.f32 %v4070, %v4491
    %v4493 = vpop.f32.mrf.mxu0
    %v4494 = vadd.f32 %v4074, %v4493
    %v4495 = vpop.f32.mrf.mxu0
    %v4496 = vadd.f32 %v4070, %v4495
    %v4497 = vpop.f32.mrf.mxu0
    %v4498 = vadd.f32 %v4074, %v4497
    %4499 = vmatprep.mubr.bf16.mxu0 0
    %4500 = vmatmul.mubr.bf16.gmra.mxu0 %v4030
    %v4501 = vpop.f32.mrf.mxu0
    %v4502 = vadd.f32 %v4070, %v4501
    %v4503 = vpop.f32.mrf.mxu0
    %v4504 = vadd.f32 %v4074, %v4503
    %v4505 = vpop.f32.mrf.mxu0
    %v4506 = vadd.f32 %v4070, %v4505
    %v4507 = vpop.f32.mrf.mxu0
    %v4508 = vadd.f32 %v4074, %v4507
    %4509 = vmatprep.mubr.bf16.mxu0 0
    %4510 = vmatmul.mubr.bf16.gmra.mxu0 %v4031
    %v4511 = vpop.f32.mrf.mxu0
    %v4512 = vadd.f32 %v4070, %v4511
    %v4513 = vpop.f32.mrf.mxu0
    %v4514 = vadd.f32 %v4074, %v4513
    %v4515 = vpop.f32.mrf.mxu0
    %v4516 = vadd.f32 %v4070, %v4515
    %v4517 = vpop.f32.mrf.mxu0
    %v4518 = vadd.f32 %v4074, %v4517
    %4519 = vmatprep.mubr.bf16.mxu0 0
    %4520 = vmatmul.mubr.bf16.gmra.mxu0 %v4032
    %v4521 = vpop.f32.mrf.mxu0
    %v4522 = vadd.f32 %v4070, %v4521
    %v4523 = vpop.f32.mrf.mxu0
    %v4524 = vadd.f32 %v4074, %v4523
    %v4525 = vpop.f32.mrf.mxu0
    %v4526 = vadd.f32 %v4070, %v4525
    %v4527 = vpop.f32.mrf.mxu0
    %v4528 = vadd.f32 %v4074, %v4527
    %4529 = vmatprep.mubr.bf16.mxu0 0
    %4530 = vmatmul.mubr.bf16.gmra.mxu0 %v4033
    %v4531 = vpop.f32.mrf.mxu0
    %v4532 = vadd.f32 %v4070, %v4531
    %v4533 = vpop.f32.mrf.mxu0
    %v4534 = vadd.f32 %v4074, %v4533
    %v4535 = vpop.f32.mrf.mxu0
    %v4536 = vadd.f32 %v4070, %v4535
    %v4537 = vpop.f32.mrf.mxu0
    %v4538 = vadd.f32 %v4074, %v4537
    %4539 = vmatprep.mubr.bf16.mxu0 0
    %4540 = vmatmul.mubr.bf16.gmra.mxu0 %v4034
    %v4541 = vpop.f32.mrf.mxu0
    %v4542 = vadd.f32 %v4070, %v4541
    %v4543 = vpop.f32.mrf.mxu0
    %v4544 = vadd.f32 %v4074, %v4543
    %v4545 = vpop.f32.mrf.mxu0
    %v4546 = vadd.f32 %v4070, %v4545
    %v4547 = vpop.f32.mrf.mxu0
    %v4548 = vadd.f32 %v4074, %v4547
    %4549 = vmatprep.mubr.bf16.mxu0 0
    %4550 = vmatmul.mubr.bf16.gmra.mxu0 %v4035
    %v4551 = vpop.f32.mrf.mxu0
    %v4552 = vadd.f32 %v4070, %v4551
    %v4553 = vpop.f32.mrf.mxu0
    %v4554 = vadd.f32 %v4074, %v4553
    %v4555 = vpop.f32.mrf.mxu0
    %v4556 = vadd.f32 %v4070, %v4555
    %v4557 = vpop.f32.mrf.mxu0
    %v4558 = vadd.f32 %v4074, %v4557
    %4559 = vmatprep.mubr.bf16.mxu0 0
    %4560 = vmatmul.mubr.bf16.gmra.mxu0 %v4036
    %v4561 = vpop.f32.mrf.mxu0
    %v4562 = vadd.f32 %v4070, %v4561
    %v4563 = vpop.f32.mrf.mxu0
    %v4564 = vadd.f32 %v4074, %v4563
    %v4565 = vpop.f32.mrf.mxu0
    %v4566 = vadd.f32 %v4070, %v4565
    %v4567 = vpop.f32.mrf.mxu0
    %v4568 = vadd.f32 %v4074, %v4567
    %4569 = vmatprep.mubr.bf16.mxu0 0
    %4570 = vmatmul.mubr.bf16.gmra.mxu0 %v4037
    %v4571 = vpop.f32.mrf.mxu0
    %v4572 = vadd.f32 %v4070, %v4571
    %v4573 = vpop.f32.mrf.mxu0
    %v4574 = vadd.f32 %v4074, %v4573
    %v4575 = vpop.f32.mrf.mxu0
    %v4576 = vadd.f32 %v4070, %v4575
    %v4577 = vpop.f32.mrf.mxu0
    %v4578 = vadd.f32 %v4074, %v4577
    %4579 = vmatprep.mubr.bf16.mxu0 0
    %4580 = vmatmul.mubr.bf16.gmra.mxu0 %v4038
    %v4581 = vpop.f32.mrf.mxu0
    %v4582 = vadd.f32 %v4070, %v4581
    %v4583 = vpop.f32.mrf.mxu0
    %v4584 = vadd.f32 %v4074, %v4583
    %v4585 = vpop.f32.mrf.mxu0
    %v4586 = vadd.f32 %v4070, %v4585
    %v4587 = vpop.f32.mrf.mxu0
    %v4588 = vadd.f32 %v4074, %v4587
    %4589 = vmatprep.mubr.bf16.mxu0 0
    %4590 = vmatmul.mubr.bf16.gmra.mxu0 %v4039
    %v4591 = vpop.f32.mrf.mxu0
    %v4592 = vadd.f32 %v4070, %v4591
    %v4593 = vpop.f32.mrf.mxu0
    %v4594 = vadd.f32 %v4074, %v4593
    %v4595 = vpop.f32.mrf.mxu0
    %v4596 = vadd.f32 %v4070, %v4595
    %v4597 = vpop.f32.mrf.mxu0
    %v4598 = vadd.f32 %v4074, %v4597
    %4599 = vmatprep.mubr.bf16.mxu0 0
    %4600 = vmatmul.mubr.bf16.gmra.mxu0 %v4040
    %v4601 = vpop.f32.mrf.mxu0
    %v4602 = vadd.f32 %v4070, %v4601
    %v4603 = vpop.f32.mrf.mxu0
    %v4604 = vadd.f32 %v4074, %v4603
    %v4605 = vpop.f32.mrf.mxu0
    %v4606 = vadd.f32 %v4070, %v4605
    %v4607 = vpop.f32.mrf.mxu0
    %v4608 = vadd.f32 %v4074, %v4607
    %4609 = vmatprep.mubr.bf16.mxu0 0
    %4610 = vmatmul.mubr.bf16.gmra.mxu0 %v4041
    %v4611 = vpop.f32.mrf.mxu0
    %v4612 = vadd.f32 %v4070, %v4611
    %v4613 = vpop.f32.mrf.mxu0
    %v4614 = vadd.f32 %v4074, %v4613
    %v4615 = vpop.f32.mrf.mxu0
    %v4616 = vadd.f32 %v4070, %v4615
    %v4617 = vpop.f32.mrf.mxu0
    %v4618 = vadd.f32 %v4074, %v4617
    %4619 = vmatprep.mubr.bf16.mxu0 0
    %4620 = vmatmul.mubr.bf16.gmra.mxu0 %v4042
    %v4621 = vpop.f32.mrf.mxu0
    %v4622 = vadd.f32 %v4070, %v4621
    %v4623 = vpop.f32.mrf.mxu0
    %v4624 = vadd.f32 %v4074, %v4623
    %v4625 = vpop.f32.mrf.mxu0
    %v4626 = vadd.f32 %v4070, %v4625
    %v4627 = vpop.f32.mrf.mxu0
    %v4628 = vadd.f32 %v4074, %v4627
    %4629 = vmatprep.mubr.bf16.mxu0 0
    %4630 = vmatmul.mubr.bf16.gmra.mxu0 %v4043
    %v4631 = vpop.f32.mrf.mxu0
    %v4632 = vadd.f32 %v4070, %v4631
    %v4633 = vpop.f32.mrf.mxu0
    %v4634 = vadd.f32 %v4074, %v4633
    %v4635 = vpop.f32.mrf.mxu0
    %v4636 = vadd.f32 %v4070, %v4635
    %v4637 = vpop.f32.mrf.mxu0
    %v4638 = vadd.f32 %v4074, %v4637
    %4639 = vmatprep.mubr.bf16.mxu0 0
    %4640 = vmatmul.mubr.bf16.gmra.mxu0 %v4044
    %v4641 = vpop.f32.mrf.mxu0
    %v4642 = vadd.f32 %v4070, %v4641
    %v4643 = vpop.f32.mrf.mxu0
    %v4644 = vadd.f32 %v4074, %v4643
    %v4645 = vpop.f32.mrf.mxu0
    %v4646 = vadd.f32 %v4070, %v4645
    %v4647 = vpop.f32.mrf.mxu0
    %v4648 = vadd.f32 %v4074, %v4647
    %4649 = vmatprep.mubr.bf16.mxu0 0
    %4650 = vmatmul.mubr.bf16.gmra.mxu0 %v4045
    %v4651 = vpop.f32.mrf.mxu0
    %v4652 = vadd.f32 %v4070, %v4651
    %v4653 = vpop.f32.mrf.mxu0
    %v4654 = vadd.f32 %v4074, %v4653
    %v4655 = vpop.f32.mrf.mxu0
    %v4656 = vadd.f32 %v4070, %v4655
    %v4657 = vpop.f32.mrf.mxu0
    %v4658 = vadd.f32 %v4074, %v4657
    %4659 = vmatprep.mubr.bf16.mxu0 0
    %4660 = vmatmul.mubr.bf16.gmra.mxu0 %v4046
    %v4661 = vpop.f32.mrf.mxu0
    %v4662 = vadd.f32 %v4070, %v4661
    %v4663 = vpop.f32.mrf.mxu0
    %v4664 = vadd.f32 %v4074, %v4663
    %v4665 = vpop.f32.mrf.mxu0
    %v4666 = vadd.f32 %v4070, %v4665
    %v4667 = vpop.f32.mrf.mxu0
    %v4668 = vadd.f32 %v4074, %v4667
    %4669 = vmatprep.mubr.bf16.mxu0 0
    %4670 = vmatmul.mubr.bf16.gmra.mxu0 %v4047
    %v4671 = vpop.f32.mrf.mxu0
    %v4672 = vadd.f32 %v4070, %v4671
    %v4673 = vpop.f32.mrf.mxu0
    %v4674 = vadd.f32 %v4074, %v4673
    %v4675 = vpop.f32.mrf.mxu0
    %v4676 = vadd.f32 %v4070, %v4675
    %v4677 = vpop.f32.mrf.mxu0
    %v4678 = vadd.f32 %v4074, %v4677
    %4679 = vmatprep.mubr.bf16.mxu0 0
    %4680 = vmatmul.mubr.bf16.gmra.mxu0 %v4048
    %v4681 = vpop.f32.mrf.mxu0
    %v4682 = vadd.f32 %v4070, %v4681
    %v4683 = vpop.f32.mrf.mxu0
    %v4684 = vadd.f32 %v4074, %v4683
    %v4685 = vpop.f32.mrf.mxu0
    %v4686 = vadd.f32 %v4070, %v4685
    %v4687 = vpop.f32.mrf.mxu0
    %v4688 = vadd.f32 %v4074, %v4687
    %4689 = vdwg.mxu0
    %4690 = vst [vmem:[#allocation6] sm:$0xff] %v4192
    %4691 = vst [vmem:[#allocation6 + $0x8] sm:$0xff] %v4194
    %4692 = vst [vmem:[#allocation6 + $0x10] sm:$0xff] %v4196
    %4693 = vst [vmem:[#allocation6 + $0x18] sm:$0xff] %v4198
    %4694 = vst [vmem:[#allocation6 + $0x20] sm:$0xff] %v4202
    %4695 = vst [vmem:[#allocation6 + $0x28] sm:$0xff] %v4204
    %4696 = vst [vmem:[#allocation6 + $0x30] sm:$0xff] %v4206
    %4697 = vst [vmem:[#allocation6 + $0x38] sm:$0xff] %v4208
    %4698 = vst [vmem:[#allocation6 + $0x40] sm:$0xff] %v4212
    %4699 = vst [vmem:[#allocation6 + $0x48] sm:$0xff] %v4214
    %4700 = vst [vmem:[#allocation6 + $0x50] sm:$0xff] %v4216
    %4701 = vst [vmem:[#allocation6 + $0x58] sm:$0xff] %v4218
    %4702 = vst [vmem:[#allocation6 + $0x60] sm:$0xff] %v4222
    %4703 = vst [vmem:[#allocation6 + $0x68] sm:$0xff] %v4224
    %4704 = vst [vmem:[#allocation6 + $0x70] sm:$0xff] %v4226
    %4705 = vst [vmem:[#allocation6 + $0x78] sm:$0xff] %v4228
    %4706 = vst [vmem:[#allocation6 + $0x80] sm:$0xff] %v4232
    %4707 = vst [vmem:[#allocation6 + $0x88] sm:$0xff] %v4234
    %4708 = vst [vmem:[#allocation6 + $0x90] sm:$0xff] %v4236
    %4709 = vst [vmem:[#allocation6 + $0x98] sm:$0xff] %v4238
    %4710 = vst [vmem:[#allocation6 + $0xa0] sm:$0xff] %v4242
    %4711 = vst [vmem:[#allocation6 + $0xa8] sm:$0xff] %v4244
    %4712 = vst [vmem:[#allocation6 + $0xb0] sm:$0xff] %v4246
    %4713 = vst [vmem:[#allocation6 + $0xb8] sm:$0xff] %v4248
    %4714 = vst [vmem:[#allocation6 + $0xc0] sm:$0xff] %v4252
    %4715 = vst [vmem:[#allocation6 + $0xc8] sm:$0xff] %v4254
    %4716 = vst [vmem:[#allocation6 + $0xd0] sm:$0xff] %v4256
    %4717 = vst [vmem:[#allocation6 + $0xd8] sm:$0xff] %v4258
    %4718 = vst [vmem:[#allocation6 + $0xe0] sm:$0xff] %v4262
    %4719 = vst [vmem:[#allocation6 + $0xe8] sm:$0xff] %v4264
    %4720 = vst [vmem:[#allocation6 + $0xf0] sm:$0xff] %v4266
    %4721 = vst [vmem:[#allocation6 + $0xf8] sm:$0xff] %v4268
    %4722 = vst [vmem:[#allocation6 + $0x100] sm:$0xff] %v4272
    %4723 = vst [vmem:[#allocation6 + $0x108] sm:$0xff] %v4274
    %4724 = vst [vmem:[#allocation6 + $0x110] sm:$0xff] %v4276
    %4725 = vst [vmem:[#allocation6 + $0x118] sm:$0xff] %v4278
    %4726 = vst [vmem:[#allocation6 + $0x120] sm:$0xff] %v4282
    %4727 = vst [vmem:[#allocation6 + $0x128] sm:$0xff] %v4284
    %4728 = vst [vmem:[#allocation6 + $0x130] sm:$0xff] %v4286
    %4729 = vst [vmem:[#allocation6 + $0x138] sm:$0xff] %v4288
    %4730 = vst [vmem:[#allocation6 + $0x140] sm:$0xff] %v4292
    %4731 = vst [vmem:[#allocation6 + $0x148] sm:$0xff] %v4294
    %4732 = vst [vmem:[#allocation6 + $0x150] sm:$0xff] %v4296
    %4733 = vst [vmem:[#allocation6 + $0x158] sm:$0xff] %v4298
    %4734 = vst [vmem:[#allocation6 + $0x160] sm:$0xff] %v4302
    %4735 = vst [vmem:[#allocation6 + $0x168] sm:$0xff] %v4304
    %4736 = vst [vmem:[#allocation6 + $0x170] sm:$0xff] %v4306
    %4737 = vst [vmem:[#allocation6 + $0x178] sm:$0xff] %v4308
    %4738 = vst [vmem:[#allocation6 + $0x180] sm:$0xff] %v4312
    %4739 = vst [vmem:[#allocation6 + $0x188] sm:$0xff] %v4314
    %4740 = vst [vmem:[#allocation6 + $0x190] sm:$0xff] %v4316
    %4741 = vst [vmem:[#allocation6 + $0x198] sm:$0xff] %v4318
    %4742 = vst [vmem:[#allocation6 + $0x1a0] sm:$0xff] %v4322
    %4743 = vst [vmem:[#allocation6 + $0x1a8] sm:$0xff] %v4324
    %4744 = vst [vmem:[#allocation6 + $0x1b0] sm:$0xff] %v4326
    %4745 = vst [vmem:[#allocation6 + $0x1b8] sm:$0xff] %v4328
    %4746 = vst [vmem:[#allocation6 + $0x1c0] sm:$0xff] %v4332
    %4747 = vst [vmem:[#allocation6 + $0x1c8] sm:$0xff] %v4334
    %4748 = vst [vmem:[#allocation6 + $0x1d0] sm:$0xff] %v4336
    %4749 = vst [vmem:[#allocation6 + $0x1d8] sm:$0xff] %v4338
    %4750 = vst [vmem:[#allocation6 + $0x1e0] sm:$0xff] %v4342
    %4751 = vst [vmem:[#allocation6 + $0x1e8] sm:$0xff] %v4344
    %4752 = vst [vmem:[#allocation6 + $0x1f0] sm:$0xff] %v4346
    %4753 = vst [vmem:[#allocation6 + $0x1f8] sm:$0xff] %v4348
    %4754 = vst [vmem:[#allocation6 + $0x200] sm:$0xff] %v4352
    %4755 = vst [vmem:[#allocation6 + $0x208] sm:$0xff] %v4354
    %4756 = vst [vmem:[#allocation6 + $0x210] sm:$0xff] %v4356
    %4757 = vst [vmem:[#allocation6 + $0x218] sm:$0xff] %v4358
    %4758 = vst [vmem:[#allocation6 + $0x220] sm:$0xff] %v4362
    %4759 = vst [vmem:[#allocation6 + $0x228] sm:$0xff] %v4364
    %4760 = vst [vmem:[#allocation6 + $0x230] sm:$0xff] %v4366
    %4761 = vst [vmem:[#allocation6 + $0x238] sm:$0xff] %v4368
    %4762 = vst [vmem:[#allocation6 + $0x240] sm:$0xff] %v4372
    %4763 = vst [vmem:[#allocation6 + $0x248] sm:$0xff] %v4374
    %4764 = vst [vmem:[#allocation6 + $0x250] sm:$0xff] %v4376
    %4765 = vst [vmem:[#allocation6 + $0x258] sm:$0xff] %v4378
    %4766 = vst [vmem:[#allocation6 + $0x260] sm:$0xff] %v4382
    %4767 = vst [vmem:[#allocation6 + $0x268] sm:$0xff] %v4384
    %4768 = vst [vmem:[#allocation6 + $0x270] sm:$0xff] %v4386
    %4769 = vst [vmem:[#allocation6 + $0x278] sm:$0xff] %v4388
    %4770 = vst [vmem:[#allocation6 + $0x280] sm:$0xff] %v4392
    %4771 = vst [vmem:[#allocation6 + $0x288] sm:$0xff] %v4394
    %4772 = vst [vmem:[#allocation6 + $0x290] sm:$0xff] %v4396
    %4773 = vst [vmem:[#allocation6 + $0x298] sm:$0xff] %v4398
    %4774 = vst [vmem:[#allocation6 + $0x2a0] sm:$0xff] %v4402
    %4775 = vst [vmem:[#allocation6 + $0x2a8] sm:$0xff] %v4404
    %4776 = vst [vmem:[#allocation6 + $0x2b0] sm:$0xff] %v4406
    %4777 = vst [vmem:[#allocation6 + $0x2b8] sm:$0xff] %v4408
    %4778 = vst [vmem:[#allocation6 + $0x2c0] sm:$0xff] %v4412
    %4779 = vst [vmem:[#allocation6 + $0x2c8] sm:$0xff] %v4414
    %4780 = vst [vmem:[#allocation6 + $0x2d0] sm:$0xff] %v4416
    %4781 = vst [vmem:[#allocation6 + $0x2d8] sm:$0xff] %v4418
    %4782 = vst [vmem:[#allocation6 + $0x2e0] sm:$0xff] %v4422
    %4783 = vst [vmem:[#allocation6 + $0x2e8] sm:$0xff] %v4424
    %4784 = vst [vmem:[#allocation6 + $0x2f0] sm:$0xff] %v4426
    %4785 = vst [vmem:[#allocation6 + $0x2f8] sm:$0xff] %v4428
    %4786 = vst [vmem:[#allocation6 + $0x300] sm:$0xff] %v4432
    %4787 = vst [vmem:[#allocation6 + $0x308] sm:$0xff] %v4434
    %4788 = vst [vmem:[#allocation6 + $0x310] sm:$0xff] %v4436
    %4789 = vst [vmem:[#allocation6 + $0x318] sm:$0xff] %v4438
    %4790 = vst [vmem:[#allocation6 + $0x320] sm:$0xff] %v4442
    %4791 = vst [vmem:[#allocation6 + $0x328] sm:$0xff] %v4444
    %4792 = vst [vmem:[#allocation6 + $0x330] sm:$0xff] %v4446
    %4793 = vst [vmem:[#allocation6 + $0x338] sm:$0xff] %v4448
    %4794 = vst [vmem:[#allocation6 + $0x340] sm:$0xff] %v4452
    %4795 = vst [vmem:[#allocation6 + $0x348] sm:$0xff] %v4454
    %4796 = vst [vmem:[#allocation6 + $0x350] sm:$0xff] %v4456
    %4797 = vst [vmem:[#allocation6 + $0x358] sm:$0xff] %v4458
    %4798 = vst [vmem:[#allocation6 + $0x360] sm:$0xff] %v4462
    %4799 = vst [vmem:[#allocation6 + $0x368] sm:$0xff] %v4464
    %4800 = vst [vmem:[#allocation6 + $0x370] sm:$0xff] %v4466
    %4801 = vst [vmem:[#allocation6 + $0x378] sm:$0xff] %v4468
    %4802 = vst [vmem:[#allocation6 + $0x380] sm:$0xff] %v4472
    %4803 = vst [vmem:[#allocation6 + $0x388] sm:$0xff] %v4474
    %4804 = vst [vmem:[#allocation6 + $0x390] sm:$0xff] %v4476
    %4805 = vst [vmem:[#allocation6 + $0x398] sm:$0xff] %v4478
    %4806 = vst [vmem:[#allocation6 + $0x3a0] sm:$0xff] %v4482
    %4807 = vst [vmem:[#allocation6 + $0x3a8] sm:$0xff] %v4484
    %4808 = vst [vmem:[#allocation6 + $0x3b0] sm:$0xff] %v4486
    %4809 = vst [vmem:[#allocation6 + $0x3b8] sm:$0xff] %v4488
    %4810 = vst [vmem:[#allocation6 + $0x3c0] sm:$0xff] %v4492
    %4811 = vst [vmem:[#allocation6 + $0x3c8] sm:$0xff] %v4494
    %4812 = vst [vmem:[#allocation6 + $0x3d0] sm:$0xff] %v4496
    %4813 = vst [vmem:[#allocation6 + $0x3d8] sm:$0xff] %v4498
    %4814 = vst [vmem:[#allocation6 + $0x3e0] sm:$0xff] %v4502
    %4815 = vst [vmem:[#allocation6 + $0x3e8] sm:$0xff] %v4504
    %4816 = vst [vmem:[#allocation6 + $0x3f0] sm:$0xff] %v4506
    %4817 = vst [vmem:[#allocation6 + $0x3f8] sm:$0xff] %v4508
    %4818 = vst [vmem:[#allocation6 + $0x400] sm:$0xff] %v4512
    %4819 = vst [vmem:[#allocation6 + $0x408] sm:$0xff] %v4514
    %4820 = vst [vmem:[#allocation6 + $0x410] sm:$0xff] %v4516
    %4821 = vst [vmem:[#allocation6 + $0x418] sm:$0xff] %v4518
    %4822 = vst [vmem:[#allocation6 + $0x420] sm:$0xff] %v4522
    %4823 = vst [vmem:[#allocation6 + $0x428] sm:$0xff] %v4524
    %4824 = vst [vmem:[#allocation6 + $0x430] sm:$0xff] %v4526
    %4825 = vst [vmem:[#allocation6 + $0x438] sm:$0xff] %v4528
    %4826 = vst [vmem:[#allocation6 + $0x440] sm:$0xff] %v4532
    %4827 = vst [vmem:[#allocation6 + $0x448] sm:$0xff] %v4534
    %4828 = vst [vmem:[#allocation6 + $0x450] sm:$0xff] %v4536
    %4829 = vst [vmem:[#allocation6 + $0x458] sm:$0xff] %v4538
    %4830 = vst [vmem:[#allocation6 + $0x460] sm:$0xff] %v4542
    %4831 = vst [vmem:[#allocation6 + $0x468] sm:$0xff] %v4544
    %4832 = vst [vmem:[#allocation6 + $0x470] sm:$0xff] %v4546
    %4833 = vst [vmem:[#allocation6 + $0x478] sm:$0xff] %v4548
    %4834 = vst [vmem:[#allocation6 + $0x480] sm:$0xff] %v4552
    %4835 = vst [vmem:[#allocation6 + $0x488] sm:$0xff] %v4554
    %4836 = vst [vmem:[#allocation6 + $0x490] sm:$0xff] %v4556
    %4837 = vst [vmem:[#allocation6 + $0x498] sm:$0xff] %v4558
    %4838 = vst [vmem:[#allocation6 + $0x4a0] sm:$0xff] %v4562
    %4839 = vst [vmem:[#allocation6 + $0x4a8] sm:$0xff] %v4564
    %4840 = vst [vmem:[#allocation6 + $0x4b0] sm:$0xff] %v4566
    %4841 = vst [vmem:[#allocation6 + $0x4b8] sm:$0xff] %v4568
    %4842 = vst [vmem:[#allocation6 + $0x4c0] sm:$0xff] %v4572
    %4843 = vst [vmem:[#allocation6 + $0x4c8] sm:$0xff] %v4574
    %4844 = vst [vmem:[#allocation6 + $0x4d0] sm:$0xff] %v4576
    %4845 = vst [vmem:[#allocation6 + $0x4d8] sm:$0xff] %v4578
    %4846 = vst [vmem:[#allocation6 + $0x4e0] sm:$0xff] %v4582
    %4847 = vst [vmem:[#allocation6 + $0x4e8] sm:$0xff] %v4584
    %4848 = vst [vmem:[#allocation6 + $0x4f0] sm:$0xff] %v4586
    %4849 = vst [vmem:[#allocation6 + $0x4f8] sm:$0xff] %v4588
    %4850 = vst [vmem:[#allocation6 + $0x500] sm:$0xff] %v4592
    %4851 = vst [vmem:[#allocation6 + $0x508] sm:$0xff] %v4594
    %4852 = vst [vmem:[#allocation6 + $0x510] sm:$0xff] %v4596
    %4853 = vst [vmem:[#allocation6 + $0x518] sm:$0xff] %v4598
    %4854 = vst [vmem:[#allocation6 + $0x520] sm:$0xff] %v4602
    %4855 = vst [vmem:[#allocation6 + $0x528] sm:$0xff] %v4604
    %4856 = vst [vmem:[#allocation6 + $0x530] sm:$0xff] %v4606
    %4857 = vst [vmem:[#allocation6 + $0x538] sm:$0xff] %v4608
    %4858 = vst [vmem:[#allocation6 + $0x540] sm:$0xff] %v4612
    %4859 = vst [vmem:[#allocation6 + $0x548] sm:$0xff] %v4614
    %4860 = vst [vmem:[#allocation6 + $0x550] sm:$0xff] %v4616
    %4861 = vst [vmem:[#allocation6 + $0x558] sm:$0xff] %v4618
    %4862 = vst [vmem:[#allocation6 + $0x560] sm:$0xff] %v4622
    %4863 = vst [vmem:[#allocation6 + $0x568] sm:$0xff] %v4624
    %4864 = vst [vmem:[#allocation6 + $0x570] sm:$0xff] %v4626
    %4865 = vst [vmem:[#allocation6 + $0x578] sm:$0xff] %v4628
    %4866 = vst [vmem:[#allocation6 + $0x580] sm:$0xff] %v4632
    %4867 = vst [vmem:[#allocation6 + $0x588] sm:$0xff] %v4634
    %4868 = vst [vmem:[#allocation6 + $0x590] sm:$0xff] %v4636
    %4869 = vst [vmem:[#allocation6 + $0x598] sm:$0xff] %v4638
    %4870 = vst [vmem:[#allocation6 + $0x5a0] sm:$0xff] %v4642
    %4871 = vst [vmem:[#allocation6 + $0x5a8] sm:$0xff] %v4644
    %4872 = vst [vmem:[#allocation6 + $0x5b0] sm:$0xff] %v4646
    %4873 = vst [vmem:[#allocation6 + $0x5b8] sm:$0xff] %v4648
    %4874 = vst [vmem:[#allocation6 + $0x5c0] sm:$0xff] %v4652
    %4875 = vst [vmem:[#allocation6 + $0x5c8] sm:$0xff] %v4654
    %4876 = vst [vmem:[#allocation6 + $0x5d0] sm:$0xff] %v4656
    %4877 = vst [vmem:[#allocation6 + $0x5d8] sm:$0xff] %v4658
    %4878 = vst [vmem:[#allocation6 + $0x5e0] sm:$0xff] %v4662
    %4879 = vst [vmem:[#allocation6 + $0x5e8] sm:$0xff] %v4664
    %4880 = vst [vmem:[#allocation6 + $0x5f0] sm:$0xff] %v4666
    %4881 = vst [vmem:[#allocation6 + $0x5f8] sm:$0xff] %v4668
    %4882 = vst [vmem:[#allocation6 + $0x600] sm:$0xff] %v4672
    %4883 = vst [vmem:[#allocation6 + $0x608] sm:$0xff] %v4674
    %4884 = vst [vmem:[#allocation6 + $0x610] sm:$0xff] %v4676
    %4885 = vst [vmem:[#allocation6 + $0x618] sm:$0xff] %v4678
    %4886 = vst [vmem:[#allocation6 + $0x620] sm:$0xff] %v4682
    %4887 = vst [vmem:[#allocation6 + $0x628] sm:$0xff] %v4684
    %4888 = vst [vmem:[#allocation6 + $0x630] sm:$0xff] %v4686
    %4889 = vst [vmem:[#allocation6 + $0x638] sm:$0xff] %v4688
    // Predicated region
    $region64: #{loung_nmt_forward.1} parent=1 // pred_check
      _
    $region65: #{loung_nmt_forward.1} parent=1 // pred_check_branch
      %4891 = sbr.rel (0) target = $region67
    $region66: #{loung_nmt_forward.1} parent=1 // pred_region
      %s4893 = ssub.s32 25600, 25600
      %4894 = vsyncadd [#allocation7], %s4893
      %s4895 = sshll.u32 [#allocation6], 4
      %s4896 = int_to_ptr.vmem [resolvable:$true] %s4895
      %4901 = dma.vmem_to_hbm [thread:$0]  %s4896, 25600, %s12, [#allocation7], 256, 256, 16
    $region67: #{loung_nmt_forward.1} parent=1 // pred_fallthru
      _
    // Predicated region
    $region68: #{loung_nmt_forward.1} parent=1 // pred_check
      _
    $region69: #{loung_nmt_forward.1} parent=1 // pred_check_branch
      %4903 = sbr.rel (0) target = $region71
    $region70: #{loung_nmt_forward.1} parent=1 // pred_region
      %4904 = dma.done [#allocation7], 25600
    $region71: #{loung_nmt_forward.1} parent=1 // pred_fallthru
      _
    %4905 = vsyncpa [#allocation7], 1

</llo_original>
